<compile_context>
chip_gen: v7x
topology: tpu7x:2x2x1
jax: 0.10.0
libtpu: 0.0.40
codegen_flags: <defaults>
</compile_context>

<pallas_src>
import functools

import jax
import jax.numpy as jnp
import numpy as np
from jax.experimental import pallas as pl
from jax.experimental.pallas import tpu as pltpu

EPS = 1e-5


# ----------------------------------------------------------------------------
# Grid-invariant constants built once outside the kernels
# ----------------------------------------------------------------------------
def _make_tap_masks(H, W):
    """(9, H*W) f32 validity masks for the 9 taps of a pad-1 3x3 conv."""
    M = H * W
    m = np.arange(M)
    h_idx, w_idx = m // W, m % W
    masks = np.zeros((9, M), np.float32)
    for dy in range(3):
        for dx in range(3):
            k = dy * 3 + dx
            valid = ((h_idx >= 1 - dy) & (h_idx < H + 1 - dy) &
                     (w_idx >= 1 - dx) & (w_idx < W + 1 - dx))
            masks[k] = valid.astype(np.float32)
    return jnp.asarray(masks)


def _make_segment_mats(H, W, dtype):
    """0/1 matrices for per-W-segment sums along the flattened H*W lane axis."""
    M = H * W
    seg = np.arange(M) // W
    a_mh = (seg[:, None] == np.arange(H)[None, :]).astype(np.float32)  # (M, H)
    return jnp.asarray(a_mh, dtype), jnp.asarray(a_mh.T, dtype)        # +(H, M)


# ----------------------------------------------------------------------------
# In-kernel helpers
# ----------------------------------------------------------------------------
def _conv3x3_acc(act_f32, w_ref, b_ref, mask_ref, acc_ref, *, W, dot_dtype):
    """3x3 conv (stride 1, zero pad 1) on a channels-first (C, H*W) slab.

    Nine accumulated K=C MXU dots.  Each tap is a lane roll of the activation
    with the wrapped halo zeroed by a precomputed (9, H*W) mask (masking stays
    in f32 on the VPU; only the dot operands are cast to dot_dtype).
      w_ref: (9, Cout, C) dot_dtype   b_ref: (Cout, 1) f32
      acc_ref: (Cout, H*W) f32 scratch
    Returns the f32 (Cout, H*W) conv result.
    """
    C, M = act_f32.shape
    for dy in range(3):
        for dx in range(3):
            k = dy * 3 + dx
            s = (dy - 1) * W + (dx - 1)          # flat source offset of tap k
            rolled = act_f32 if s == 0 else pltpu.roll(
                act_f32, shift=(-s) % M, axis=1)
            tap = (rolled * mask_ref[k:k + 1, :]).astype(dot_dtype)
            contrib = jnp.dot(w_ref[k], tap,
                              preferred_element_type=jnp.float32)
            if k == 0:
                acc_ref[...] = contrib
            else:
                acc_ref[...] += contrib
    return acc_ref[...] + b_ref[...]


def _store_stats(h, s_ref, ss_ref):
    """Per-channel sum / sum-of-squares over the lane (pixel) axis, f32."""
    s_ref[0] = jnp.sum(h, axis=1, keepdims=True)
    ss_ref[0] = jnp.sum(h * h, axis=1, keepdims=True)


# ----------------------------------------------------------------------------
# Kernels
# ----------------------------------------------------------------------------
def _conv3x3_stats_kernel(x_ref, w_ref, b_ref, mask_ref,
                          h_ref, s_ref, ss_ref, acc_ref, *, W, dot_dtype):
    h = _conv3x3_acc(x_ref[0], w_ref, b_ref, mask_ref, acc_ref,
                     W=W, dot_dtype=dot_dtype)
    h_ref[0] = h.astype(h_ref.dtype)
    _store_stats(h, s_ref, ss_ref)


def _bn_relu_conv3x3_stats_kernel(h1_ref, scale_ref, shift_ref, w_ref, b_ref,
                                  mask_ref, h_ref, s_ref, ss_ref, acc_ref,
                                  *, W, dot_dtype):
    # BN1 affine (precomputed batch-stat scale/shift) + ReLU in f32, fused
    # into the conv2 prologue -- no extra HBM round trip for the activation.
    a = jnp.maximum(h1_ref[0].astype(jnp.float32) * scale_ref[...]
                    + shift_ref[...], 0.0)
    h = _conv3x3_acc(a, w_ref, b_ref, mask_ref, acc_ref,
                     W=W, dot_dtype=dot_dtype)
    h_ref[0] = h.astype(h_ref.dtype)
    _store_stats(h, s_ref, ss_ref)


def _bn_attn_residual_kernel(h2_ref, x_ref, scale_ref, shift_ref, *rest,
                             use_attention, shortcut_conv, dot_dtype, approx):
    rest = list(rest)
    y_ref = rest.pop()                               # output ref is last

    out = h2_ref[0].astype(jnp.float32) * scale_ref[...] + shift_ref[...]
    xb = x_ref[0]                                    # (Cin, M) f32

    if shortcut_conv:
        ws_ref = rest.pop(0)
        bs_ref = rest.pop(0)
        short = jnp.dot(ws_ref[...], xb.astype(dot_dtype),
                        preferred_element_type=jnp.float32) + bs_ref[...]
    else:
        short = xb                                   # nn.Identity (Cin == Cout)

    if use_attention:
        wa_ref = rest.pop(0)
        ba_ref = rest.pop(0)
        amh_ref = rest.pop(0)                        # (M, H) 0/1 segment map
        ahm_ref = rest.pop(0)                        # (H, M) 0/1 segment map
        logits = jnp.dot(wa_ref[...], out.astype(dot_dtype),
                         preferred_element_type=jnp.float32) + ba_ref[...]
        # Softmax over W == per-(channel, row) segments of length W along the
        # lane axis.  The per-channel max is constant within each segment, so
        # it is a valid stabilizer; segment sums via precomputed 0/1 matmuls
        # avoid any minor-dim reshape.
        mx = jnp.max(logits, axis=1, keepdims=True)
        e = jnp.exp(logits - mx)
        seg = jnp.dot(e.astype(dot_dtype), amh_ref[...],
                      preferred_element_type=jnp.float32)        # (Cout, H)
        denom = jnp.dot(seg.astype(dot_dtype), ahm_ref[...],
                        preferred_element_type=jnp.float32)      # (Cout, M)
        out = out * (e * pl.reciprocal(denom, approx=approx))

    y_ref[0] = (out + short).astype(y_ref.dtype)


# ----------------------------------------------------------------------------
# pallas_call wrappers
# ----------------------------------------------------------------------------
def _vmem_limit(need_bytes):
    """Scoped-VMEM limit: actual need + margin, clamped to 3/4 of physical."""
    try:
        cap = int(pltpu.get_tpu_info().vmem_capacity_bytes)
    except Exception:                                # noqa: BLE001
        cap = 64 << 20                               # v7x floor; safe everywhere
    need = int(need_bytes) + (4 << 20)
    return int(min(max(need, 16 << 20), (cap * 3) // 4))


def _cparams(vmem_limit_bytes):
    return pltpu.CompilerParams(
        dimension_semantics=("parallel",),           # megacore-shard the batch
        vmem_limit_bytes=int(vmem_limit_bytes))


def _bpe(d):
    return np.dtype(d).itemsize


def _conv3x3_stats(x, w9, b, masks, *, W, dot_dtype, act_dtype):
    N, Cin, M = x.shape
    Cout = b.shape[0]
    kernel = functools.partial(_conv3x3_stats_kernel, W=W, dot_dtype=dot_dtype)
    block_bytes = (Cin * M * _bpe(x.dtype) + w9.size * _bpe(w9.dtype)
                   + Cout * 4 + 9 * M * 4
                   + Cout * M * _bpe(act_dtype) + 2 * Cout * 4)
    vmem = _vmem_limit(2 * block_bytes + Cout * M * 4)
    return pl.pallas_call(
        kernel,
        grid=(N,),
        in_specs=[
            pl.BlockSpec((1, Cin, M), lambda n: (n, 0, 0)),
            pl.BlockSpec((9, Cout, Cin), lambda n: (0, 0, 0)),
            pl.BlockSpec((Cout, 1), lambda n: (0, 0)),
            pl.BlockSpec((9, M), lambda n: (0, 0)),
        ],
        out_specs=[
            pl.BlockSpec((1, Cout, M), lambda n: (n, 0, 0)),
            pl.BlockSpec((1, Cout, 1), lambda n: (n, 0, 0)),
            pl.BlockSpec((1, Cout, 1), lambda n: (n, 0, 0)),
        ],
        out_shape=[
            jax.ShapeDtypeStruct((N, Cout, M), act_dtype),
            jax.ShapeDtypeStruct((N, Cout, 1), jnp.float32),
            jax.ShapeDtypeStruct((N, Cout, 1), jnp.float32),
        ],
        scratch_shapes=[pltpu.VMEM((Cout, M), jnp.float32)],
        compiler_params=_cparams(vmem),
    )(x, w9, b, masks)


def _bn_relu_conv3x3_stats(h1, scale, shift, w9, b, masks, *, W, dot_dtype,
                           act_dtype):
    N, Cout, M = h1.shape
    kernel = functools.partial(_bn_relu_conv3x3_stats_kernel, W=W,
                               dot_dtype=dot_dtype)
    block_bytes = (Cout * M * _bpe(h1.dtype) + 2 * Cout * 4
                   + w9.size * _bpe(w9.dtype) + Cout * 4 + 9 * M * 4
                   + Cout * M * _bpe(act_dtype) + 2 * Cout * 4)
    vmem = _vmem_limit(2 * block_bytes + Cout * M * 4)
    return pl.pallas_call(
        kernel,
        grid=(N,),
        in_specs=[
            pl.BlockSpec((1, Cout, M), lambda n: (n, 0, 0)),
            pl.BlockSpec((Cout, 1), lambda n: (0, 0)),
            pl.BlockSpec((Cout, 1), lambda n: (0, 0)),
            pl.BlockSpec((9, Cout, Cout), lambda n: (0, 0, 0)),
            pl.BlockSpec((Cout, 1), lambda n: (0, 0)),
            pl.BlockSpec((9, M), lambda n: (0, 0)),
        ],
        out_specs=[
            pl.BlockSpec((1, Cout, M), lambda n: (n, 0, 0)),
            pl.BlockSpec((1, Cout, 1), lambda n: (n, 0, 0)),
            pl.BlockSpec((1, Cout, 1), lambda n: (n, 0, 0)),
        ],
        out_shape=[
            jax.ShapeDtypeStruct((N, Cout, M), act_dtype),
            jax.ShapeDtypeStruct((N, Cout, 1), jnp.float32),
            jax.ShapeDtypeStruct((N, Cout, 1), jnp.float32),
        ],
        scratch_shapes=[pltpu.VMEM((Cout, M), jnp.float32)],
        compiler_params=_cparams(vmem),
    )(h1, scale, shift, w9, b, masks)


def _bn_attn_residual(h2, xf, scale, shift, extras, *, use_attention,
                      shortcut_conv, dot_dtype):
    N, Cout, M = h2.shape
    Cin = xf.shape[1]
    approx = dot_dtype != jnp.float32        # EUP reciprocal on the bf16 path
    kernel = functools.partial(_bn_attn_residual_kernel,
                               use_attention=use_attention,
                               shortcut_conv=shortcut_conv,
                               dot_dtype=dot_dtype, approx=approx)
    in_specs = [
        pl.BlockSpec((1, Cout, M), lambda n: (n, 0, 0)),
        pl.BlockSpec((1, Cin, M), lambda n: (n, 0, 0)),
        pl.BlockSpec((Cout, 1), lambda n: (0, 0)),
        pl.BlockSpec((Cout, 1), lambda n: (0, 0)),
    ]
    for e in extras:
        in_specs.append(pl.BlockSpec(e.shape, lambda n, nd=e.ndim: (0,) * nd))
    block_bytes = (Cout * M * _bpe(h2.dtype) + Cin * M * 4 + 2 * Cout * 4
                   + Cout * M * 4
                   + sum(int(e.size) * _bpe(e.dtype) for e in extras))
    return pl.pallas_call(
        kernel,
        grid=(N,),
        in_specs=in_specs,
        out_specs=pl.BlockSpec((1, Cout, M), lambda n: (n, 0, 0)),
        out_shape=jax.ShapeDtypeStruct((N, Cout, M), jnp.float32),
        compiler_params=_cparams(_vmem_limit(2 * block_bytes)),
    )(h2, xf, scale, shift, *extras)


# ----------------------------------------------------------------------------
# Forward pass (Pallas) and pure-JAX reference
# ----------------------------------------------------------------------------
def _bn_affine(sums, sumsqs, gamma, beta, count):
    """Fold training-mode BN batch stats into per-channel scale/shift (f32).

    Tiny (C,)-sized math on the in-kernel partial sums; kept in plain JAX.
    """
    s = jnp.sum(sums, axis=0)[:, 0]
    ss = jnp.sum(sumsqs, axis=0)[:, 0]
    mean = s / count
    var = jnp.maximum(ss / count - mean * mean, 0.0)   # biased (PyTorch norm)
    scale = gamma * jax.lax.rsqrt(var + EPS)
    shift = beta - mean * scale
    return scale.reshape(-1, 1), shift.reshape(-1, 1)


@functools.partial(jax.jit, static_argnames=("use_attention", "dot_dtype"))
def res_block_forward(x, p, *, use_attention, dot_dtype=jnp.float32):
    N, Cin, H, W = x.shape
    Cout = p["w1"].shape[0]
    M = H * W
    act_dtype = dot_dtype        # bf16 inter-kernel intermediates in prod mode

    xf = x.reshape(N, Cin, M).astype(jnp.float32)     # NCHW, flattened HW
    masks = _make_tap_masks(H, W)

    # OIHW -> (dy, dx, O, I): per-tap (Cout, C) weight slabs for the 9 dots.
    def prep_w3x3(w):
        O, I = w.shape[0], w.shape[1]
        return jnp.transpose(w, (2, 3, 0, 1)).reshape(9, O, I).astype(dot_dtype)

    w1 = prep_w3x3(p["w1"])
    w2 = prep_w3x3(p["w2"])
    b1 = p["b1"].reshape(Cout, 1).astype(jnp.float32)
    b2 = p["b2"].reshape(Cout, 1).astype(jnp.float32)

    h1, s1, ss1 = _conv3x3_stats(xf, w1, b1, masks, W=W,
                                 dot_dtype=dot_dtype, act_dtype=act_dtype)
    sc1, sh1 = _bn_affine(s1, ss1, p["g1"], p["be1"], N * M)

    h2, s2, ss2 = _bn_relu_conv3x3_stats(h1, sc1, sh1, w2, b2, masks, W=W,
                                         dot_dtype=dot_dtype,
                                         act_dtype=act_dtype)
    sc2, sh2 = _bn_affine(s2, ss2, p["g2"], p["be2"], N * M)

    shortcut_conv = Cin != Cout                        # nn.Identity otherwise
    extras = []
    if shortcut_conv:
        extras += [p["ws"].reshape(Cout, Cin).astype(dot_dtype),
                   p["bs"].reshape(Cout, 1).astype(jnp.float32)]
    if use_attention:
        a_mh, a_hm = _make_segment_mats(H, W, dot_dtype)
        extras += [p["wa"].reshape(Cout, Cout).astype(dot_dtype),
                   p["ba"].reshape(Cout, 1).astype(jnp.float32),
                   a_mh, a_hm]

    y = _bn_attn_residual(h2, xf, sc2, sh2, extras,
                          use_attention=use_attention,
                          shortcut_conv=shortcut_conv, dot_dtype=dot_dtype)
    return y.reshape(N, Cout, H, W)


def ref_forward(x, p, use_attention):
    """Pure-JAX NCHW reference mirroring the PyTorch module (f32, HIGHEST)."""
    cin = x.shape[1]
    cout = p["w1"].shape[0]

    def conv(x, w, b, pad):
        y = jax.lax.conv_general_dilated(
            x, w, (1, 1), [(pad, pad), (pad, pad)],
            dimension_numbers=("NCHW", "OIHW", "NCHW"),
            precision=jax.lax.Precision.HIGHEST)
        return y + b.reshape(1, -1, 1, 1)

    def bn(x, g, be):
        mean = jnp.mean(x, axis=(0, 2, 3), keepdims=True)
        var = jnp.mean((x - mean) ** 2, axis=(0, 2, 3), keepdims=True)
        return (x - mean) / jnp.sqrt(var + EPS) * g.reshape(1, -1, 1, 1) \
            + be.reshape(1, -1, 1, 1)

    h = jnp.maximum(bn(conv(x, p["w1"], p["b1"], 1), p["g1"], p["be1"]), 0.0)
    out = bn(conv(h, p["w2"], p["b2"], 1), p["g2"], p["be2"])
    sc = conv(x, p["ws"], p["bs"], 0) if cin != cout else x   # Identity match
    if use_attention:
        logits = conv(out, p["wa"], p["ba"], 0)
        out = out * jax.nn.softmax(logits, axis=-1)
    return out + sc


# ----------------------------------------------------------------------------
# Deterministic parameter init (PyTorch shapes: OIHW conv weights)
# ----------------------------------------------------------------------------
def init_params(key, cin, cout):
    def conv_init(k, o, i, kh, kw):
        bound = 1.0 / np.sqrt(i * kh * kw)
        k1, k2 = jax.random.split(k)
        w = jax.random.uniform(k1, (o, i, kh, kw), jnp.float32, -bound, bound)
        b = jax.random.uniform(k2, (o,), jnp.float32, -bound, bound)
        return w, b

    ks = jax.random.split(key, 4)
    w1, b1 = conv_init(ks[0], cout, cin, 3, 3)
    w2, b2 = conv_init(ks[1], cout, cout, 3, 3)
    ws, bs = conv_init(ks[2], cout, cin, 1, 1)
    wa, ba = conv_init(ks[3], cout, cout, 1, 1)
    ones = jnp.ones((cout,), jnp.float32)
    zeros = jnp.zeros((cout,), jnp.float32)
    return dict(w1=w1, b1=b1, g1=ones, be1=zeros,
                w2=w2, b2=b2, g2=ones, be2=zeros,
                ws=ws, bs=bs, wa=wa, ba=ba)


if __name__ == "__main__":
    key = jax.random.PRNGKey(0)
    kx, kp = jax.random.split(key)
    N, H, W = 2, 16, 16

    configs = [
        (4, 8, False),     # conv shortcut, no attention
        (4, 8, True),      # conv shortcut + attention
        (8, 8, True),      # identity shortcut (Cin == Cout) + attention
        (16, 128, True),   # wider conv2 (K=128 dots) + conv shortcut + attn
    ]

    # f32 MXU path: tight algorithmic self-check against the f32 reference.
    for cin, cout, use_attention in configs:
        x = jax.random.normal(kx, (N, cin, H, W), jnp.float32)
        params = init_params(kp, cin, cout)
        y_ref = jax.block_until_ready(ref_forward(x, params, use_attention))
        y = jax.block_until_ready(
            res_block_forward(x, params, use_attention=use_attention,
                              dot_dtype=jnp.float32))
        assert y.shape == (N, cout, H, W)
        np.testing.assert_allclose(np.asarray(y), np.asarray(y_ref),
                                   atol=2e-3, rtol=2e-3)

    # bf16 MXU + bf16 inter-kernel intermediates (production path): looser,
    # norm-based check (per-element bf16 rounding compounds through 2 convs
    # and 2 BatchNorms, but structural bugs would show as O(1) errors).
    for cin, cout, use_attention in [(4, 8, True), (16, 128, True)]:
        x = jax.random.normal(kx, (N, cin, H, W), jnp.float32)
        params = init_params(kp, cin, cout)
        y_ref = np.asarray(jax.block_until_ready(
            ref_forward(x, params, use_attention)))
        y = np.asarray(jax.block_until_ready(
            res_block_forward(x, params, use_attention=use_attention,
                              dot_dtype=jnp.bfloat16)))
        assert y.shape == (N, cout, H, W)
        rel = np.linalg.norm(y - y_ref) / np.linalg.norm(y_ref)
        assert rel < 5e-2, f"bf16 path relative error too large: {rel}"

    print("KERNEL_OK")
</pallas_src>

<mosaic_0001>
module attributes {stable_mosaic.version = 11 : i64} {
  func.func @_bn_attn_residual_kernel(%arg0: i32, %arg1: memref<1x8x256xf32, #tpu.memory_space<vmem>>, %arg2: memref<1x4x256xf32, #tpu.memory_space<vmem>>, %arg3: memref<8x1xf32, #tpu.memory_space<vmem>>, %arg4: memref<8x1xf32, #tpu.memory_space<vmem>>, %arg5: memref<8x4xf32, #tpu.memory_space<vmem>>, %arg6: memref<8x1xf32, #tpu.memory_space<vmem>>, %arg7: memref<1x8x256xf32, #tpu.memory_space<vmem>>) attributes {dimension_semantics = [#tpu.dimension_semantics<parallel>], iteration_bounds = array<i64: 2>, scalar_prefetch = 0 : i64, scratch_operands = 0 : i64, tpu.core_type = #tpu.core_type<tc>, window_params = [{transform_indices = @transform_0, window_bounds = array<i64: 1, 8, 256>}, {transform_indices = @transform_1, window_bounds = array<i64: 1, 4, 256>}, {pipeline_mode = #tpu.pipeline_mode<synchronous>, transform_indices = @transform_2, window_bounds = array<i64: 8, 1>}, {pipeline_mode = #tpu.pipeline_mode<synchronous>, transform_indices = @transform_3, window_bounds = array<i64: 8, 1>}, {pipeline_mode = #tpu.pipeline_mode<synchronous>, transform_indices = @transform_4, window_bounds = array<i64: 8, 4>}, {pipeline_mode = #tpu.pipeline_mode<synchronous>, transform_indices = @transform_5, window_bounds = array<i64: 8, 1>}, {transform_indices = @transform_6, window_bounds = array<i64: 1, 8, 256>}]} {
    %c0 = arith.constant 0 : index
    %c0_0 = arith.constant 0 : index
    %c0_1 = arith.constant 0 : index
    %0 = vector.load %arg1[%c0, %c0_0, %c0_1] : memref<1x8x256xf32, #tpu.memory_space<vmem>>, vector<1x8x256xf32>
    %1 = vector.shape_cast %0 : vector<1x8x256xf32> to vector<8x256xf32>
    %c0_2 = arith.constant 0 : index
    %c0_3 = arith.constant 0 : index
    %2 = vector.load %arg3[%c0_2, %c0_3] : memref<8x1xf32, #tpu.memory_space<vmem>>, vector<8x1xf32>
    %3 = vector.broadcast %2 : vector<8x1xf32> to vector<8x256xf32>
    %4 = arith.mulf %1, %3 : vector<8x256xf32>
    %c0_4 = arith.constant 0 : index
    %c0_5 = arith.constant 0 : index
    %5 = vector.load %arg4[%c0_4, %c0_5] : memref<8x1xf32, #tpu.memory_space<vmem>>, vector<8x1xf32>
    %6 = vector.broadcast %5 : vector<8x1xf32> to vector<8x256xf32>
    %7 = arith.addf %4, %6 : vector<8x256xf32>
    %c0_6 = arith.constant 0 : index
    %c0_7 = arith.constant 0 : index
    %c0_8 = arith.constant 0 : index
    %8 = vector.load %arg2[%c0_6, %c0_7, %c0_8] : memref<1x4x256xf32, #tpu.memory_space<vmem>>, vector<1x4x256xf32>
    %9 = vector.shape_cast %8 : vector<1x4x256xf32> to vector<4x256xf32>
    %c0_9 = arith.constant 0 : index
    %c0_10 = arith.constant 0 : index
    %10 = vector.load %arg5[%c0_9, %c0_10] : memref<8x4xf32, #tpu.memory_space<vmem>>, vector<8x4xf32>
    %cst = arith.constant dense<0.000000e+00> : vector<8x256xf32>
    %11 = tpu.matmul %10, %9, %cst {dimension_numbers = #tpu.dot_dimension_numbers<[1], [0], [0], [1], [0, 0, 1, 1], [], []>} : vector<8x4xf32>, vector<4x256xf32>, vector<8x256xf32> -> vector<8x256xf32>
    %c0_11 = arith.constant 0 : index
    %c0_12 = arith.constant 0 : index
    %12 = vector.load %arg6[%c0_11, %c0_12] : memref<8x1xf32, #tpu.memory_space<vmem>>, vector<8x1xf32>
    %13 = vector.broadcast %12 : vector<8x1xf32> to vector<8x256xf32>
    %14 = arith.addf %11, %13 : vector<8x256xf32>
    %15 = arith.addf %7, %14 : vector<8x256xf32>
    %c0_13 = arith.constant 0 : index
    %c0_14 = arith.constant 0 : index
    %c0_15 = arith.constant 0 : index
    %16 = vector.load %arg7[%c0_13, %c0_14, %c0_15] : memref<1x8x256xf32, #tpu.memory_space<vmem>>, vector<1x8x256xf32>
    %17 = vector.shape_cast %16 : vector<1x8x256xf32> to vector<8x256xf32>
    %18 = vector.shape_cast %15 : vector<8x256xf32> to vector<1x8x256xf32>
    tpu.vector_store %arg7[%c0_13, %c0_14, %c0_15], %18 {strides = array<i32>} : memref<1x8x256xf32, #tpu.memory_space<vmem>>, vector<1x8x256xf32>,
    return
  }
  func.func @transform_0(%arg0: i32) -> (i32, i32, i32) {
    %c0_i32 = arith.constant 0 : i32
    %c0_i32_0 = arith.constant 0 : i32
    %c0_i32_1 = arith.constant 0 : i32
    return %arg0, %c0_i32, %c0_i32_0 : i32, i32, i32
  }
  func.func @transform_1(%arg0: i32) -> (i32, i32, i32) {
    %c0_i32 = arith.constant 0 : i32
    %c0_i32_0 = arith.constant 0 : i32
    %c0_i32_1 = arith.constant 0 : i32
    return %arg0, %c0_i32, %c0_i32_0 : i32, i32, i32
  }
  func.func @transform_2(%arg0: i32) -> (i32, i32) {
    %c0_i32 = arith.constant 0 : i32
    %c0_i32_0 = arith.constant 0 : i32
    %c0_i32_1 = arith.constant 0 : i32
    return %c0_i32, %c0_i32_0 : i32, i32
  }
  func.func @transform_3(%arg0: i32) -> (i32, i32) {
    %c0_i32 = arith.constant 0 : i32
    %c0_i32_0 = arith.constant 0 : i32
    %c0_i32_1 = arith.constant 0 : i32
    return %c0_i32, %c0_i32_0 : i32, i32
  }
  func.func @transform_4(%arg0: i32) -> (i32, i32) {
    %c0_i32 = arith.constant 0 : i32
    %c0_i32_0 = arith.constant 0 : i32
    %c0_i32_1 = arith.constant 0 : i32
    return %c0_i32, %c0_i32_0 : i32, i32
  }
  func.func @transform_5(%arg0: i32) -> (i32, i32) {
    %c0_i32 = arith.constant 0 : i32
    %c0_i32_0 = arith.constant 0 : i32
    %c0_i32_1 = arith.constant 0 : i32
    return %c0_i32, %c0_i32_0 : i32, i32
  }
  func.func @transform_6(%arg0: i32) -> (i32, i32, i32) {
    %c0_i32 = arith.constant 0 : i32
    %c0_i32_0 = arith.constant 0 : i32
    %c0_i32_1 = arith.constant 0 : i32
    return %arg0, %c0_i32, %c0_i32_0 : i32, i32, i32
  }
}

module attributes {stable_mosaic.version = 11 : i64} {
  func.func @_bn_relu_conv3x3_stats_kernel(%arg0: i32, %arg1: memref<1x8x256xf32, #tpu.memory_space<vmem>>, %arg2: memref<8x1xf32, #tpu.memory_space<vmem>>, %arg3: memref<8x1xf32, #tpu.memory_space<vmem>>, %arg4: memref<9x8x8xf32, #tpu.memory_space<vmem>>, %arg5: memref<8x1xf32, #tpu.memory_space<vmem>>, %arg6: memref<9x256xf32, #tpu.memory_space<vmem>>, %arg7: memref<1x8x256xf32, #tpu.memory_space<vmem>>, %arg8: memref<1x8x1xf32, #tpu.memory_space<vmem>>, %arg9: memref<1x8x1xf32, #tpu.memory_space<vmem>>, %arg10: memref<8x256xf32, #tpu.memory_space<vmem>>) attributes {dimension_semantics = [#tpu.dimension_semantics<parallel>], iteration_bounds = array<i64: 2>, scalar_prefetch = 0 : i64, scratch_operands = 1 : i64, tpu.core_type = #tpu.core_type<tc>, window_params = [{transform_indices = @transform_0, window_bounds = array<i64: 1, 8, 256>}, {pipeline_mode = #tpu.pipeline_mode<synchronous>, transform_indices = @transform_1, window_bounds = array<i64: 8, 1>}, {pipeline_mode = #tpu.pipeline_mode<synchronous>, transform_indices = @transform_2, window_bounds = array<i64: 8, 1>}, {pipeline_mode = #tpu.pipeline_mode<synchronous>, transform_indices = @transform_3, window_bounds = array<i64: 9, 8, 8>}, {pipeline_mode = #tpu.pipeline_mode<synchronous>, transform_indices = @transform_4, window_bounds = array<i64: 8, 1>}, {pipeline_mode = #tpu.pipeline_mode<synchronous>, transform_indices = @transform_5, window_bounds = array<i64: 9, 256>}, {transform_indices = @transform_6, window_bounds = array<i64: 1, 8, 256>}, {transform_indices = @transform_7, window_bounds = array<i64: 1, 8, 1>}, {transform_indices = @transform_8, window_bounds = array<i64: 1, 8, 1>}]} {
    %c0 = arith.constant 0 : index
    %c0_0 = arith.constant 0 : index
    %c0_1 = arith.constant 0 : index
    %0 = vector.load %arg1[%c0, %c0_0, %c0_1] : memref<1x8x256xf32, #tpu.memory_space<vmem>>, vector<1x8x256xf32>
    %1 = vector.shape_cast %0 : vector<1x8x256xf32> to vector<8x256xf32>
    %c0_2 = arith.constant 0 : index
    %c0_3 = arith.constant 0 : index
    %2 = vector.load %arg2[%c0_2, %c0_3] : memref<8x1xf32, #tpu.memory_space<vmem>>, vector<8x1xf32>
    %3 = vector.broadcast %2 : vector<8x1xf32> to vector<8x256xf32>
    %4 = arith.mulf %1, %3 : vector<8x256xf32>
    %c0_4 = arith.constant 0 : index
    %c0_5 = arith.constant 0 : index
    %5 = vector.load %arg3[%c0_4, %c0_5] : memref<8x1xf32, #tpu.memory_space<vmem>>, vector<8x1xf32>
    %6 = vector.broadcast %5 : vector<8x1xf32> to vector<8x256xf32>
    %7 = arith.addf %4, %6 : vector<8x256xf32>
    %cst = arith.constant 0.000000e+00 : f32
    %8 = vector.broadcast %cst : f32 to vector<8x256xf32>
    %9 = arith.maximumf %7, %8 : vector<8x256xf32>
    %c17_i32 = arith.constant 17 : i32
    %10 = tpu.dynamic_rotate %9 by %c17_i32 dim 1 : vector<8x256xf32>, i32 -> vector<8x256xf32>
    %c0_6 = arith.constant 0 : index
    %c0_7 = arith.constant 0 : index
    %11 = vector.load %arg6[%c0_6, %c0_7] : memref<9x256xf32, #tpu.memory_space<vmem>>, vector<1x256xf32>
    %12 = vector.broadcast %11 : vector<1x256xf32> to vector<8x256xf32>
    %13 = arith.mulf %10, %12 : vector<8x256xf32>
    %c0_8 = arith.constant 0 : index
    %c0_9 = arith.constant 0 : index
    %c0_10 = arith.constant 0 : index
    %14 = vector.load %arg4[%c0_8, %c0_9, %c0_10] : memref<9x8x8xf32, #tpu.memory_space<vmem>>, vector<1x8x8xf32>
    %15 = vector.shape_cast %14 : vector<1x8x8xf32> to vector<8x8xf32>
    %cst_11 = arith.constant dense<0.000000e+00> : vector<8x256xf32>
    %16 = tpu.matmul %15, %13, %cst_11 {dimension_numbers = #tpu.dot_dimension_numbers<[1], [0], [0], [1], [0, 0, 1, 1], [], []>} : vector<8x8xf32>, vector<8x256xf32>, vector<8x256xf32> -> vector<8x256xf32>
    %c0_12 = arith.constant 0 : index
    %c0_13 = arith.constant 0 : index
    %17 = vector.load %arg10[%c0_12, %c0_13] : memref<8x256xf32, #tpu.memory_space<vmem>>, vector<8x256xf32>
    tpu.vector_store %arg10[%c0_12, %c0_13], %16 {strides = array<i32>} : memref<8x256xf32, #tpu.memory_space<vmem>>, vector<8x256xf32>,
    %c16_i32 = arith.constant 16 : i32
    %18 = tpu.dynamic_rotate %9 by %c16_i32 dim 1 : vector<8x256xf32>, i32 -> vector<8x256xf32>
    %c1 = arith.constant 1 : index
    %c0_14 = arith.constant 0 : index
    %19 = vector.load %arg6[%c1, %c0_14] : memref<9x256xf32, #tpu.memory_space<vmem>>, vector<1x256xf32>
    %20 = vector.broadcast %19 : vector<1x256xf32> to vector<8x256xf32>
    %21 = arith.mulf %18, %20 : vector<8x256xf32>
    %c1_15 = arith.constant 1 : index
    %c0_16 = arith.constant 0 : index
    %c0_17 = arith.constant 0 : index
    %22 = vector.load %arg4[%c1_15, %c0_16, %c0_17] : memref<9x8x8xf32, #tpu.memory_space<vmem>>, vector<1x8x8xf32>
    %23 = vector.shape_cast %22 : vector<1x8x8xf32> to vector<8x8xf32>
    %cst_18 = arith.constant dense<0.000000e+00> : vector<8x256xf32>
    %24 = tpu.matmul %23, %21, %cst_18 {dimension_numbers = #tpu.dot_dimension_numbers<[1], [0], [0], [1], [0, 0, 1, 1], [], []>} : vector<8x8xf32>, vector<8x256xf32>, vector<8x256xf32> -> vector<8x256xf32>
    %c0_19 = arith.constant 0 : index
    %c0_20 = arith.constant 0 : index
    %25 = vector.load %arg10[%c0_19, %c0_20] : memref<8x256xf32, #tpu.memory_space<vmem>>, vector<8x256xf32>
    %26 = arith.addf %25, %24 : vector<8x256xf32>
    %c0_21 = arith.constant 0 : index
    %c0_22 = arith.constant 0 : index
    %27 = vector.load %arg10[%c0_21, %c0_22] : memref<8x256xf32, #tpu.memory_space<vmem>>, vector<8x256xf32>
    tpu.vector_store %arg10[%c0_21, %c0_22], %26 {strides = array<i32>} : memref<8x256xf32, #tpu.memory_space<vmem>>, vector<8x256xf32>,
    %c15_i32 = arith.constant 15 : i32
    %28 = tpu.dynamic_rotate %9 by %c15_i32 dim 1 : vector<8x256xf32>, i32 -> vector<8x256xf32>
    %c2 = arith.constant 2 : index
    %c0_23 = arith.constant 0 : index
    %29 = vector.load %arg6[%c2, %c0_23] : memref<9x256xf32, #tpu.memory_space<vmem>>, vector<1x256xf32>
    %30 = vector.broadcast %29 : vector<1x256xf32> to vector<8x256xf32>
    %31 = arith.mulf %28, %30 : vector<8x256xf32>
    %c2_24 = arith.constant 2 : index
    %c0_25 = arith.constant 0 : index
    %c0_26 = arith.constant 0 : index
    %32 = vector.load %arg4[%c2_24, %c0_25, %c0_26] : memref<9x8x8xf32, #tpu.memory_space<vmem>>, vector<1x8x8xf32>
    %33 = vector.shape_cast %32 : vector<1x8x8xf32> to vector<8x8xf32>
    %cst_27 = arith.constant dense<0.000000e+00> : vector<8x256xf32>
    %34 = tpu.matmul %33, %31, %cst_27 {dimension_numbers = #tpu.dot_dimension_numbers<[1], [0], [0], [1], [0, 0, 1, 1], [], []>} : vector<8x8xf32>, vector<8x256xf32>, vector<8x256xf32> -> vector<8x256xf32>
    %c0_28 = arith.constant 0 : index
    %c0_29 = arith.constant 0 : index
    %35 = vector.load %arg10[%c0_28, %c0_29] : memref<8x256xf32, #tpu.memory_space<vmem>>, vector<8x256xf32>
    %36 = arith.addf %35, %34 : vector<8x256xf32>
    %c0_30 = arith.constant 0 : index
    %c0_31 = arith.constant 0 : index
    %37 = vector.load %arg10[%c0_30, %c0_31] : memref<8x256xf32, #tpu.memory_space<vmem>>, vector<8x256xf32>
    tpu.vector_store %arg10[%c0_30, %c0_31], %36 {strides = array<i32>} : memref<8x256xf32, #tpu.memory_space<vmem>>, vector<8x256xf32>,
    %c1_i32 = arith.constant 1 : i32
    %38 = tpu.dynamic_rotate %9 by %c1_i32 dim 1 : vector<8x256xf32>, i32 -> vector<8x256xf32>
    %c3 = arith.constant 3 : index
    %c0_32 = arith.constant 0 : index
    %39 = vector.load %arg6[%c3, %c0_32] : memref<9x256xf32, #tpu.memory_space<vmem>>, vector<1x256xf32>
    %40 = vector.broadcast %39 : vector<1x256xf32> to vector<8x256xf32>
    %41 = arith.mulf %38, %40 : vector<8x256xf32>
    %c3_33 = arith.constant 3 : index
    %c0_34 = arith.constant 0 : index
    %c0_35 = arith.constant 0 : index
    %42 = vector.load %arg4[%c3_33, %c0_34, %c0_35] : memref<9x8x8xf32, #tpu.memory_space<vmem>>, vector<1x8x8xf32>
    %43 = vector.shape_cast %42 : vector<1x8x8xf32> to vector<8x8xf32>
    %cst_36 = arith.constant dense<0.000000e+00> : vector<8x256xf32>
    %44 = tpu.matmul %43, %41, %cst_36 {dimension_numbers = #tpu.dot_dimension_numbers<[1], [0], [0], [1], [0, 0, 1, 1], [], []>} : vector<8x8xf32>, vector<8x256xf32>, vector<8x256xf32> -> vector<8x256xf32>
    %c0_37 = arith.constant 0 : index
    %c0_38 = arith.constant 0 : index
    %45 = vector.load %arg10[%c0_37, %c0_38] : memref<8x256xf32, #tpu.memory_space<vmem>>, vector<8x256xf32>
    %46 = arith.addf %45, %44 : vector<8x256xf32>
    %c0_39 = arith.constant 0 : index
    %c0_40 = arith.constant 0 : index
    %47 = vector.load %arg10[%c0_39, %c0_40] : memref<8x256xf32, #tpu.memory_space<vmem>>, vector<8x256xf32>
    tpu.vector_store %arg10[%c0_39, %c0_40], %46 {strides = array<i32>} : memref<8x256xf32, #tpu.memory_space<vmem>>, vector<8x256xf32>,
    %c4 = arith.constant 4 : index
    %c0_41 = arith.constant 0 : index
    %48 = vector.load %arg6[%c4, %c0_41] : memref<9x256xf32, #tpu.memory_space<vmem>>, vector<1x256xf32>
    %49 = vector.broadcast %48 : vector<1x256xf32> to vector<8x256xf32>
    %50 = arith.mulf %9, %49 : vector<8x256xf32>
    %c4_42 = arith.constant 4 : index
    %c0_43 = arith.constant 0 : index
    %c0_44 = arith.constant 0 : index
    %51 = vector.load %arg4[%c4_42, %c0_43, %c0_44] : memref<9x8x8xf32, #tpu.memory_space<vmem>>, vector<1x8x8xf32>
    %52 = vector.shape_cast %51 : vector<1x8x8xf32> to vector<8x8xf32>
    %cst_45 = arith.constant dense<0.000000e+00> : vector<8x256xf32>
    %53 = tpu.matmul %52, %50, %cst_45 {dimension_numbers = #tpu.dot_dimension_numbers<[1], [0], [0], [1], [0, 0, 1, 1], [], []>} : vector<8x8xf32>, vector<8x256xf32>, vector<8x256xf32> -> vector<8x256xf32>
    %c0_46 = arith.constant 0 : index
    %c0_47 = arith.constant 0 : index
    %54 = vector.load %arg10[%c0_46, %c0_47] : memref<8x256xf32, #tpu.memory_space<vmem>>, vector<8x256xf32>
    %55 = arith.addf %54, %53 : vector<8x256xf32>
    %c0_48 = arith.constant 0 : index
    %c0_49 = arith.constant 0 : index
    %56 = vector.load %arg10[%c0_48, %c0_49] : memref<8x256xf32, #tpu.memory_space<vmem>>, vector<8x256xf32>
    tpu.vector_store %arg10[%c0_48, %c0_49], %55 {strides = array<i32>} : memref<8x256xf32, #tpu.memory_space<vmem>>, vector<8x256xf32>,
    %c255_i32 = arith.constant 255 : i32
    %57 = tpu.dynamic_rotate %9 by %c255_i32 dim 1 : vector<8x256xf32>, i32 -> vector<8x256xf32>
    %c5 = arith.constant 5 : index
    %c0_50 = arith.constant 0 : index
    %58 = vector.load %arg6[%c5, %c0_50] : memref<9x256xf32, #tpu.memory_space<vmem>>, vector<1x256xf32>
    %59 = vector.broadcast %58 : vector<1x256xf32> to vector<8x256xf32>
    %60 = arith.mulf %57, %59 : vector<8x256xf32>
    %c5_51 = arith.constant 5 : index
    %c0_52 = arith.constant 0 : index
    %c0_53 = arith.constant 0 : index
    %61 = vector.load %arg4[%c5_51, %c0_52, %c0_53] : memref<9x8x8xf32, #tpu.memory_space<vmem>>, vector<1x8x8xf32>
    %62 = vector.shape_cast %61 : vector<1x8x8xf32> to vector<8x8xf32>
    %cst_54 = arith.constant dense<0.000000e+00> : vector<8x256xf32>
    %63 = tpu.matmul %62, %60, %cst_54 {dimension_numbers = #tpu.dot_dimension_numbers<[1], [0], [0], [1], [0, 0, 1, 1], [], []>} : vector<8x8xf32>, vector<8x256xf32>, vector<8x256xf32> -> vector<8x256xf32>
    %c0_55 = arith.constant 0 : index
    %c0_56 = arith.constant 0 : index
    %64 = vector.load %arg10[%c0_55, %c0_56] : memref<8x256xf32, #tpu.memory_space<vmem>>, vector<8x256xf32>
    %65 = arith.addf %64, %63 : vector<8x256xf32>
    %c0_57 = arith.constant 0 : index
    %c0_58 = arith.constant 0 : index
    %66 = vector.load %arg10[%c0_57, %c0_58] : memref<8x256xf32, #tpu.memory_space<vmem>>, vector<8x256xf32>
    tpu.vector_store %arg10[%c0_57, %c0_58], %65 {strides = array<i32>} : memref<8x256xf32, #tpu.memory_space<vmem>>, vector<8x256xf32>,
    %c241_i32 = arith.constant 241 : i32
    %67 = tpu.dynamic_rotate %9 by %c241_i32 dim 1 : vector<8x256xf32>, i32 -> vector<8x256xf32>
    %c6 = arith.constant 6 : index
    %c0_59 = arith.constant 0 : index
    %68 = vector.load %arg6[%c6, %c0_59] : memref<9x256xf32, #tpu.memory_space<vmem>>, vector<1x256xf32>
    %69 = vector.broadcast %68 : vector<1x256xf32> to vector<8x256xf32>
    %70 = arith.mulf %67, %69 : vector<8x256xf32>
    %c6_60 = arith.constant 6 : index
    %c0_61 = arith.constant 0 : index
    %c0_62 = arith.constant 0 : index
    %71 = vector.load %arg4[%c6_60, %c0_61, %c0_62] : memref<9x8x8xf32, #tpu.memory_space<vmem>>, vector<1x8x8xf32>
    %72 = vector.shape_cast %71 : vector<1x8x8xf32> to vector<8x8xf32>
    %cst_63 = arith.constant dense<0.000000e+00> : vector<8x256xf32>
    %73 = tpu.matmul %72, %70, %cst_63 {dimension_numbers = #tpu.dot_dimension_numbers<[1], [0], [0], [1], [0, 0, 1, 1], [], []>} : vector<8x8xf32>, vector<8x256xf32>, vector<8x256xf32> -> vector<8x256xf32>
    %c0_64 = arith.constant 0 : index
    %c0_65 = arith.constant 0 : index
    %74 = vector.load %arg10[%c0_64, %c0_65] : memref<8x256xf32, #tpu.memory_space<vmem>>, vector<8x256xf32>
    %75 = arith.addf %74, %73 : vector<8x256xf32>
    %c0_66 = arith.constant 0 : index
    %c0_67 = arith.constant 0 : index
    %76 = vector.load %arg10[%c0_66, %c0_67] : memref<8x256xf32, #tpu.memory_space<vmem>>, vector<8x256xf32>
    tpu.vector_store %arg10[%c0_66, %c0_67], %75 {strides = array<i32>} : memref<8x256xf32, #tpu.memory_space<vmem>>, vector<8x256xf32>,
    %c240_i32 = arith.constant 240 : i32
    %77 = tpu.dynamic_rotate %9 by %c240_i32 dim 1 : vector<8x256xf32>, i32 -> vector<8x256xf32>
    %c7 = arith.constant 7 : index
    %c0_68 = arith.constant 0 : index
    %78 = vector.load %arg6[%c7, %c0_68] : memref<9x256xf32, #tpu.memory_space<vmem>>, vector<1x256xf32>
    %79 = vector.broadcast %78 : vector<1x256xf32> to vector<8x256xf32>
    %80 = arith.mulf %77, %79 : vector<8x256xf32>
    %c7_69 = arith.constant 7 : index
    %c0_70 = arith.constant 0 : index
    %c0_71 = arith.constant 0 : index
    %81 = vector.load %arg4[%c7_69, %c0_70, %c0_71] : memref<9x8x8xf32, #tpu.memory_space<vmem>>, vector<1x8x8xf32>
    %82 = vector.shape_cast %81 : vector<1x8x8xf32> to vector<8x8xf32>
    %cst_72 = arith.constant dense<0.000000e+00> : vector<8x256xf32>
    %83 = tpu.matmul %82, %80, %cst_72 {dimension_numbers = #tpu.dot_dimension_numbers<[1], [0], [0], [1], [0, 0, 1, 1], [], []>} : vector<8x8xf32>, vector<8x256xf32>, vector<8x256xf32> -> vector<8x256xf32>
    %c0_73 = arith.constant 0 : index
    %c0_74 = arith.constant 0 : index
    %84 = vector.load %arg10[%c0_73, %c0_74] : memref<8x256xf32, #tpu.memory_space<vmem>>, vector<8x256xf32>
    %85 = arith.addf %84, %83 : vector<8x256xf32>
    %c0_75 = arith.constant 0 : index
    %c0_76 = arith.constant 0 : index
    %86 = vector.load %arg10[%c0_75, %c0_76] : memref<8x256xf32, #tpu.memory_space<vmem>>, vector<8x256xf32>
    tpu.vector_store %arg10[%c0_75, %c0_76], %85 {strides = array<i32>} : memref<8x256xf32, #tpu.memory_space<vmem>>, vector<8x256xf32>,
    %c239_i32 = arith.constant 239 : i32
    %87 = tpu.dynamic_rotate %9 by %c239_i32 dim 1 : vector<8x256xf32>, i32 -> vector<8x256xf32>
    %c8 = arith.constant 8 : index
    %c0_77 = arith.constant 0 : index
    %88 = vector.load %arg6[%c8, %c0_77] : memref<9x256xf32, #tpu.memory_space<vmem>>, vector<1x256xf32>
    %89 = vector.broadcast %88 : vector<1x256xf32> to vector<8x256xf32>
    %90 = arith.mulf %87, %89 : vector<8x256xf32>
    %c8_78 = arith.constant 8 : index
    %c0_79 = arith.constant 0 : index
    %c0_80 = arith.constant 0 : index
    %91 = vector.load %arg4[%c8_78, %c0_79, %c0_80] : memref<9x8x8xf32, #tpu.memory_space<vmem>>, vector<1x8x8xf32>
    %92 = vector.shape_cast %91 : vector<1x8x8xf32> to vector<8x8xf32>
    %cst_81 = arith.constant dense<0.000000e+00> : vector<8x256xf32>
    %93 = tpu.matmul %92, %90, %cst_81 {dimension_numbers = #tpu.dot_dimension_numbers<[1], [0], [0], [1], [0, 0, 1, 1], [], []>} : vector<8x8xf32>, vector<8x256xf32>, vector<8x256xf32> -> vector<8x256xf32>
    %c0_82 = arith.constant 0 : index
    %c0_83 = arith.constant 0 : index
    %94 = vector.load %arg10[%c0_82, %c0_83] : memref<8x256xf32, #tpu.memory_space<vmem>>, vector<8x256xf32>
    %95 = arith.addf %94, %93 : vector<8x256xf32>
    %c0_84 = arith.constant 0 : index
    %c0_85 = arith.constant 0 : index
    %96 = vector.load %arg10[%c0_84, %c0_85] : memref<8x256xf32, #tpu.memory_space<vmem>>, vector<8x256xf32>
    tpu.vector_store %arg10[%c0_84, %c0_85], %95 {strides = array<i32>} : memref<8x256xf32, #tpu.memory_space<vmem>>, vector<8x256xf32>,
    %c0_86 = arith.constant 0 : index
    %c0_87 = arith.constant 0 : index
    %97 = vector.load %arg10[%c0_86, %c0_87] : memref<8x256xf32, #tpu.memory_space<vmem>>, vector<8x256xf32>
    %c0_88 = arith.constant 0 : index
    %c0_89 = arith.constant 0 : index
    %98 = vector.load %arg5[%c0_88, %c0_89] : memref<8x1xf32, #tpu.memory_space<vmem>>, vector<8x1xf32>
    %99 = vector.broadcast %98 : vector<8x1xf32> to vector<8x256xf32>
    %100 = arith.addf %97, %99 : vector<8x256xf32>
    %c0_90 = arith.constant 0 : index
    %c0_91 = arith.constant 0 : index
    %c0_92 = arith.constant 0 : index
    %101 = vector.load %arg7[%c0_90, %c0_91, %c0_92] : memref<1x8x256xf32, #tpu.memory_space<vmem>>, vector<1x8x256xf32>
    %102 = vector.shape_cast %101 : vector<1x8x256xf32> to vector<8x256xf32>
    %103 = vector.shape_cast %100 : vector<8x256xf32> to vector<1x8x256xf32>
    tpu.vector_store %arg7[%c0_90, %c0_91, %c0_92], %103 {strides = array<i32>} : memref<1x8x256xf32, #tpu.memory_space<vmem>>, vector<1x8x256xf32>,
    %cst_93 = arith.constant dense<0.000000e+00> : vector<8xf32>
    %104 = vector.multi_reduction <add>, %100, %cst_93 [1] : vector<8x256xf32> to vector<8xf32>
    %105 = vector.shape_cast %104 : vector<8xf32> to vector<8x1xf32>
    %c0_94 = arith.constant 0 : index
    %c0_95 = arith.constant 0 : index
    %c0_96 = arith.constant 0 : index
    %106 = vector.load %arg8[%c0_94, %c0_95, %c0_96] : memref<1x8x1xf32, #tpu.memory_space<vmem>>, vector<1x8x1xf32>
    %107 = vector.shape_cast %106 : vector<1x8x1xf32> to vector<8x1xf32>
    %108 = vector.shape_cast %105 : vector<8x1xf32> to vector<1x8x1xf32>
    tpu.vector_store %arg8[%c0_94, %c0_95, %c0_96], %108 {strides = array<i32>} : memref<1x8x1xf32, #tpu.memory_space<vmem>>, vector<1x8x1xf32>,
    %109 = arith.mulf %100, %100 : vector<8x256xf32>
    %cst_97 = arith.constant dense<0.000000e+00> : vector<8xf32>
    %110 = vector.multi_reduction <add>, %109, %cst_97 [1] : vector<8x256xf32> to vector<8xf32>
    %111 = vector.shape_cast %110 : vector<8xf32> to vector<8x1xf32>
    %c0_98 = arith.constant 0 : index
    %c0_99 = arith.constant 0 : index
    %c0_100 = arith.constant 0 : index
    %112 = vector.load %arg9[%c0_98, %c0_99, %c0_100] : memref<1x8x1xf32, #tpu.memory_space<vmem>>, vector<1x8x1xf32>
    %113 = vector.shape_cast %112 : vector<1x8x1xf32> to vector<8x1xf32>
    %114 = vector.shape_cast %111 : vector<8x1xf32> to vector<1x8x1xf32>
    tpu.vector_store %arg9[%c0_98, %c0_99, %c0_100], %114 {strides = array<i32>} : memref<1x8x1xf32, #tpu.memory_space<vmem>>, vector<1x8x1xf32>,
    return
  }
  func.func @transform_0(%arg0: i32) -> (i32, i32, i32) {
    %c0_i32 = arith.constant 0 : i32
    %c0_i32_0 = arith.constant 0 : i32
    %c0_i32_1 = arith.constant 0 : i32
    return %arg0, %c0_i32, %c0_i32_0 : i32, i32, i32
  }
  func.func @transform_1(%arg0: i32) -> (i32, i32) {
    %c0_i32 = arith.constant 0 : i32
    %c0_i32_0 = arith.constant 0 : i32
    %c0_i32_1 = arith.constant 0 : i32
    return %c0_i32, %c0_i32_0 : i32, i32
  }
  func.func @transform_2(%arg0: i32) -> (i32, i32) {
    %c0_i32 = arith.constant 0 : i32
    %c0_i32_0 = arith.constant 0 : i32
    %c0_i32_1 = arith.constant 0 : i32
    return %c0_i32, %c0_i32_0 : i32, i32
  }
  func.func @transform_3(%arg0: i32) -> (i32, i32, i32) {
    %c0_i32 = arith.constant 0 : i32
    %c0_i32_0 = arith.constant 0 : i32
    %c0_i32_1 = arith.constant 0 : i32
    %c0_i32_2 = arith.constant 0 : i32
    return %c0_i32, %c0_i32_0, %c0_i32_1 : i32, i32, i32
  }
  func.func @transform_4(%arg0: i32) -> (i32, i32) {
    %c0_i32 = arith.constant 0 : i32
    %c0_i32_0 = arith.constant 0 : i32
    %c0_i32_1 = arith.constant 0 : i32
    return %c0_i32, %c0_i32_0 : i32, i32
  }
  func.func @transform_5(%arg0: i32) -> (i32, i32) {
    %c0_i32 = arith.constant 0 : i32
    %c0_i32_0 = arith.constant 0 : i32
    %c0_i32_1 = arith.constant 0 : i32
    return %c0_i32, %c0_i32_0 : i32, i32
  }
  func.func @transform_6(%arg0: i32) -> (i32, i32, i32) {
    %c0_i32 = arith.constant 0 : i32
    %c0_i32_0 = arith.constant 0 : i32
    %c0_i32_1 = arith.constant 0 : i32
    return %arg0, %c0_i32, %c0_i32_0 : i32, i32, i32
  }
  func.func @transform_7(%arg0: i32) -> (i32, i32, i32) {
    %c0_i32 = arith.constant 0 : i32
    %c0_i32_0 = arith.constant 0 : i32
    %c0_i32_1 = arith.constant 0 : i32
    return %arg0, %c0_i32, %c0_i32_0 : i32, i32, i32
  }
  func.func @transform_8(%arg0: i32) -> (i32, i32, i32) {
    %c0_i32 = arith.constant 0 : i32
    %c0_i32_0 = arith.constant 0 : i32
    %c0_i32_1 = arith.constant 0 : i32
    return %arg0, %c0_i32, %c0_i32_0 : i32, i32, i32
  }
}

module attributes {stable_mosaic.version = 11 : i64} {
  func.func @_conv3x3_stats_kernel(%arg0: i32, %arg1: memref<1x4x256xf32, #tpu.memory_space<vmem>>, %arg2: memref<9x8x4xf32, #tpu.memory_space<vmem>>, %arg3: memref<8x1xf32, #tpu.memory_space<vmem>>, %arg4: memref<9x256xf32, #tpu.memory_space<vmem>>, %arg5: memref<1x8x256xf32, #tpu.memory_space<vmem>>, %arg6: memref<1x8x1xf32, #tpu.memory_space<vmem>>, %arg7: memref<1x8x1xf32, #tpu.memory_space<vmem>>, %arg8: memref<8x256xf32, #tpu.memory_space<vmem>>) attributes {dimension_semantics = [#tpu.dimension_semantics<parallel>], iteration_bounds = array<i64: 2>, scalar_prefetch = 0 : i64, scratch_operands = 1 : i64, tpu.core_type = #tpu.core_type<tc>, window_params = [{transform_indices = @transform_0, window_bounds = array<i64: 1, 4, 256>}, {pipeline_mode = #tpu.pipeline_mode<synchronous>, transform_indices = @transform_1, window_bounds = array<i64: 9, 8, 4>}, {pipeline_mode = #tpu.pipeline_mode<synchronous>, transform_indices = @transform_2, window_bounds = array<i64: 8, 1>}, {pipeline_mode = #tpu.pipeline_mode<synchronous>, transform_indices = @transform_3, window_bounds = array<i64: 9, 256>}, {transform_indices = @transform_4, window_bounds = array<i64: 1, 8, 256>}, {transform_indices = @transform_5, window_bounds = array<i64: 1, 8, 1>}, {transform_indices = @transform_6, window_bounds = array<i64: 1, 8, 1>}]} {
    %c0 = arith.constant 0 : index
    %c0_0 = arith.constant 0 : index
    %c0_1 = arith.constant 0 : index
    %0 = vector.load %arg1[%c0, %c0_0, %c0_1] : memref<1x4x256xf32, #tpu.memory_space<vmem>>, vector<1x4x256xf32>
    %1 = vector.shape_cast %0 : vector<1x4x256xf32> to vector<4x256xf32>
    %c17_i32 = arith.constant 17 : i32
    %2 = tpu.dynamic_rotate %1 by %c17_i32 dim 1 : vector<4x256xf32>, i32 -> vector<4x256xf32>
    %c0_2 = arith.constant 0 : index
    %c0_3 = arith.constant 0 : index
    %3 = vector.load %arg4[%c0_2, %c0_3] : memref<9x256xf32, #tpu.memory_space<vmem>>, vector<1x256xf32>
    %4 = vector.broadcast %3 : vector<1x256xf32> to vector<4x256xf32>
    %5 = arith.mulf %2, %4 : vector<4x256xf32>
    %c0_4 = arith.constant 0 : index
    %c0_5 = arith.constant 0 : index
    %c0_6 = arith.constant 0 : index
    %6 = vector.load %arg2[%c0_4, %c0_5, %c0_6] : memref<9x8x4xf32, #tpu.memory_space<vmem>>, vector<1x8x4xf32>
    %7 = vector.shape_cast %6 : vector<1x8x4xf32> to vector<8x4xf32>
    %cst = arith.constant dense<0.000000e+00> : vector<8x256xf32>
    %8 = tpu.matmul %7, %5, %cst {dimension_numbers = #tpu.dot_dimension_numbers<[1], [0], [0], [1], [0, 0, 1, 1], [], []>} : vector<8x4xf32>, vector<4x256xf32>, vector<8x256xf32> -> vector<8x256xf32>
    %c0_7 = arith.constant 0 : index
    %c0_8 = arith.constant 0 : index
    %9 = vector.load %arg8[%c0_7, %c0_8] : memref<8x256xf32, #tpu.memory_space<vmem>>, vector<8x256xf32>
    tpu.vector_store %arg8[%c0_7, %c0_8], %8 {strides = array<i32>} : memref<8x256xf32, #tpu.memory_space<vmem>>, vector<8x256xf32>,
    %c16_i32 = arith.constant 16 : i32
    %10 = tpu.dynamic_rotate %1 by %c16_i32 dim 1 : vector<4x256xf32>, i32 -> vector<4x256xf32>
    %c1 = arith.constant 1 : index
    %c0_9 = arith.constant 0 : index
    %11 = vector.load %arg4[%c1, %c0_9] : memref<9x256xf32, #tpu.memory_space<vmem>>, vector<1x256xf32>
    %12 = vector.broadcast %11 : vector<1x256xf32> to vector<4x256xf32>
    %13 = arith.mulf %10, %12 : vector<4x256xf32>
    %c1_10 = arith.constant 1 : index
    %c0_11 = arith.constant 0 : index
    %c0_12 = arith.constant 0 : index
    %14 = vector.load %arg2[%c1_10, %c0_11, %c0_12] : memref<9x8x4xf32, #tpu.memory_space<vmem>>, vector<1x8x4xf32>
    %15 = vector.shape_cast %14 : vector<1x8x4xf32> to vector<8x4xf32>
    %cst_13 = arith.constant dense<0.000000e+00> : vector<8x256xf32>
    %16 = tpu.matmul %15, %13, %cst_13 {dimension_numbers = #tpu.dot_dimension_numbers<[1], [0], [0], [1], [0, 0, 1, 1], [], []>} : vector<8x4xf32>, vector<4x256xf32>, vector<8x256xf32> -> vector<8x256xf32>
    %c0_14 = arith.constant 0 : index
    %c0_15 = arith.constant 0 : index
    %17 = vector.load %arg8[%c0_14, %c0_15] : memref<8x256xf32, #tpu.memory_space<vmem>>, vector<8x256xf32>
    %18 = arith.addf %17, %16 : vector<8x256xf32>
    %c0_16 = arith.constant 0 : index
    %c0_17 = arith.constant 0 : index
    %19 = vector.load %arg8[%c0_16, %c0_17] : memref<8x256xf32, #tpu.memory_space<vmem>>, vector<8x256xf32>
    tpu.vector_store %arg8[%c0_16, %c0_17], %18 {strides = array<i32>} : memref<8x256xf32, #tpu.memory_space<vmem>>, vector<8x256xf32>,
    %c15_i32 = arith.constant 15 : i32
    %20 = tpu.dynamic_rotate %1 by %c15_i32 dim 1 : vector<4x256xf32>, i32 -> vector<4x256xf32>
    %c2 = arith.constant 2 : index
    %c0_18 = arith.constant 0 : index
    %21 = vector.load %arg4[%c2, %c0_18] : memref<9x256xf32, #tpu.memory_space<vmem>>, vector<1x256xf32>
    %22 = vector.broadcast %21 : vector<1x256xf32> to vector<4x256xf32>
    %23 = arith.mulf %20, %22 : vector<4x256xf32>
    %c2_19 = arith.constant 2 : index
    %c0_20 = arith.constant 0 : index
    %c0_21 = arith.constant 0 : index
    %24 = vector.load %arg2[%c2_19, %c0_20, %c0_21] : memref<9x8x4xf32, #tpu.memory_space<vmem>>, vector<1x8x4xf32>
    %25 = vector.shape_cast %24 : vector<1x8x4xf32> to vector<8x4xf32>
    %cst_22 = arith.constant dense<0.000000e+00> : vector<8x256xf32>
    %26 = tpu.matmul %25, %23, %cst_22 {dimension_numbers = #tpu.dot_dimension_numbers<[1], [0], [0], [1], [0, 0, 1, 1], [], []>} : vector<8x4xf32>, vector<4x256xf32>, vector<8x256xf32> -> vector<8x256xf32>
    %c0_23 = arith.constant 0 : index
    %c0_24 = arith.constant 0 : index
    %27 = vector.load %arg8[%c0_23, %c0_24] : memref<8x256xf32, #tpu.memory_space<vmem>>, vector<8x256xf32>
    %28 = arith.addf %27, %26 : vector<8x256xf32>
    %c0_25 = arith.constant 0 : index
    %c0_26 = arith.constant 0 : index
    %29 = vector.load %arg8[%c0_25, %c0_26] : memref<8x256xf32, #tpu.memory_space<vmem>>, vector<8x256xf32>
    tpu.vector_store %arg8[%c0_25, %c0_26], %28 {strides = array<i32>} : memref<8x256xf32, #tpu.memory_space<vmem>>, vector<8x256xf32>,
    %c1_i32 = arith.constant 1 : i32
    %30 = tpu.dynamic_rotate %1 by %c1_i32 dim 1 : vector<4x256xf32>, i32 -> vector<4x256xf32>
    %c3 = arith.constant 3 : index
    %c0_27 = arith.constant 0 : index
    %31 = vector.load %arg4[%c3, %c0_27] : memref<9x256xf32, #tpu.memory_space<vmem>>, vector<1x256xf32>
    %32 = vector.broadcast %31 : vector<1x256xf32> to vector<4x256xf32>
    %33 = arith.mulf %30, %32 : vector<4x256xf32>
    %c3_28 = arith.constant 3 : index
    %c0_29 = arith.constant 0 : index
    %c0_30 = arith.constant 0 : index
    %34 = vector.load %arg2[%c3_28, %c0_29, %c0_30] : memref<9x8x4xf32, #tpu.memory_space<vmem>>, vector<1x8x4xf32>
    %35 = vector.shape_cast %34 : vector<1x8x4xf32> to vector<8x4xf32>
    %cst_31 = arith.constant dense<0.000000e+00> : vector<8x256xf32>
    %36 = tpu.matmul %35, %33, %cst_31 {dimension_numbers = #tpu.dot_dimension_numbers<[1], [0], [0], [1], [0, 0, 1, 1], [], []>} : vector<8x4xf32>, vector<4x256xf32>, vector<8x256xf32> -> vector<8x256xf32>
    %c0_32 = arith.constant 0 : index
    %c0_33 = arith.constant 0 : index
    %37 = vector.load %arg8[%c0_32, %c0_33] : memref<8x256xf32, #tpu.memory_space<vmem>>, vector<8x256xf32>
    %38 = arith.addf %37, %36 : vector<8x256xf32>
    %c0_34 = arith.constant 0 : index
    %c0_35 = arith.constant 0 : index
    %39 = vector.load %arg8[%c0_34, %c0_35] : memref<8x256xf32, #tpu.memory_space<vmem>>, vector<8x256xf32>
    tpu.vector_store %arg8[%c0_34, %c0_35], %38 {strides = array<i32>} : memref<8x256xf32, #tpu.memory_space<vmem>>, vector<8x256xf32>,
    %c4 = arith.constant 4 : index
    %c0_36 = arith.constant 0 : index
    %40 = vector.load %arg4[%c4, %c0_36] : memref<9x256xf32, #tpu.memory_space<vmem>>, vector<1x256xf32>
    %41 = vector.broadcast %40 : vector<1x256xf32> to vector<4x256xf32>
    %42 = arith.mulf %1, %41 : vector<4x256xf32>
    %c4_37 = arith.constant 4 : index
    %c0_38 = arith.constant 0 : index
    %c0_39 = arith.constant 0 : index
    %43 = vector.load %arg2[%c4_37, %c0_38, %c0_39] : memref<9x8x4xf32, #tpu.memory_space<vmem>>, vector<1x8x4xf32>
    %44 = vector.shape_cast %43 : vector<1x8x4xf32> to vector<8x4xf32>
    %cst_40 = arith.constant dense<0.000000e+00> : vector<8x256xf32>
    %45 = tpu.matmul %44, %42, %cst_40 {dimension_numbers = #tpu.dot_dimension_numbers<[1], [0], [0], [1], [0, 0, 1, 1], [], []>} : vector<8x4xf32>, vector<4x256xf32>, vector<8x256xf32> -> vector<8x256xf32>
    %c0_41 = arith.constant 0 : index
    %c0_42 = arith.constant 0 : index
    %46 = vector.load %arg8[%c0_41, %c0_42] : memref<8x256xf32, #tpu.memory_space<vmem>>, vector<8x256xf32>
    %47 = arith.addf %46, %45 : vector<8x256xf32>
    %c0_43 = arith.constant 0 : index
    %c0_44 = arith.constant 0 : index
    %48 = vector.load %arg8[%c0_43, %c0_44] : memref<8x256xf32, #tpu.memory_space<vmem>>, vector<8x256xf32>
    tpu.vector_store %arg8[%c0_43, %c0_44], %47 {strides = array<i32>} : memref<8x256xf32, #tpu.memory_space<vmem>>, vector<8x256xf32>,
    %c255_i32 = arith.constant 255 : i32
    %49 = tpu.dynamic_rotate %1 by %c255_i32 dim 1 : vector<4x256xf32>, i32 -> vector<4x256xf32>
    %c5 = arith.constant 5 : index
    %c0_45 = arith.constant 0 : index
    %50 = vector.load %arg4[%c5, %c0_45] : memref<9x256xf32, #tpu.memory_space<vmem>>, vector<1x256xf32>
    %51 = vector.broadcast %50 : vector<1x256xf32> to vector<4x256xf32>
    %52 = arith.mulf %49, %51 : vector<4x256xf32>
    %c5_46 = arith.constant 5 : index
    %c0_47 = arith.constant 0 : index
    %c0_48 = arith.constant 0 : index
    %53 = vector.load %arg2[%c5_46, %c0_47, %c0_48] : memref<9x8x4xf32, #tpu.memory_space<vmem>>, vector<1x8x4xf32>
    %54 = vector.shape_cast %53 : vector<1x8x4xf32> to vector<8x4xf32>
    %cst_49 = arith.constant dense<0.000000e+00> : vector<8x256xf32>
    %55 = tpu.matmul %54, %52, %cst_49 {dimension_numbers = #tpu.dot_dimension_numbers<[1], [0], [0], [1], [0, 0, 1, 1], [], []>} : vector<8x4xf32>, vector<4x256xf32>, vector<8x256xf32> -> vector<8x256xf32>
    %c0_50 = arith.constant 0 : index
    %c0_51 = arith.constant 0 : index
    %56 = vector.load %arg8[%c0_50, %c0_51] : memref<8x256xf32, #tpu.memory_space<vmem>>, vector<8x256xf32>
    %57 = arith.addf %56, %55 : vector<8x256xf32>
    %c0_52 = arith.constant 0 : index
    %c0_53 = arith.constant 0 : index
    %58 = vector.load %arg8[%c0_52, %c0_53] : memref<8x256xf32, #tpu.memory_space<vmem>>, vector<8x256xf32>
    tpu.vector_store %arg8[%c0_52, %c0_53], %57 {strides = array<i32>} : memref<8x256xf32, #tpu.memory_space<vmem>>, vector<8x256xf32>,
    %c241_i32 = arith.constant 241 : i32
    %59 = tpu.dynamic_rotate %1 by %c241_i32 dim 1 : vector<4x256xf32>, i32 -> vector<4x256xf32>
    %c6 = arith.constant 6 : index
    %c0_54 = arith.constant 0 : index
    %60 = vector.load %arg4[%c6, %c0_54] : memref<9x256xf32, #tpu.memory_space<vmem>>, vector<1x256xf32>
    %61 = vector.broadcast %60 : vector<1x256xf32> to vector<4x256xf32>
    %62 = arith.mulf %59, %61 : vector<4x256xf32>
    %c6_55 = arith.constant 6 : index
    %c0_56 = arith.constant 0 : index
    %c0_57 = arith.constant 0 : index
    %63 = vector.load %arg2[%c6_55, %c0_56, %c0_57] : memref<9x8x4xf32, #tpu.memory_space<vmem>>, vector<1x8x4xf32>
    %64 = vector.shape_cast %63 : vector<1x8x4xf32> to vector<8x4xf32>
    %cst_58 = arith.constant dense<0.000000e+00> : vector<8x256xf32>
    %65 = tpu.matmul %64, %62, %cst_58 {dimension_numbers = #tpu.dot_dimension_numbers<[1], [0], [0], [1], [0, 0, 1, 1], [], []>} : vector<8x4xf32>, vector<4x256xf32>, vector<8x256xf32> -> vector<8x256xf32>
    %c0_59 = arith.constant 0 : index
    %c0_60 = arith.constant 0 : index
    %66 = vector.load %arg8[%c0_59, %c0_60] : memref<8x256xf32, #tpu.memory_space<vmem>>, vector<8x256xf32>
    %67 = arith.addf %66, %65 : vector<8x256xf32>
    %c0_61 = arith.constant 0 : index
    %c0_62 = arith.constant 0 : index
    %68 = vector.load %arg8[%c0_61, %c0_62] : memref<8x256xf32, #tpu.memory_space<vmem>>, vector<8x256xf32>
    tpu.vector_store %arg8[%c0_61, %c0_62], %67 {strides = array<i32>} : memref<8x256xf32, #tpu.memory_space<vmem>>, vector<8x256xf32>,
    %c240_i32 = arith.constant 240 : i32
    %69 = tpu.dynamic_rotate %1 by %c240_i32 dim 1 : vector<4x256xf32>, i32 -> vector<4x256xf32>
    %c7 = arith.constant 7 : index
    %c0_63 = arith.constant 0 : index
    %70 = vector.load %arg4[%c7, %c0_63] : memref<9x256xf32, #tpu.memory_space<vmem>>, vector<1x256xf32>
    %71 = vector.broadcast %70 : vector<1x256xf32> to vector<4x256xf32>
    %72 = arith.mulf %69, %71 : vector<4x256xf32>
    %c7_64 = arith.constant 7 : index
    %c0_65 = arith.constant 0 : index
    %c0_66 = arith.constant 0 : index
    %73 = vector.load %arg2[%c7_64, %c0_65, %c0_66] : memref<9x8x4xf32, #tpu.memory_space<vmem>>, vector<1x8x4xf32>
    %74 = vector.shape_cast %73 : vector<1x8x4xf32> to vector<8x4xf32>
    %cst_67 = arith.constant dense<0.000000e+00> : vector<8x256xf32>
    %75 = tpu.matmul %74, %72, %cst_67 {dimension_numbers = #tpu.dot_dimension_numbers<[1], [0], [0], [1], [0, 0, 1, 1], [], []>} : vector<8x4xf32>, vector<4x256xf32>, vector<8x256xf32> -> vector<8x256xf32>
    %c0_68 = arith.constant 0 : index
    %c0_69 = arith.constant 0 : index
    %76 = vector.load %arg8[%c0_68, %c0_69] : memref<8x256xf32, #tpu.memory_space<vmem>>, vector<8x256xf32>
    %77 = arith.addf %76, %75 : vector<8x256xf32>
    %c0_70 = arith.constant 0 : index
    %c0_71 = arith.constant 0 : index
    %78 = vector.load %arg8[%c0_70, %c0_71] : memref<8x256xf32, #tpu.memory_space<vmem>>, vector<8x256xf32>
    tpu.vector_store %arg8[%c0_70, %c0_71], %77 {strides = array<i32>} : memref<8x256xf32, #tpu.memory_space<vmem>>, vector<8x256xf32>,
    %c239_i32 = arith.constant 239 : i32
    %79 = tpu.dynamic_rotate %1 by %c239_i32 dim 1 : vector<4x256xf32>, i32 -> vector<4x256xf32>
    %c8 = arith.constant 8 : index
    %c0_72 = arith.constant 0 : index
    %80 = vector.load %arg4[%c8, %c0_72] : memref<9x256xf32, #tpu.memory_space<vmem>>, vector<1x256xf32>
    %81 = vector.broadcast %80 : vector<1x256xf32> to vector<4x256xf32>
    %82 = arith.mulf %79, %81 : vector<4x256xf32>
    %c8_73 = arith.constant 8 : index
    %c0_74 = arith.constant 0 : index
    %c0_75 = arith.constant 0 : index
    %83 = vector.load %arg2[%c8_73, %c0_74, %c0_75] : memref<9x8x4xf32, #tpu.memory_space<vmem>>, vector<1x8x4xf32>
    %84 = vector.shape_cast %83 : vector<1x8x4xf32> to vector<8x4xf32>
    %cst_76 = arith.constant dense<0.000000e+00> : vector<8x256xf32>
    %85 = tpu.matmul %84, %82, %cst_76 {dimension_numbers = #tpu.dot_dimension_numbers<[1], [0], [0], [1], [0, 0, 1, 1], [], []>} : vector<8x4xf32>, vector<4x256xf32>, vector<8x256xf32> -> vector<8x256xf32>
    %c0_77 = arith.constant 0 : index
    %c0_78 = arith.constant 0 : index
    %86 = vector.load %arg8[%c0_77, %c0_78] : memref<8x256xf32, #tpu.memory_space<vmem>>, vector<8x256xf32>
    %87 = arith.addf %86, %85 : vector<8x256xf32>
    %c0_79 = arith.constant 0 : index
    %c0_80 = arith.constant 0 : index
    %88 = vector.load %arg8[%c0_79, %c0_80] : memref<8x256xf32, #tpu.memory_space<vmem>>, vector<8x256xf32>
    tpu.vector_store %arg8[%c0_79, %c0_80], %87 {strides = array<i32>} : memref<8x256xf32, #tpu.memory_space<vmem>>, vector<8x256xf32>,
    %c0_81 = arith.constant 0 : index
    %c0_82 = arith.constant 0 : index
    %89 = vector.load %arg8[%c0_81, %c0_82] : memref<8x256xf32, #tpu.memory_space<vmem>>, vector<8x256xf32>
    %c0_83 = arith.constant 0 : index
    %c0_84 = arith.constant 0 : index
    %90 = vector.load %arg3[%c0_83, %c0_84] : memref<8x1xf32, #tpu.memory_space<vmem>>, vector<8x1xf32>
    %91 = vector.broadcast %90 : vector<8x1xf32> to vector<8x256xf32>
    %92 = arith.addf %89, %91 : vector<8x256xf32>
    %c0_85 = arith.constant 0 : index
    %c0_86 = arith.constant 0 : index
    %c0_87 = arith.constant 0 : index
    %93 = vector.load %arg5[%c0_85, %c0_86, %c0_87] : memref<1x8x256xf32, #tpu.memory_space<vmem>>, vector<1x8x256xf32>
    %94 = vector.shape_cast %93 : vector<1x8x256xf32> to vector<8x256xf32>
    %95 = vector.shape_cast %92 : vector<8x256xf32> to vector<1x8x256xf32>
    tpu.vector_store %arg5[%c0_85, %c0_86, %c0_87], %95 {strides = array<i32>} : memref<1x8x256xf32, #tpu.memory_space<vmem>>, vector<1x8x256xf32>,
    %cst_88 = arith.constant dense<0.000000e+00> : vector<8xf32>
    %96 = vector.multi_reduction <add>, %92, %cst_88 [1] : vector<8x256xf32> to vector<8xf32>
    %97 = vector.shape_cast %96 : vector<8xf32> to vector<8x1xf32>
    %c0_89 = arith.constant 0 : index
    %c0_90 = arith.constant 0 : index
    %c0_91 = arith.constant 0 : index
    %98 = vector.load %arg6[%c0_89, %c0_90, %c0_91] : memref<1x8x1xf32, #tpu.memory_space<vmem>>, vector<1x8x1xf32>
    %99 = vector.shape_cast %98 : vector<1x8x1xf32> to vector<8x1xf32>
    %100 = vector.shape_cast %97 : vector<8x1xf32> to vector<1x8x1xf32>
    tpu.vector_store %arg6[%c0_89, %c0_90, %c0_91], %100 {strides = array<i32>} : memref<1x8x1xf32, #tpu.memory_space<vmem>>, vector<1x8x1xf32>,
    %101 = arith.mulf %92, %92 : vector<8x256xf32>
    %cst_92 = arith.constant dense<0.000000e+00> : vector<8xf32>
    %102 = vector.multi_reduction <add>, %101, %cst_92 [1] : vector<8x256xf32> to vector<8xf32>
    %103 = vector.shape_cast %102 : vector<8xf32> to vector<8x1xf32>
    %c0_93 = arith.constant 0 : index
    %c0_94 = arith.constant 0 : index
    %c0_95 = arith.constant 0 : index
    %104 = vector.load %arg7[%c0_93, %c0_94, %c0_95] : memref<1x8x1xf32, #tpu.memory_space<vmem>>, vector<1x8x1xf32>
    %105 = vector.shape_cast %104 : vector<1x8x1xf32> to vector<8x1xf32>
    %106 = vector.shape_cast %103 : vector<8x1xf32> to vector<1x8x1xf32>
    tpu.vector_store %arg7[%c0_93, %c0_94, %c0_95], %106 {strides = array<i32>} : memref<1x8x1xf32, #tpu.memory_space<vmem>>, vector<1x8x1xf32>,
    return
  }
  func.func @transform_0(%arg0: i32) -> (i32, i32, i32) {
    %c0_i32 = arith.constant 0 : i32
    %c0_i32_0 = arith.constant 0 : i32
    %c0_i32_1 = arith.constant 0 : i32
    return %arg0, %c0_i32, %c0_i32_0 : i32, i32, i32
  }
  func.func @transform_1(%arg0: i32) -> (i32, i32, i32) {
    %c0_i32 = arith.constant 0 : i32
    %c0_i32_0 = arith.constant 0 : i32
    %c0_i32_1 = arith.constant 0 : i32
    %c0_i32_2 = arith.constant 0 : i32
    return %c0_i32, %c0_i32_0, %c0_i32_1 : i32, i32, i32
  }
  func.func @transform_2(%arg0: i32) -> (i32, i32) {
    %c0_i32 = arith.constant 0 : i32
    %c0_i32_0 = arith.constant 0 : i32
    %c0_i32_1 = arith.constant 0 : i32
    return %c0_i32, %c0_i32_0 : i32, i32
  }
  func.func @transform_3(%arg0: i32) -> (i32, i32) {
    %c0_i32 = arith.constant 0 : i32
    %c0_i32_0 = arith.constant 0 : i32
    %c0_i32_1 = arith.constant 0 : i32
    return %c0_i32, %c0_i32_0 : i32, i32
  }
  func.func @transform_4(%arg0: i32) -> (i32, i32, i32) {
    %c0_i32 = arith.constant 0 : i32
    %c0_i32_0 = arith.constant 0 : i32
    %c0_i32_1 = arith.constant 0 : i32
    return %arg0, %c0_i32, %c0_i32_0 : i32, i32, i32
  }
  func.func @transform_5(%arg0: i32) -> (i32, i32, i32) {
    %c0_i32 = arith.constant 0 : i32
    %c0_i32_0 = arith.constant 0 : i32
    %c0_i32_1 = arith.constant 0 : i32
    return %arg0, %c0_i32, %c0_i32_0 : i32, i32, i32
  }
  func.func @transform_6(%arg0: i32) -> (i32, i32, i32) {
    %c0_i32 = arith.constant 0 : i32
    %c0_i32_0 = arith.constant 0 : i32
    %c0_i32_1 = arith.constant 0 : i32
    return %arg0, %c0_i32, %c0_i32_0 : i32, i32, i32
  }
}

</mosaic_0001>

<llo_original>
// kernel: res_block_forward.5
$region0: #{res_block_forward.5}
  #allocation0 [shape = 'u32[]', space=smem, size = 0x4, offset = 0x4, fixed_abs, tag = 'smem constant byte address 0x4 - core index']
  #allocation1 [shape = 'u32[144,128]{1,0:T(1,128)}', space=vmem, size = 0x12000, scoped, tag = 'internal scratch']
  %s0 = inlined_call_operand.vmem [shape: f32[2,8,256], index: 0, kind: input, shape index: {}]
  %s1 = inlined_call_operand.vmem [shape: f32[2,4,256], index: 1, kind: input, shape index: {}]
  %s2 = inlined_call_operand.vmem [shape: f32[8,1], index: 2, kind: input, shape index: {}]
  %s3 = inlined_call_operand.vmem [shape: f32[8,1], index: 3, kind: input, shape index: {}]
  %s4 = inlined_call_operand.vmem [shape: f32[8,4], index: 4, kind: input, shape index: {}]
  %s5 = inlined_call_operand.vmem [shape: f32[8,1], index: 5, kind: input, shape index: {}]
  %s6 = inlined_call_operand.vmem [shape: f32[2,8,256], index: 6, kind: output, shape index: {}]
  %s7 = sld [smem:[#allocation0]]
  $region57: #{res_block_forward.5} parent=0
    _
  %s9 = ssub.s32 1, %s7
  %s10 = scalar_select 0, %s9, %s7
  loop: start=0, step=1, limit=4
  $region2: #{res_block_forward.5} parent=0 // loop_pre_header
    _
  $region3: #{res_block_forward.5} parent=0 // loop_header
    %s12 = sphi 0, %s16
    %p13 = scmp.ge.s32.totalorder %s12, 4
    %s22 = sphi 0, %s24
    %s25 = sphi 0, %s22
    %s26 = sphi 0, %s25
    %s42 = sphi 0, %s26
    %s48 = sphi 0, %s50
    %s51 = sphi 0, %s48
    %s52 = sphi 0, %s51
    %s68 = sphi 0, %s52
    %s72 = sphi 0, %s72
    %s74 = sphi 0, %s72
    %s75 = sphi 0, %s74
    %s89 = sphi 0, %s75
    %s93 = sphi 0, %s93
    %s95 = sphi 0, %s93
    %s96 = sphi 0, %s95
    %s110 = sphi 0, %s96
    %s114 = sphi 0, %s114
    %s116 = sphi 0, %s114
    %s117 = sphi 0, %s116
    %s131 = sphi 0, %s117
    %s135 = sphi 0, %s135
    %s137 = sphi 0, %s135
    %s138 = sphi 0, %s137
    %s152 = sphi 0, %s138
    %s158 = sphi 0, %s160
    %s161 = sphi 0, %s158
    %s162 = sphi 0, %s161
    %s178 = sphi 0, %s162
  $region4: #{res_block_forward.5} parent=0 // loop_header_branch
    %15 = sbr.rel (%p13) target = $region8
  $region5: #{res_block_forward.5} parent=0 // loop_body
    %s17 = ssub.s32 %s12, 1
    %s18 = ssub.s32 %s12, 2
    %s19 = sadd.s32 %s12, 1
    %s20 = ssub.s32 %s12, %s19
    %p21 = scmp.eq.s32.totalorder %s20, 0
    %s23 = sadd.s32 %s22, 1
    %s24 = scalar_select %p21, %s22, %s23
    %p27 = pneg %p21
    %p28 = scmp.eq.s32.totalorder %s12, 1
    %p29 = por %p27, %p28
    %p30 = scmp.ne.s32.totalorder %s22, %s25
    %p31 = scmp.eq.s32.totalorder %s12, 0
    %p32 = por %p30, %p31
    %p33 = scmp.ne.s32.totalorder %s22, %s25
    %p34 = scmp.eq.s32.totalorder %s17, 1
    %p35 = por %p33, %p34
    %p36 = scmp.ne.s32.totalorder %s25, %s26
    %p37 = scmp.eq.s32.totalorder %s17, 0
    %p38 = por %p36, %p37
    %p39 = scmp.ne.s32.totalorder %s25, %s26
    %p40 = scmp.eq.s32.totalorder %s18, 1
    %p41 = por %p39, %p40
    %p43 = scmp.ne.s32.totalorder %s26, %s42
    %p44 = scmp.eq.s32.totalorder %s18, 0
    %p45 = por %p43, %p44
    %s46 = ssub.s32 %s12, %s19
    %p47 = scmp.eq.s32.totalorder %s46, 0
    %s49 = sadd.s32 %s48, 1
    %s50 = scalar_select %p47, %s48, %s49
    %p53 = pneg %p47
    %p54 = scmp.eq.s32.totalorder %s12, 1
    %p55 = por %p53, %p54
    %p56 = scmp.ne.s32.totalorder %s48, %s51
    %p57 = scmp.eq.s32.totalorder %s12, 0
    %p58 = por %p56, %p57
    %p59 = scmp.ne.s32.totalorder %s48, %s51
    %p60 = scmp.eq.s32.totalorder %s17, 1
    %p61 = por %p59, %p60
    %p62 = scmp.ne.s32.totalorder %s51, %s52
    %p63 = scmp.eq.s32.totalorder %s17, 0
    %p64 = por %p62, %p63
    %p65 = scmp.ne.s32.totalorder %s51, %s52
    %p66 = scmp.eq.s32.totalorder %s18, 1
    %p67 = por %p65, %p66
    %p69 = scmp.ne.s32.totalorder %s52, %s68
    %p70 = scmp.eq.s32.totalorder %s18, 0
    %p71 = por %p69, %p70
    %s73 = sadd.s32 %s72, 1
    %p76 = scmp.eq.s32.totalorder %s12, 1
    %p77 = scmp.ne.s32.totalorder %s72, %s74
    %p78 = scmp.eq.s32.totalorder %s12, 0
    %p79 = por %p77, %p78
    %p80 = scmp.ne.s32.totalorder %s72, %s74
    %p81 = scmp.eq.s32.totalorder %s17, 1
    %p82 = por %p80, %p81
    %p83 = scmp.ne.s32.totalorder %s74, %s75
    %p84 = scmp.eq.s32.totalorder %s17, 0
    %p85 = por %p83, %p84
    %p86 = scmp.ne.s32.totalorder %s74, %s75
    %p87 = scmp.eq.s32.totalorder %s18, 1
    %p88 = por %p86, %p87
    %p90 = scmp.ne.s32.totalorder %s75, %s89
    %p91 = scmp.eq.s32.totalorder %s18, 0
    %p92 = por %p90, %p91
    %s94 = sadd.s32 %s93, 1
    %p97 = scmp.eq.s32.totalorder %s12, 1
    %p98 = scmp.ne.s32.totalorder %s93, %s95
    %p99 = scmp.eq.s32.totalorder %s12, 0
    %p100 = por %p98, %p99
    %p101 = scmp.ne.s32.totalorder %s93, %s95
    %p102 = scmp.eq.s32.totalorder %s17, 1
    %p103 = por %p101, %p102
    %p104 = scmp.ne.s32.totalorder %s95, %s96
    %p105 = scmp.eq.s32.totalorder %s17, 0
    %p106 = por %p104, %p105
    %p107 = scmp.ne.s32.totalorder %s95, %s96
    %p108 = scmp.eq.s32.totalorder %s18, 1
    %p109 = por %p107, %p108
    %p111 = scmp.ne.s32.totalorder %s96, %s110
    %p112 = scmp.eq.s32.totalorder %s18, 0
    %p113 = por %p111, %p112
    %s115 = sadd.s32 %s114, 1
    %p118 = scmp.eq.s32.totalorder %s12, 1
    %p119 = scmp.ne.s32.totalorder %s114, %s116
    %p120 = scmp.eq.s32.totalorder %s12, 0
    %p121 = por %p119, %p120
    %p122 = scmp.ne.s32.totalorder %s114, %s116
    %p123 = scmp.eq.s32.totalorder %s17, 1
    %p124 = por %p122, %p123
    %p125 = scmp.ne.s32.totalorder %s116, %s117
    %p126 = scmp.eq.s32.totalorder %s17, 0
    %p127 = por %p125, %p126
    %p128 = scmp.ne.s32.totalorder %s116, %s117
    %p129 = scmp.eq.s32.totalorder %s18, 1
    %p130 = por %p128, %p129
    %p132 = scmp.ne.s32.totalorder %s117, %s131
    %p133 = scmp.eq.s32.totalorder %s18, 0
    %p134 = por %p132, %p133
    %s136 = sadd.s32 %s135, 1
    %p139 = scmp.eq.s32.totalorder %s12, 1
    %p140 = scmp.ne.s32.totalorder %s135, %s137
    %p141 = scmp.eq.s32.totalorder %s12, 0
    %p142 = por %p140, %p141
    %p143 = scmp.ne.s32.totalorder %s135, %s137
    %p144 = scmp.eq.s32.totalorder %s17, 1
    %p145 = por %p143, %p144
    %p146 = scmp.ne.s32.totalorder %s137, %s138
    %p147 = scmp.eq.s32.totalorder %s17, 0
    %p148 = por %p146, %p147
    %p149 = scmp.ne.s32.totalorder %s137, %s138
    %p150 = scmp.eq.s32.totalorder %s18, 1
    %p151 = por %p149, %p150
    %p153 = scmp.ne.s32.totalorder %s138, %s152
    %p154 = scmp.eq.s32.totalorder %s18, 0
    %p155 = por %p153, %p154
    %s156 = ssub.s32 %s12, %s19
    %p157 = scmp.eq.s32.totalorder %s156, 0
    %s159 = sadd.s32 %s158, 1
    %s160 = scalar_select %p157, %s158, %s159
    %p163 = pneg %p157
    %p164 = scmp.eq.s32.totalorder %s12, 1
    %p165 = por %p163, %p164
    %p166 = scmp.ne.s32.totalorder %s158, %s161
    %p167 = scmp.eq.s32.totalorder %s12, 0
    %p168 = por %p166, %p167
    %p169 = scmp.ne.s32.totalorder %s158, %s161
    %p170 = scmp.eq.s32.totalorder %s17, 1
    %p171 = por %p169, %p170
    %p172 = scmp.ne.s32.totalorder %s161, %s162
    %p173 = scmp.eq.s32.totalorder %s17, 0
    %p174 = por %p172, %p173
    %p175 = scmp.ne.s32.totalorder %s161, %s162
    %p176 = scmp.eq.s32.totalorder %s18, 1
    %p177 = por %p175, %p176
    %p179 = scmp.ne.s32.totalorder %s162, %s178
    %p180 = scmp.eq.s32.totalorder %s18, 0
    %p181 = por %p179, %p180
    %p182 = scmp.le.s32.totalorder 1, %s12
    %p183 = scmp.lt.s32.totalorder %s12, 3
    %p184 = pnand %p182, %p183
    %p185 = pneg %p184
    // Predicated region
    $region9: #{res_block_forward.5} parent=5 // pred_check
      _
    $region10: #{res_block_forward.5} parent=5 // pred_check_branch
      %187 = sbr.rel (%p184) target = $region12
    $region11: #{res_block_forward.5} parent=5 // pred_region
      %s188 = ssub.s32 %s12, 1
      // Predicated region
      $region13: #{res_block_forward.5} parent=11 // pred_check
        %p189 = pneg %p85
      $region14: #{res_block_forward.5} parent=11 // pred_check_branch
        %191 = sbr.rel (%p189) target = $region16
      $region15: #{res_block_forward.5} parent=11 // pred_region
        _
      $region16: #{res_block_forward.5} parent=11 // pred_fallthru
        _
      // Predicated region
      $region17: #{res_block_forward.5} parent=11 // pred_check
        %p192 = pneg %p106
      $region18: #{res_block_forward.5} parent=11 // pred_check_branch
        %194 = sbr.rel (%p192) target = $region20
      $region19: #{res_block_forward.5} parent=11 // pred_region
        _
      $region20: #{res_block_forward.5} parent=11 // pred_fallthru
        _
      // Predicated region
      $region21: #{res_block_forward.5} parent=11 // pred_check
        %p195 = pneg %p127
      $region22: #{res_block_forward.5} parent=11 // pred_check_branch
        %197 = sbr.rel (%p195) target = $region24
      $region23: #{res_block_forward.5} parent=11 // pred_region
        _
      $region24: #{res_block_forward.5} parent=11 // pred_fallthru
        _
      // Predicated region
      $region25: #{res_block_forward.5} parent=11 // pred_check
        %p198 = pneg %p148
      $region26: #{res_block_forward.5} parent=11 // pred_check_branch
        %200 = sbr.rel (%p198) target = $region28
      $region27: #{res_block_forward.5} parent=11 // pred_region
        _
      $region28: #{res_block_forward.5} parent=11 // pred_fallthru
        _
    $region12: #{res_block_forward.5} parent=5 // pred_fallthru
      _
    %p201 = scmp.lt.s32.totalorder %s12, 2
    // Predicated region
    $region29: #{res_block_forward.5} parent=5 // pred_check
      %p202 = pneg %p201
    $region30: #{res_block_forward.5} parent=5 // pred_check_branch
      %204 = sbr.rel (%p202) target = $region32
    $region31: #{res_block_forward.5} parent=5 // pred_region
      // Predicated region
      $region33: #{res_block_forward.5} parent=31 // pred_check
        %p205 = pneg %p32
      $region34: #{res_block_forward.5} parent=31 // pred_check_branch
        %207 = sbr.rel (%p205) target = $region36
      $region35: #{res_block_forward.5} parent=31 // pred_region
        %p208 = scmp.lt.s32.totalorder %s12, 1
        %s209 = scalar_select %p208, %s12, 1
        %s210 = smul.addr %s209, 2
        %s211 = smul.addr %s210, 8
        %s212 = scalar_lea.vmem %s0, %s211
      $region36: #{res_block_forward.5} parent=31 // pred_fallthru
        _
      // Predicated region
      $region37: #{res_block_forward.5} parent=31 // pred_check
        %p213 = pneg %p58
      $region38: #{res_block_forward.5} parent=31 // pred_check_branch
        %215 = sbr.rel (%p213) target = $region40
      $region39: #{res_block_forward.5} parent=31 // pred_region
        %p216 = scmp.lt.s32.totalorder %s12, 1
        %s217 = scalar_select %p216, %s12, 1
        %s218 = smul.addr %s217, 2
        %s219 = smul.addr %s218, 4
        %s220 = scalar_lea.vmem %s1, %s219
      $region40: #{res_block_forward.5} parent=31 // pred_fallthru
        _
    $region32: #{res_block_forward.5} parent=5 // pred_fallthru
      _
    %p221 = scmp.le.s32.totalorder 1, %s12
    %p222 = scmp.lt.s32.totalorder %s12, 3
    %p223 = pnand %p221, %p222
    %p224 = pneg %p223
    // Predicated region
    $region41: #{res_block_forward.5} parent=5 // pred_check
      _
    $region42: #{res_block_forward.5} parent=5 // pred_check_branch
      %226 = sbr.rel (%p223) target = $region44
    $region43: #{res_block_forward.5} parent=5 // pred_region
      %s227 = ssub.s32 %s12, 1
      %p228 = scmp.lt.s32.totalorder %s17, 1
      %s229 = scalar_select %p228, %s17, 1
      %s230 = smul.addr %s229, 2
      %s231 = smul.addr %s230, 8
      %s232 = scalar_lea.vmem %s0, %s231
      %p233 = pneg %p38
      %p234 = pneg %p35
      %p235 = scmp.lt.s32.totalorder %s17, 1
      %s236 = scalar_select %p235, %s17, 1
      %s237 = smul.addr %s236, 2
      %s238 = smul.addr %s237, 4
      %s239 = scalar_lea.vmem %s1, %s238
      %p240 = pneg %p64
      %p241 = pneg %p61
      %p242 = pneg %p85
      %p243 = pneg %p82
      %p244 = pneg %p106
      %p245 = pneg %p103
      %p246 = pneg %p127
      %p247 = pneg %p124
      %p248 = pneg %p148
      %p249 = pneg %p145
      %p250 = pneg %p174
      %p251 = pneg %p171
      %p252 = scmp.lt.s32.totalorder %s17, 1
      %s253 = scalar_select %p252, %s17, 1
      %s254 = smul.addr %s253, 2
      %s255 = smul.addr %s254, 8
      %s256 = scalar_lea.vmem %s6, %s255
      %p257 = scmp.lt.s32.totalorder %s17, 1
      %s258 = scalar_select %p257, %s17, 1
      %s259 = smul.addr %s258, 2
      %s260 = smul.addr %s259, 8
      %s261 = scalar_lea.vmem %s0, %s260
      %p262 = scmp.lt.s32.totalorder %s17, 1
      %s263 = scalar_select %p262, %s17, 1
      %s264 = smul.addr %s263, 2
      %s265 = smul.addr %s264, 4
      %s266 = scalar_lea.vmem %s1, %s265
      %p267 = scmp.lt.s32.totalorder %s17, 1
      %s268 = scalar_select %p267, %s17, 1
      %s269 = smul.addr %s268, 2
      %s270 = smul.addr %s269, 8
      %s271 = scalar_lea.vmem %s6, %s270
      %v272 = vld [vmem:[%s261] sm:$0xff]
      %v273 = vld [vmem:[%s261 + $0x8] sm:$0xff]
      %v274 = vld [vmem:[%s2] sm:$0xff]
      %276 = vset.pattern.permute.xlu0 0
      %277 = vperm.xlu0 %276, %v274
      %v278 = vpop.permute.xlu0 %277
      %v280 = vmul.f32 %v272, %v278
      %v281 = vmul.f32 %v273, %v278
      %v282 = vld [vmem:[%s3] sm:$0xff]
      %284 = vset.pattern.permute.xlu0 0
      %285 = vperm.xlu0 %284, %v282
      %v286 = vpop.permute.xlu0 %285
      %v288 = vadd.f32 %v280, %v286
      %v289 = vadd.f32 %v281, %v286
      %v290 = vld [vmem:[%s266] sm:$0xff]
      %v291 = vld [vmem:[%s4] sm:$0xff]
      %v292 = vld [vmem:[%s5] sm:$0xff]
      %294 = vset.pattern.permute.xlu0 0
      %295 = vperm.xlu0 %294, %v292
      %v296 = vpop.permute.xlu0 %295
      %v299 = vcombine.high %v290, %v290
      %vm300 = vcmask 31744
      %v302 = vsel %vm300, %v291, 0
      %vm304 = vcmask 1043456
      %v305 = vsel %vm304, %v290, 0
      %v307 = vsel %vm304, %v299, 0
      %309 = vmatprep.subr.mxu0 %v307
      %310 = vmatpush1.msra.mxu0 %v305
      %311 = vmatprep.subr.mxu0 0.0
      %312 = vmatpush1.msra.mxu0 0.0
      %313 = vmatprep.subr.mxu0 0.0
      %314 = vmatpush1.msra.mxu0 0.0
      %315 = vmatprep.subr.mxu0 0.0
      %316 = vmatpush1.msra.mxu0 0.0
      %317 = vmatprep.subr.mxu0 0.0
      %318 = vmatpush1.msra.mxu0 0.0
      %319 = vmatprep.subr.mxu0 0.0
      %320 = vmatpush1.msra.mxu0 0.0
      %321 = vmatprep.subr.mxu0 0.0
      %322 = vmatpush1.msra.mxu0 0.0
      %323 = vmatprep.subr.mxu0 0.0
      %324 = vmatpush1.msra.mxu0 0.0
      %325 = vmatprep.subr.mxu0 0.0
      %326 = vmatpush1.msra.mxu0 0.0
      %327 = vmatprep.subr.mxu0 0.0
      %328 = vmatpush1.msra.mxu0 0.0
      %329 = vmatprep.subr.mxu0 0.0
      %330 = vmatpush1.msra.mxu0 0.0
      %331 = vmatprep.subr.mxu0 0.0
      %332 = vmatpush1.msra.mxu0 0.0
      %333 = vmatprep.subr.mxu0 0.0
      %334 = vmatpush1.msra.mxu0 0.0
      %335 = vmatprep.subr.mxu0 0.0
      %336 = vmatpush1.msra.mxu0 0.0
      %337 = vmatprep.subr.mxu0 0.0
      %338 = vmatpush1.msra.mxu0 0.0
      %339 = vmatprep.subr.mxu0 0.0
      %340 = vmatpush1.msra.mxu0 0.0
      %341 = vmatprep.subr.mxu0 0.0
      %342 = vmatpush1.msra.mxu0 0.0
      %343 = vmatprep.subr.mxu0 0.0
      %344 = vmatpush1.msra.mxu0 0.0
      %345 = vmatprep.subr.mxu0 0.0
      %346 = vmatpush1.msra.mxu0 0.0
      %347 = vmatprep.subr.mxu0 0.0
      %348 = vmatpush1.msra.mxu0 0.0
      %349 = vmatprep.subr.mxu0 0.0
      %350 = vmatpush1.msra.mxu0 0.0
      %351 = vmatprep.subr.mxu0 0.0
      %352 = vmatpush1.msra.mxu0 0.0
      %353 = vmatprep.subr.mxu0 0.0
      %354 = vmatpush1.msra.mxu0 0.0
      %355 = vmatprep.subr.mxu0 0.0
      %356 = vmatpush1.msra.mxu0 0.0
      %357 = vmatprep.subr.mxu0 0.0
      %358 = vmatpush1.msra.mxu0 0.0
      %359 = vmatprep.subr.mxu0 0.0
      %360 = vmatpush1.msra.mxu0 0.0
      %361 = vmatprep.subr.mxu0 0.0
      %362 = vmatpush1.msra.mxu0 0.0
      %363 = vmatprep.subr.mxu0 0.0
      %364 = vmatpush1.msra.mxu0 0.0
      %365 = vmatprep.subr.mxu0 0.0
      %366 = vmatpush1.msra.mxu0 0.0
      %367 = vmatprep.subr.mxu0 0.0
      %368 = vmatpush1.msra.mxu0 0.0
      %369 = vmatprep.subr.mxu0 0.0
      %370 = vmatpush1.msra.mxu0 0.0
      %371 = vmatprep.subr.mxu0 0.0
      %372 = vmatpush1.msra.mxu0 0.0
      %373 = vmatprep.mubr.f32.mxu0 0.0
      %374 = vmatmul.mubr.f32.gmra.mrb[0].mxu0 %v302
      %v375 = vpop.f32.mrb[0].mxu0
      %v376 = vadd.f32 %v296, %v375
      %v377 = vpop.f32.mrb[0].mxu0
      %v378 = vadd.f32 %v296, %v377
      %379 = vdwg.mxu0
      %v380 = vadd.f32 %v288, %v376
      %v381 = vadd.f32 %v289, %v378
      %382 = vst [vmem:[%s271] sm:$0xff] %v380
      %383 = vst [vmem:[%s271 + $0x8] sm:$0xff] %v381
      %p384 = scmp.lt.s32.totalorder %s17, 1
      %s385 = scalar_select %p384, %s17, 1
      %s386 = smul.addr %s385, 2
      %s387 = smul.addr %s386, 8
      %s388 = scalar_lea.vmem %s6, %s387
      // Predicated region
      $region45: #{res_block_forward.5} parent=43 // pred_check
        %p389 = pneg %p171
      $region46: #{res_block_forward.5} parent=43 // pred_check_branch
        %391 = sbr.rel (%p389) target = $region48
      $region47: #{res_block_forward.5} parent=43 // pred_region
        _
      $region48: #{res_block_forward.5} parent=43 // pred_fallthru
        _
    $region44: #{res_block_forward.5} parent=5 // pred_fallthru
      _
    %p392 = scmp.le.s32.totalorder 2, %s12
    // Predicated region
    $region49: #{res_block_forward.5} parent=5 // pred_check
      %p393 = pneg %p392
    $region50: #{res_block_forward.5} parent=5 // pred_check_branch
      %395 = sbr.rel (%p393) target = $region52
    $region51: #{res_block_forward.5} parent=5 // pred_region
      %s396 = ssub.s32 %s12, 2
      // Predicated region
      $region53: #{res_block_forward.5} parent=51 // pred_check
        %p397 = pneg %p177
      $region54: #{res_block_forward.5} parent=51 // pred_check_branch
        %399 = sbr.rel (%p397) target = $region56
      $region55: #{res_block_forward.5} parent=51 // pred_region
        %p400 = scmp.lt.s32.totalorder %s18, 1
        %s401 = scalar_select %p400, %s18, 1
        %s402 = smul.addr %s401, 2
        %s403 = smul.addr %s402, 8
        %s404 = scalar_lea.vmem %s6, %s403
      $region56: #{res_block_forward.5} parent=51 // pred_fallthru
        _
    $region52: #{res_block_forward.5} parent=5 // pred_fallthru
      _
  $region6: #{res_block_forward.5} parent=0 // loop_footer
    %s16 = sadd.s32 1, %s12
  $region7: #{res_block_forward.5} parent=0 // loop_footer_branch
    %11 = sbr.rel target = $region3
  $region8: #{res_block_forward.5} parent=0 // loop_exit
    _

// kernel: res_block_forward.4
$region0: #{res_block_forward.4}
  #allocation0 [shape = 'u32[]', space=smem, size = 0x4, offset = 0x4, fixed_abs, tag = 'smem constant byte address 0x4 - core index']
  #allocation1 [shape = 'u32[144,128]{1,0:T(1,128)}', space=vmem, size = 0x12000, scoped, tag = 'internal scratch']
  #allocation2 [shape = 'f32[8,256]{1,0:T(8,128)}', space=vmem, size = 0x2000, scoped, tag = 'scratch operand']
  %s0 = inlined_call_operand.vmem [shape: f32[2,8,256], index: 0, kind: input, shape index: {}]
  %s1 = inlined_call_operand.vmem [shape: f32[8,1], index: 1, kind: input, shape index: {}]
  %s2 = inlined_call_operand.vmem [shape: f32[8,1], index: 2, kind: input, shape index: {}]
  %s3 = inlined_call_operand.vmem [shape: f32[9,8,8], index: 3, kind: input, shape index: {}]
  %s4 = inlined_call_operand.vmem [shape: f32[8,1], index: 4, kind: input, shape index: {}]
  %s5 = inlined_call_operand.vmem [shape: f32[9,256], index: 5, kind: input, shape index: {}]
  %s6 = inlined_call_operand.vmem [shape: f32[2,8,256], index: 6, kind: output, shape index: {0}]
  %s7 = inlined_call_operand.vmem [shape: f32[2,8,1], index: 7, kind: output, shape index: {1}]
  %s8 = inlined_call_operand.vmem [shape: f32[2,8,1], index: 8, kind: output, shape index: {2}]
  %9 = xla_tuple %s6, %s7, %s8
  %s10 = sld [smem:[#allocation0]]
  $region73: #{res_block_forward.4} parent=0
    _
  %s12 = ssub.s32 1, %s10
  %s13 = scalar_select 0, %s12, %s10
  loop: start=0, step=1, limit=4
  $region2: #{res_block_forward.4} parent=0 // loop_pre_header
    _
  $region3: #{res_block_forward.4} parent=0 // loop_header
    %s15 = sphi 0, %s19
    %p16 = scmp.ge.s32.totalorder %s15, 4
    %s25 = sphi 0, %s27
    %s28 = sphi 0, %s25
    %s29 = sphi 0, %s28
    %s45 = sphi 0, %s29
    %s49 = sphi 0, %s49
    %s51 = sphi 0, %s49
    %s52 = sphi 0, %s51
    %s66 = sphi 0, %s52
    %s70 = sphi 0, %s70
    %s72 = sphi 0, %s70
    %s73 = sphi 0, %s72
    %s87 = sphi 0, %s73
    %s91 = sphi 0, %s91
    %s93 = sphi 0, %s91
    %s94 = sphi 0, %s93
    %s108 = sphi 0, %s94
    %s112 = sphi 0, %s112
    %s114 = sphi 0, %s112
    %s115 = sphi 0, %s114
    %s129 = sphi 0, %s115
    %s133 = sphi 0, %s133
    %s135 = sphi 0, %s133
    %s136 = sphi 0, %s135
    %s150 = sphi 0, %s136
    %s156 = sphi 0, %s158
    %s159 = sphi 0, %s156
    %s160 = sphi 0, %s159
    %s176 = sphi 0, %s160
    %s182 = sphi 0, %s184
    %s185 = sphi 0, %s182
    %s186 = sphi 0, %s185
    %s202 = sphi 0, %s186
    %s208 = sphi 0, %s210
    %s211 = sphi 0, %s208
    %s212 = sphi 0, %s211
    %s228 = sphi 0, %s212
  $region4: #{res_block_forward.4} parent=0 // loop_header_branch
    %18 = sbr.rel (%p16) target = $region8
  $region5: #{res_block_forward.4} parent=0 // loop_body
    %s20 = ssub.s32 %s15, 1
    %s21 = ssub.s32 %s15, 2
    %s22 = sadd.s32 %s15, 1
    %s23 = ssub.s32 %s15, %s22
    %p24 = scmp.eq.s32.totalorder %s23, 0
    %s26 = sadd.s32 %s25, 1
    %s27 = scalar_select %p24, %s25, %s26
    %p30 = pneg %p24
    %p31 = scmp.eq.s32.totalorder %s15, 1
    %p32 = por %p30, %p31
    %p33 = scmp.ne.s32.totalorder %s25, %s28
    %p34 = scmp.eq.s32.totalorder %s15, 0
    %p35 = por %p33, %p34
    %p36 = scmp.ne.s32.totalorder %s25, %s28
    %p37 = scmp.eq.s32.totalorder %s20, 1
    %p38 = por %p36, %p37
    %p39 = scmp.ne.s32.totalorder %s28, %s29
    %p40 = scmp.eq.s32.totalorder %s20, 0
    %p41 = por %p39, %p40
    %p42 = scmp.ne.s32.totalorder %s28, %s29
    %p43 = scmp.eq.s32.totalorder %s21, 1
    %p44 = por %p42, %p43
    %p46 = scmp.ne.s32.totalorder %s29, %s45
    %p47 = scmp.eq.s32.totalorder %s21, 0
    %p48 = por %p46, %p47
    %s50 = sadd.s32 %s49, 1
    %p53 = scmp.eq.s32.totalorder %s15, 1
    %p54 = scmp.ne.s32.totalorder %s49, %s51
    %p55 = scmp.eq.s32.totalorder %s15, 0
    %p56 = por %p54, %p55
    %p57 = scmp.ne.s32.totalorder %s49, %s51
    %p58 = scmp.eq.s32.totalorder %s20, 1
    %p59 = por %p57, %p58
    %p60 = scmp.ne.s32.totalorder %s51, %s52
    %p61 = scmp.eq.s32.totalorder %s20, 0
    %p62 = por %p60, %p61
    %p63 = scmp.ne.s32.totalorder %s51, %s52
    %p64 = scmp.eq.s32.totalorder %s21, 1
    %p65 = por %p63, %p64
    %p67 = scmp.ne.s32.totalorder %s52, %s66
    %p68 = scmp.eq.s32.totalorder %s21, 0
    %p69 = por %p67, %p68
    %s71 = sadd.s32 %s70, 1
    %p74 = scmp.eq.s32.totalorder %s15, 1
    %p75 = scmp.ne.s32.totalorder %s70, %s72
    %p76 = scmp.eq.s32.totalorder %s15, 0
    %p77 = por %p75, %p76
    %p78 = scmp.ne.s32.totalorder %s70, %s72
    %p79 = scmp.eq.s32.totalorder %s20, 1
    %p80 = por %p78, %p79
    %p81 = scmp.ne.s32.totalorder %s72, %s73
    %p82 = scmp.eq.s32.totalorder %s20, 0
    %p83 = por %p81, %p82
    %p84 = scmp.ne.s32.totalorder %s72, %s73
    %p85 = scmp.eq.s32.totalorder %s21, 1
    %p86 = por %p84, %p85
    %p88 = scmp.ne.s32.totalorder %s73, %s87
    %p89 = scmp.eq.s32.totalorder %s21, 0
    %p90 = por %p88, %p89
    %s92 = sadd.s32 %s91, 1
    %p95 = scmp.eq.s32.totalorder %s15, 1
    %p96 = scmp.ne.s32.totalorder %s91, %s93
    %p97 = scmp.eq.s32.totalorder %s15, 0
    %p98 = por %p96, %p97
    %p99 = scmp.ne.s32.totalorder %s91, %s93
    %p100 = scmp.eq.s32.totalorder %s20, 1
    %p101 = por %p99, %p100
    %p102 = scmp.ne.s32.totalorder %s93, %s94
    %p103 = scmp.eq.s32.totalorder %s20, 0
    %p104 = por %p102, %p103
    %p105 = scmp.ne.s32.totalorder %s93, %s94
    %p106 = scmp.eq.s32.totalorder %s21, 1
    %p107 = por %p105, %p106
    %p109 = scmp.ne.s32.totalorder %s94, %s108
    %p110 = scmp.eq.s32.totalorder %s21, 0
    %p111 = por %p109, %p110
    %s113 = sadd.s32 %s112, 1
    %p116 = scmp.eq.s32.totalorder %s15, 1
    %p117 = scmp.ne.s32.totalorder %s112, %s114
    %p118 = scmp.eq.s32.totalorder %s15, 0
    %p119 = por %p117, %p118
    %p120 = scmp.ne.s32.totalorder %s112, %s114
    %p121 = scmp.eq.s32.totalorder %s20, 1
    %p122 = por %p120, %p121
    %p123 = scmp.ne.s32.totalorder %s114, %s115
    %p124 = scmp.eq.s32.totalorder %s20, 0
    %p125 = por %p123, %p124
    %p126 = scmp.ne.s32.totalorder %s114, %s115
    %p127 = scmp.eq.s32.totalorder %s21, 1
    %p128 = por %p126, %p127
    %p130 = scmp.ne.s32.totalorder %s115, %s129
    %p131 = scmp.eq.s32.totalorder %s21, 0
    %p132 = por %p130, %p131
    %s134 = sadd.s32 %s133, 1
    %p137 = scmp.eq.s32.totalorder %s15, 1
    %p138 = scmp.ne.s32.totalorder %s133, %s135
    %p139 = scmp.eq.s32.totalorder %s15, 0
    %p140 = por %p138, %p139
    %p141 = scmp.ne.s32.totalorder %s133, %s135
    %p142 = scmp.eq.s32.totalorder %s20, 1
    %p143 = por %p141, %p142
    %p144 = scmp.ne.s32.totalorder %s135, %s136
    %p145 = scmp.eq.s32.totalorder %s20, 0
    %p146 = por %p144, %p145
    %p147 = scmp.ne.s32.totalorder %s135, %s136
    %p148 = scmp.eq.s32.totalorder %s21, 1
    %p149 = por %p147, %p148
    %p151 = scmp.ne.s32.totalorder %s136, %s150
    %p152 = scmp.eq.s32.totalorder %s21, 0
    %p153 = por %p151, %p152
    %s154 = ssub.s32 %s15, %s22
    %p155 = scmp.eq.s32.totalorder %s154, 0
    %s157 = sadd.s32 %s156, 1
    %s158 = scalar_select %p155, %s156, %s157
    %p161 = pneg %p155
    %p162 = scmp.eq.s32.totalorder %s15, 1
    %p163 = por %p161, %p162
    %p164 = scmp.ne.s32.totalorder %s156, %s159
    %p165 = scmp.eq.s32.totalorder %s15, 0
    %p166 = por %p164, %p165
    %p167 = scmp.ne.s32.totalorder %s156, %s159
    %p168 = scmp.eq.s32.totalorder %s20, 1
    %p169 = por %p167, %p168
    %p170 = scmp.ne.s32.totalorder %s159, %s160
    %p171 = scmp.eq.s32.totalorder %s20, 0
    %p172 = por %p170, %p171
    %p173 = scmp.ne.s32.totalorder %s159, %s160
    %p174 = scmp.eq.s32.totalorder %s21, 1
    %p175 = por %p173, %p174
    %p177 = scmp.ne.s32.totalorder %s160, %s176
    %p178 = scmp.eq.s32.totalorder %s21, 0
    %p179 = por %p177, %p178
    %s180 = ssub.s32 %s15, %s22
    %p181 = scmp.eq.s32.totalorder %s180, 0
    %s183 = sadd.s32 %s182, 1
    %s184 = scalar_select %p181, %s182, %s183
    %p187 = pneg %p181
    %p188 = scmp.eq.s32.totalorder %s15, 1
    %p189 = por %p187, %p188
    %p190 = scmp.ne.s32.totalorder %s182, %s185
    %p191 = scmp.eq.s32.totalorder %s15, 0
    %p192 = por %p190, %p191
    %p193 = scmp.ne.s32.totalorder %s182, %s185
    %p194 = scmp.eq.s32.totalorder %s20, 1
    %p195 = por %p193, %p194
    %p196 = scmp.ne.s32.totalorder %s185, %s186
    %p197 = scmp.eq.s32.totalorder %s20, 0
    %p198 = por %p196, %p197
    %p199 = scmp.ne.s32.totalorder %s185, %s186
    %p200 = scmp.eq.s32.totalorder %s21, 1
    %p201 = por %p199, %p200
    %p203 = scmp.ne.s32.totalorder %s186, %s202
    %p204 = scmp.eq.s32.totalorder %s21, 0
    %p205 = por %p203, %p204
    %s206 = ssub.s32 %s15, %s22
    %p207 = scmp.eq.s32.totalorder %s206, 0
    %s209 = sadd.s32 %s208, 1
    %s210 = scalar_select %p207, %s208, %s209
    %p213 = pneg %p207
    %p214 = scmp.eq.s32.totalorder %s15, 1
    %p215 = por %p213, %p214
    %p216 = scmp.ne.s32.totalorder %s208, %s211
    %p217 = scmp.eq.s32.totalorder %s15, 0
    %p218 = por %p216, %p217
    %p219 = scmp.ne.s32.totalorder %s208, %s211
    %p220 = scmp.eq.s32.totalorder %s20, 1
    %p221 = por %p219, %p220
    %p222 = scmp.ne.s32.totalorder %s211, %s212
    %p223 = scmp.eq.s32.totalorder %s20, 0
    %p224 = por %p222, %p223
    %p225 = scmp.ne.s32.totalorder %s211, %s212
    %p226 = scmp.eq.s32.totalorder %s21, 1
    %p227 = por %p225, %p226
    %p229 = scmp.ne.s32.totalorder %s212, %s228
    %p230 = scmp.eq.s32.totalorder %s21, 0
    %p231 = por %p229, %p230
    %p232 = scmp.le.s32.totalorder 1, %s15
    %p233 = scmp.lt.s32.totalorder %s15, 3
    %p234 = pnand %p232, %p233
    %p235 = pneg %p234
    // Predicated region
    $region9: #{res_block_forward.4} parent=5 // pred_check
      _
    $region10: #{res_block_forward.4} parent=5 // pred_check_branch
      %237 = sbr.rel (%p234) target = $region12
    $region11: #{res_block_forward.4} parent=5 // pred_region
      %s238 = ssub.s32 %s15, 1
      // Predicated region
      $region13: #{res_block_forward.4} parent=11 // pred_check
        %p239 = pneg %p62
      $region14: #{res_block_forward.4} parent=11 // pred_check_branch
        %241 = sbr.rel (%p239) target = $region16
      $region15: #{res_block_forward.4} parent=11 // pred_region
        _
      $region16: #{res_block_forward.4} parent=11 // pred_fallthru
        _
      // Predicated region
      $region17: #{res_block_forward.4} parent=11 // pred_check
        %p242 = pneg %p83
      $region18: #{res_block_forward.4} parent=11 // pred_check_branch
        %244 = sbr.rel (%p242) target = $region20
      $region19: #{res_block_forward.4} parent=11 // pred_region
        _
      $region20: #{res_block_forward.4} parent=11 // pred_fallthru
        _
      // Predicated region
      $region21: #{res_block_forward.4} parent=11 // pred_check
        %p245 = pneg %p104
      $region22: #{res_block_forward.4} parent=11 // pred_check_branch
        %247 = sbr.rel (%p245) target = $region24
      $region23: #{res_block_forward.4} parent=11 // pred_region
        _
      $region24: #{res_block_forward.4} parent=11 // pred_fallthru
        _
      // Predicated region
      $region25: #{res_block_forward.4} parent=11 // pred_check
        %p248 = pneg %p125
      $region26: #{res_block_forward.4} parent=11 // pred_check_branch
        %250 = sbr.rel (%p248) target = $region28
      $region27: #{res_block_forward.4} parent=11 // pred_region
        _
      $region28: #{res_block_forward.4} parent=11 // pred_fallthru
        _
      // Predicated region
      $region29: #{res_block_forward.4} parent=11 // pred_check
        %p251 = pneg %p146
      $region30: #{res_block_forward.4} parent=11 // pred_check_branch
        %253 = sbr.rel (%p251) target = $region32
      $region31: #{res_block_forward.4} parent=11 // pred_region
        _
      $region32: #{res_block_forward.4} parent=11 // pred_fallthru
        _
    $region12: #{res_block_forward.4} parent=5 // pred_fallthru
      _
    %p254 = scmp.lt.s32.totalorder %s15, 2
    // Predicated region
    $region33: #{res_block_forward.4} parent=5 // pred_check
      %p255 = pneg %p254
    $region34: #{res_block_forward.4} parent=5 // pred_check_branch
      %257 = sbr.rel (%p255) target = $region36
    $region35: #{res_block_forward.4} parent=5 // pred_region
      // Predicated region
      $region37: #{res_block_forward.4} parent=35 // pred_check
        %p258 = pneg %p35
      $region38: #{res_block_forward.4} parent=35 // pred_check_branch
        %260 = sbr.rel (%p258) target = $region40
      $region39: #{res_block_forward.4} parent=35 // pred_region
        %p261 = scmp.lt.s32.totalorder %s15, 1
        %s262 = scalar_select %p261, %s15, 1
        %s263 = smul.addr %s262, 2
        %s264 = smul.addr %s263, 8
        %s265 = scalar_lea.vmem %s0, %s264
      $region40: #{res_block_forward.4} parent=35 // pred_fallthru
        _
    $region36: #{res_block_forward.4} parent=5 // pred_fallthru
      _
    %p266 = scmp.le.s32.totalorder 1, %s15
    %p267 = scmp.lt.s32.totalorder %s15, 3
    %p268 = pnand %p266, %p267
    %p269 = pneg %p268
    // Predicated region
    $region41: #{res_block_forward.4} parent=5 // pred_check
      _
    $region42: #{res_block_forward.4} parent=5 // pred_check_branch
      %271 = sbr.rel (%p268) target = $region44
    $region43: #{res_block_forward.4} parent=5 // pred_region
      %s272 = ssub.s32 %s15, 1
      %p273 = scmp.lt.s32.totalorder %s20, 1
      %s274 = scalar_select %p273, %s20, 1
      %s275 = smul.addr %s274, 2
      %s276 = smul.addr %s275, 8
      %s277 = scalar_lea.vmem %s0, %s276
      %p278 = pneg %p41
      %p279 = pneg %p38
      %p280 = pneg %p62
      %p281 = pneg %p59
      %p282 = pneg %p83
      %p283 = pneg %p80
      %p284 = pneg %p104
      %p285 = pneg %p101
      %p286 = pneg %p125
      %p287 = pneg %p122
      %p288 = pneg %p146
      %p289 = pneg %p143
      %p290 = pneg %p172
      %p291 = pneg %p169
      %p292 = scmp.lt.s32.totalorder %s20, 1
      %s293 = scalar_select %p292, %s20, 1
      %s294 = smul.addr %s293, 2
      %s295 = smul.addr %s294, 8
      %s296 = scalar_lea.vmem %s6, %s295
      %p297 = pneg %p198
      %p298 = pneg %p195
      %p299 = scmp.lt.s32.totalorder %s20, 1
      %s300 = scalar_select %p299, %s20, 1
      %s301 = smul.addr %s300, 8
      %s302 = scalar_lea.vmem %s7, %s301
      %p303 = pneg %p224
      %p304 = pneg %p221
      %p305 = scmp.lt.s32.totalorder %s20, 1
      %s306 = scalar_select %p305, %s20, 1
      %s307 = smul.addr %s306, 8
      %s308 = scalar_lea.vmem %s8, %s307
      %p309 = scmp.lt.s32.totalorder %s20, 1
      %s310 = scalar_select %p309, %s20, 1
      %s311 = smul.addr %s310, 2
      %s312 = smul.addr %s311, 8
      %s313 = scalar_lea.vmem %s0, %s312
      %p314 = scmp.lt.s32.totalorder %s20, 1
      %s315 = scalar_select %p314, %s20, 1
      %s316 = smul.addr %s315, 2
      %s317 = smul.addr %s316, 8
      %s318 = scalar_lea.vmem %s6, %s317
      %p319 = scmp.lt.s32.totalorder %s20, 1
      %s320 = scalar_select %p319, %s20, 1
      %s321 = smul.addr %s320, 8
      %s322 = scalar_lea.vmem %s7, %s321
      %p323 = scmp.lt.s32.totalorder %s20, 1
      %s324 = scalar_select %p323, %s20, 1
      %s325 = smul.addr %s324, 8
      %s326 = scalar_lea.vmem %s8, %s325
      %v327 = vld [vmem:[%s313] sm:$0xff]
      %v328 = vld [vmem:[%s313 + $0x8] sm:$0xff]
      %v329 = vld [vmem:[%s1] sm:$0xff]
      %331 = vset.pattern.permute.xlu0 0
      %332 = vperm.xlu0 %331, %v329
      %v333 = vpop.permute.xlu0 %332
      %v335 = vmul.f32 %v327, %v333
      %v336 = vmul.f32 %v328, %v333
      %v337 = vld [vmem:[%s2] sm:$0xff]
      %339 = vset.pattern.permute.xlu0 0
      %340 = vperm.xlu0 %339, %v337
      %v341 = vpop.permute.xlu0 %340
      %v343 = vadd.f32 %v335, %v341
      %v344 = vadd.f32 %v336, %v341
      %v345 = vmax.f32 %v343, 0.0
      %v346 = vmax.f32 %v344, 0.0
      %347 = vrot.lane.b32.xlu0 %v345, 17
      %v348 = vpop.permute.xlu0 %347
      %349 = vrot.lane.b32.xlu0 %v346, 17
      %v350 = vpop.permute.xlu0 %349
      %v351 = vlaneseq
      %v352 = vand.u32 %v351, 127
      %vm353 = vcmp.lt.s32.totalorder %v352, 17
      %v354 = vsel %vm353, %v348, %v350
      %v355 = vsel %vm353, %v350, %v348
      %v356 = vld [vmem:[%s5] ss:$8 sm:$0x3]
      %v358 = vlaneseq
      %v359 = vshrl.u32 %v358, 7
      %v360 = vsub.s32 0, %v359
      %v361 = vrot.slane %v356, %v360
      %v362 = vlaneseq
      %v363 = vshrl.u32 %v362, 7
      %v364 = vsub.s32 1, %v363
      %v365 = vrot.slane %v356, %v364
      %v368 = vmul.f32 %v355, %v361
      %v369 = vmul.f32 %v354, %v365
      %v370 = vld [vmem:[%s3] sm:$0xff]
      %vm371 = vcmask 64512
      %v373 = vsel %vm371, %v370, 0
      %375 = vmatprep.subr.mxu0 %v369
      %376 = vmatpush1.msra.mxu0 %v368
      %377 = vmatprep.subr.mxu0 0.0
      %378 = vmatpush1.msra.mxu0 0.0
      %379 = vmatprep.subr.mxu0 0.0
      %380 = vmatpush1.msra.mxu0 0.0
      %381 = vmatprep.subr.mxu0 0.0
      %382 = vmatpush1.msra.mxu0 0.0
      %383 = vmatprep.subr.mxu0 0.0
      %384 = vmatpush1.msra.mxu0 0.0
      %385 = vmatprep.subr.mxu0 0.0
      %386 = vmatpush1.msra.mxu0 0.0
      %387 = vmatprep.subr.mxu0 0.0
      %388 = vmatpush1.msra.mxu0 0.0
      %389 = vmatprep.subr.mxu0 0.0
      %390 = vmatpush1.msra.mxu0 0.0
      %391 = vmatprep.subr.mxu0 0.0
      %392 = vmatpush1.msra.mxu0 0.0
      %393 = vmatprep.subr.mxu0 0.0
      %394 = vmatpush1.msra.mxu0 0.0
      %395 = vmatprep.subr.mxu0 0.0
      %396 = vmatpush1.msra.mxu0 0.0
      %397 = vmatprep.subr.mxu0 0.0
      %398 = vmatpush1.msra.mxu0 0.0
      %399 = vmatprep.subr.mxu0 0.0
      %400 = vmatpush1.msra.mxu0 0.0
      %401 = vmatprep.subr.mxu0 0.0
      %402 = vmatpush1.msra.mxu0 0.0
      %403 = vmatprep.subr.mxu0 0.0
      %404 = vmatpush1.msra.mxu0 0.0
      %405 = vmatprep.subr.mxu0 0.0
      %406 = vmatpush1.msra.mxu0 0.0
      %407 = vmatprep.subr.mxu0 0.0
      %408 = vmatpush1.msra.mxu0 0.0
      %409 = vmatprep.subr.mxu0 0.0
      %410 = vmatpush1.msra.mxu0 0.0
      %411 = vmatprep.subr.mxu0 0.0
      %412 = vmatpush1.msra.mxu0 0.0
      %413 = vmatprep.subr.mxu0 0.0
      %414 = vmatpush1.msra.mxu0 0.0
      %415 = vmatprep.subr.mxu0 0.0
      %416 = vmatpush1.msra.mxu0 0.0
      %417 = vmatprep.subr.mxu0 0.0
      %418 = vmatpush1.msra.mxu0 0.0
      %419 = vmatprep.subr.mxu0 0.0
      %420 = vmatpush1.msra.mxu0 0.0
      %421 = vmatprep.subr.mxu0 0.0
      %422 = vmatpush1.msra.mxu0 0.0
      %423 = vmatprep.subr.mxu0 0.0
      %424 = vmatpush1.msra.mxu0 0.0
      %425 = vmatprep.subr.mxu0 0.0
      %426 = vmatpush1.msra.mxu0 0.0
      %427 = vmatprep.subr.mxu0 0.0
      %428 = vmatpush1.msra.mxu0 0.0
      %429 = vmatprep.subr.mxu0 0.0
      %430 = vmatpush1.msra.mxu0 0.0
      %431 = vmatprep.subr.mxu0 0.0
      %432 = vmatpush1.msra.mxu0 0.0
      %433 = vmatprep.subr.mxu0 0.0
      %434 = vmatpush1.msra.mxu0 0.0
      %435 = vmatprep.subr.mxu0 0.0
      %436 = vmatpush1.msra.mxu0 0.0
      %437 = vmatprep.subr.mxu0 0.0
      %438 = vmatpush1.msra.mxu0 0.0
      %439 = vmatprep.mubr.f32.mxu0 0.0
      %440 = vmatmul.mubr.f32.gmra.mrb[0].mxu0 %v373
      %v441 = vpop.f32.mrb[0].mxu0
      %v442 = vadd.f32 0.0, %v441
      %v443 = vpop.f32.mrb[0].mxu0
      %v444 = vadd.f32 0.0, %v443
      %445 = vdwg.mxu0
      %446 = vst [vmem:[#allocation2] sm:$0xff] %v442
      %447 = vst [vmem:[#allocation2 + $0x8] sm:$0xff] %v444
      %448 = vrot.lane.b32.xlu0 %v345, 16
      %v449 = vpop.permute.xlu0 %448
      %450 = vrot.lane.b32.xlu0 %v346, 16
      %v451 = vpop.permute.xlu0 %450
      %vm452 = vcmp.lt.s32.totalorder %v352, 16
      %v453 = vsel %vm452, %v449, %v451
      %v454 = vsel %vm452, %v451, %v449
      %s455 = scalar_lea.vmem %s5, 1
      %v456 = vld [vmem:[%s455] ss:$8 sm:$0x3]
      %v458 = vlaneseq
      %v459 = vshrl.u32 %v458, 7
      %v460 = vsub.s32 0, %v459
      %v461 = vrot.slane %v456, %v460
      %v462 = vlaneseq
      %v463 = vshrl.u32 %v462, 7
      %v464 = vsub.s32 1, %v463
      %v465 = vrot.slane %v456, %v464
      %v468 = vmul.f32 %v454, %v461
      %v469 = vmul.f32 %v453, %v465
      %s470 = scalar_lea.vmem %s3, 8
      %v471 = vld [vmem:[%s470] sm:$0xff]
      %v473 = vsel %vm371, %v471, 0
      %475 = vmatprep.subr.mxu0 %v469
      %476 = vmatpush1.msra.mxu0 %v468
      %477 = vmatprep.subr.mxu0 0.0
      %478 = vmatpush1.msra.mxu0 0.0
      %479 = vmatprep.subr.mxu0 0.0
      %480 = vmatpush1.msra.mxu0 0.0
      %481 = vmatprep.subr.mxu0 0.0
      %482 = vmatpush1.msra.mxu0 0.0
      %483 = vmatprep.subr.mxu0 0.0
      %484 = vmatpush1.msra.mxu0 0.0
      %485 = vmatprep.subr.mxu0 0.0
      %486 = vmatpush1.msra.mxu0 0.0
      %487 = vmatprep.subr.mxu0 0.0
      %488 = vmatpush1.msra.mxu0 0.0
      %489 = vmatprep.subr.mxu0 0.0
      %490 = vmatpush1.msra.mxu0 0.0
      %491 = vmatprep.subr.mxu0 0.0
      %492 = vmatpush1.msra.mxu0 0.0
      %493 = vmatprep.subr.mxu0 0.0
      %494 = vmatpush1.msra.mxu0 0.0
      %495 = vmatprep.subr.mxu0 0.0
      %496 = vmatpush1.msra.mxu0 0.0
      %497 = vmatprep.subr.mxu0 0.0
      %498 = vmatpush1.msra.mxu0 0.0
      %499 = vmatprep.subr.mxu0 0.0
      %500 = vmatpush1.msra.mxu0 0.0
      %501 = vmatprep.subr.mxu0 0.0
      %502 = vmatpush1.msra.mxu0 0.0
      %503 = vmatprep.subr.mxu0 0.0
      %504 = vmatpush1.msra.mxu0 0.0
      %505 = vmatprep.subr.mxu0 0.0
      %506 = vmatpush1.msra.mxu0 0.0
      %507 = vmatprep.subr.mxu0 0.0
      %508 = vmatpush1.msra.mxu0 0.0
      %509 = vmatprep.subr.mxu0 0.0
      %510 = vmatpush1.msra.mxu0 0.0
      %511 = vmatprep.subr.mxu0 0.0
      %512 = vmatpush1.msra.mxu0 0.0
      %513 = vmatprep.subr.mxu0 0.0
      %514 = vmatpush1.msra.mxu0 0.0
      %515 = vmatprep.subr.mxu0 0.0
      %516 = vmatpush1.msra.mxu0 0.0
      %517 = vmatprep.subr.mxu0 0.0
      %518 = vmatpush1.msra.mxu0 0.0
      %519 = vmatprep.subr.mxu0 0.0
      %520 = vmatpush1.msra.mxu0 0.0
      %521 = vmatprep.subr.mxu0 0.0
      %522 = vmatpush1.msra.mxu0 0.0
      %523 = vmatprep.subr.mxu0 0.0
      %524 = vmatpush1.msra.mxu0 0.0
      %525 = vmatprep.subr.mxu0 0.0
      %526 = vmatpush1.msra.mxu0 0.0
      %527 = vmatprep.subr.mxu0 0.0
      %528 = vmatpush1.msra.mxu0 0.0
      %529 = vmatprep.subr.mxu0 0.0
      %530 = vmatpush1.msra.mxu0 0.0
      %531 = vmatprep.subr.mxu0 0.0
      %532 = vmatpush1.msra.mxu0 0.0
      %533 = vmatprep.subr.mxu0 0.0
      %534 = vmatpush1.msra.mxu0 0.0
      %535 = vmatprep.subr.mxu0 0.0
      %536 = vmatpush1.msra.mxu0 0.0
      %537 = vmatprep.subr.mxu0 0.0
      %538 = vmatpush1.msra.mxu0 0.0
      %539 = vmatprep.mubr.f32.mxu0 0.0
      %540 = vmatmul.mubr.f32.gmra.mrb[0].mxu0 %v473
      %v541 = vpop.f32.mrb[0].mxu0
      %v542 = vadd.f32 0.0, %v541
      %v543 = vpop.f32.mrb[0].mxu0
      %v544 = vadd.f32 0.0, %v543
      %545 = vdwg.mxu0
      %v546 = vld [vmem:[#allocation2] sm:$0xff]
      %v547 = vld [vmem:[#allocation2 + $0x8] sm:$0xff]
      %v548 = vadd.f32 %v546, %v542
      %v549 = vadd.f32 %v547, %v544
      %550 = vst [vmem:[#allocation2] sm:$0xff] %v548
      %551 = vst [vmem:[#allocation2 + $0x8] sm:$0xff] %v549
      %552 = vrot.lane.b32.xlu0 %v345, 15
      %v553 = vpop.permute.xlu0 %552
      %554 = vrot.lane.b32.xlu0 %v346, 15
      %v555 = vpop.permute.xlu0 %554
      %vm556 = vcmp.lt.s32.totalorder %v352, 15
      %v557 = vsel %vm556, %v553, %v555
      %v558 = vsel %vm556, %v555, %v553
      %s559 = scalar_lea.vmem %s5, 2
      %v560 = vld [vmem:[%s559] ss:$8 sm:$0x3]
      %v562 = vlaneseq
      %v563 = vshrl.u32 %v562, 7
      %v564 = vsub.s32 0, %v563
      %v565 = vrot.slane %v560, %v564
      %v566 = vlaneseq
      %v567 = vshrl.u32 %v566, 7
      %v568 = vsub.s32 1, %v567
      %v569 = vrot.slane %v560, %v568
      %v572 = vmul.f32 %v558, %v565
      %v573 = vmul.f32 %v557, %v569
      %s574 = scalar_lea.vmem %s3, 16
      %v575 = vld [vmem:[%s574] sm:$0xff]
      %v577 = vsel %vm371, %v575, 0
      %579 = vmatprep.subr.mxu0 %v573
      %580 = vmatpush1.msra.mxu0 %v572
      %581 = vmatprep.subr.mxu0 0.0
      %582 = vmatpush1.msra.mxu0 0.0
      %583 = vmatprep.subr.mxu0 0.0
      %584 = vmatpush1.msra.mxu0 0.0
      %585 = vmatprep.subr.mxu0 0.0
      %586 = vmatpush1.msra.mxu0 0.0
      %587 = vmatprep.subr.mxu0 0.0
      %588 = vmatpush1.msra.mxu0 0.0
      %589 = vmatprep.subr.mxu0 0.0
      %590 = vmatpush1.msra.mxu0 0.0
      %591 = vmatprep.subr.mxu0 0.0
      %592 = vmatpush1.msra.mxu0 0.0
      %593 = vmatprep.subr.mxu0 0.0
      %594 = vmatpush1.msra.mxu0 0.0
      %595 = vmatprep.subr.mxu0 0.0
      %596 = vmatpush1.msra.mxu0 0.0
      %597 = vmatprep.subr.mxu0 0.0
      %598 = vmatpush1.msra.mxu0 0.0
      %599 = vmatprep.subr.mxu0 0.0
      %600 = vmatpush1.msra.mxu0 0.0
      %601 = vmatprep.subr.mxu0 0.0
      %602 = vmatpush1.msra.mxu0 0.0
      %603 = vmatprep.subr.mxu0 0.0
      %604 = vmatpush1.msra.mxu0 0.0
      %605 = vmatprep.subr.mxu0 0.0
      %606 = vmatpush1.msra.mxu0 0.0
      %607 = vmatprep.subr.mxu0 0.0
      %608 = vmatpush1.msra.mxu0 0.0
      %609 = vmatprep.subr.mxu0 0.0
      %610 = vmatpush1.msra.mxu0 0.0
      %611 = vmatprep.subr.mxu0 0.0
      %612 = vmatpush1.msra.mxu0 0.0
      %613 = vmatprep.subr.mxu0 0.0
      %614 = vmatpush1.msra.mxu0 0.0
      %615 = vmatprep.subr.mxu0 0.0
      %616 = vmatpush1.msra.mxu0 0.0
      %617 = vmatprep.subr.mxu0 0.0
      %618 = vmatpush1.msra.mxu0 0.0
      %619 = vmatprep.subr.mxu0 0.0
      %620 = vmatpush1.msra.mxu0 0.0
      %621 = vmatprep.subr.mxu0 0.0
      %622 = vmatpush1.msra.mxu0 0.0
      %623 = vmatprep.subr.mxu0 0.0
      %624 = vmatpush1.msra.mxu0 0.0
      %625 = vmatprep.subr.mxu0 0.0
      %626 = vmatpush1.msra.mxu0 0.0
      %627 = vmatprep.subr.mxu0 0.0
      %628 = vmatpush1.msra.mxu0 0.0
      %629 = vmatprep.subr.mxu0 0.0
      %630 = vmatpush1.msra.mxu0 0.0
      %631 = vmatprep.subr.mxu0 0.0
      %632 = vmatpush1.msra.mxu0 0.0
      %633 = vmatprep.subr.mxu0 0.0
      %634 = vmatpush1.msra.mxu0 0.0
      %635 = vmatprep.subr.mxu0 0.0
      %636 = vmatpush1.msra.mxu0 0.0
      %637 = vmatprep.subr.mxu0 0.0
      %638 = vmatpush1.msra.mxu0 0.0
      %639 = vmatprep.subr.mxu0 0.0
      %640 = vmatpush1.msra.mxu0 0.0
      %641 = vmatprep.subr.mxu0 0.0
      %642 = vmatpush1.msra.mxu0 0.0
      %643 = vmatprep.mubr.f32.mxu0 0.0
      %644 = vmatmul.mubr.f32.gmra.mrb[0].mxu0 %v577
      %v645 = vpop.f32.mrb[0].mxu0
      %v646 = vadd.f32 0.0, %v645
      %v647 = vpop.f32.mrb[0].mxu0
      %v648 = vadd.f32 0.0, %v647
      %649 = vdwg.mxu0
      %v650 = vld [vmem:[#allocation2] sm:$0xff]
      %v651 = vld [vmem:[#allocation2 + $0x8] sm:$0xff]
      %v652 = vadd.f32 %v650, %v646
      %v653 = vadd.f32 %v651, %v648
      %654 = vst [vmem:[#allocation2] sm:$0xff] %v652
      %655 = vst [vmem:[#allocation2 + $0x8] sm:$0xff] %v653
      %656 = vrot.lane.b32.xlu0 %v345, 1
      %v657 = vpop.permute.xlu0 %656
      %658 = vrot.lane.b32.xlu0 %v346, 1
      %v659 = vpop.permute.xlu0 %658
      %vm660 = vcmp.lt.s32.totalorder %v352, 1
      %v661 = vsel %vm660, %v657, %v659
      %v662 = vsel %vm660, %v659, %v657
      %s663 = scalar_lea.vmem %s5, 3
      %v664 = vld [vmem:[%s663] ss:$8 sm:$0x3]
      %v666 = vlaneseq
      %v667 = vshrl.u32 %v666, 7
      %v668 = vsub.s32 0, %v667
      %v669 = vrot.slane %v664, %v668
      %v670 = vlaneseq
      %v671 = vshrl.u32 %v670, 7
      %v672 = vsub.s32 1, %v671
      %v673 = vrot.slane %v664, %v672
      %v676 = vmul.f32 %v662, %v669
      %v677 = vmul.f32 %v661, %v673
      %s678 = scalar_lea.vmem %s3, 24
      %v679 = vld [vmem:[%s678] sm:$0xff]
      %v681 = vsel %vm371, %v679, 0
      %683 = vmatprep.subr.mxu0 %v677
      %684 = vmatpush1.msra.mxu0 %v676
      %685 = vmatprep.subr.mxu0 0.0
      %686 = vmatpush1.msra.mxu0 0.0
      %687 = vmatprep.subr.mxu0 0.0
      %688 = vmatpush1.msra.mxu0 0.0
      %689 = vmatprep.subr.mxu0 0.0
      %690 = vmatpush1.msra.mxu0 0.0
      %691 = vmatprep.subr.mxu0 0.0
      %692 = vmatpush1.msra.mxu0 0.0
      %693 = vmatprep.subr.mxu0 0.0
      %694 = vmatpush1.msra.mxu0 0.0
      %695 = vmatprep.subr.mxu0 0.0
      %696 = vmatpush1.msra.mxu0 0.0
      %697 = vmatprep.subr.mxu0 0.0
      %698 = vmatpush1.msra.mxu0 0.0
      %699 = vmatprep.subr.mxu0 0.0
      %700 = vmatpush1.msra.mxu0 0.0
      %701 = vmatprep.subr.mxu0 0.0
      %702 = vmatpush1.msra.mxu0 0.0
      %703 = vmatprep.subr.mxu0 0.0
      %704 = vmatpush1.msra.mxu0 0.0
      %705 = vmatprep.subr.mxu0 0.0
      %706 = vmatpush1.msra.mxu0 0.0
      %707 = vmatprep.subr.mxu0 0.0
      %708 = vmatpush1.msra.mxu0 0.0
      %709 = vmatprep.subr.mxu0 0.0
      %710 = vmatpush1.msra.mxu0 0.0
      %711 = vmatprep.subr.mxu0 0.0
      %712 = vmatpush1.msra.mxu0 0.0
      %713 = vmatprep.subr.mxu0 0.0
      %714 = vmatpush1.msra.mxu0 0.0
      %715 = vmatprep.subr.mxu0 0.0
      %716 = vmatpush1.msra.mxu0 0.0
      %717 = vmatprep.subr.mxu0 0.0
      %718 = vmatpush1.msra.mxu0 0.0
      %719 = vmatprep.subr.mxu0 0.0
      %720 = vmatpush1.msra.mxu0 0.0
      %721 = vmatprep.subr.mxu0 0.0
      %722 = vmatpush1.msra.mxu0 0.0
      %723 = vmatprep.subr.mxu0 0.0
      %724 = vmatpush1.msra.mxu0 0.0
      %725 = vmatprep.subr.mxu0 0.0
      %726 = vmatpush1.msra.mxu0 0.0
      %727 = vmatprep.subr.mxu0 0.0
      %728 = vmatpush1.msra.mxu0 0.0
      %729 = vmatprep.subr.mxu0 0.0
      %730 = vmatpush1.msra.mxu0 0.0
      %731 = vmatprep.subr.mxu0 0.0
      %732 = vmatpush1.msra.mxu0 0.0
      %733 = vmatprep.subr.mxu0 0.0
      %734 = vmatpush1.msra.mxu0 0.0
      %735 = vmatprep.subr.mxu0 0.0
      %736 = vmatpush1.msra.mxu0 0.0
      %737 = vmatprep.subr.mxu0 0.0
      %738 = vmatpush1.msra.mxu0 0.0
      %739 = vmatprep.subr.mxu0 0.0
      %740 = vmatpush1.msra.mxu0 0.0
      %741 = vmatprep.subr.mxu0 0.0
      %742 = vmatpush1.msra.mxu0 0.0
      %743 = vmatprep.subr.mxu0 0.0
      %744 = vmatpush1.msra.mxu0 0.0
      %745 = vmatprep.subr.mxu0 0.0
      %746 = vmatpush1.msra.mxu0 0.0
      %747 = vmatprep.mubr.f32.mxu0 0.0
      %748 = vmatmul.mubr.f32.gmra.mrb[0].mxu0 %v681
      %v749 = vpop.f32.mrb[0].mxu0
      %v750 = vadd.f32 0.0, %v749
      %v751 = vpop.f32.mrb[0].mxu0
      %v752 = vadd.f32 0.0, %v751
      %753 = vdwg.mxu0
      %v754 = vld [vmem:[#allocation2] sm:$0xff]
      %v755 = vld [vmem:[#allocation2 + $0x8] sm:$0xff]
      %v756 = vadd.f32 %v754, %v750
      %v757 = vadd.f32 %v755, %v752
      %758 = vst [vmem:[#allocation2] sm:$0xff] %v756
      %759 = vst [vmem:[#allocation2 + $0x8] sm:$0xff] %v757
      %s760 = scalar_lea.vmem %s5, 4
      %v761 = vld [vmem:[%s760] ss:$8 sm:$0x3]
      %v763 = vlaneseq
      %v764 = vshrl.u32 %v763, 7
      %v765 = vsub.s32 0, %v764
      %v766 = vrot.slane %v761, %v765
      %v767 = vlaneseq
      %v768 = vshrl.u32 %v767, 7
      %v769 = vsub.s32 1, %v768
      %v770 = vrot.slane %v761, %v769
      %v773 = vmul.f32 %v345, %v766
      %v774 = vmul.f32 %v346, %v770
      %s775 = scalar_lea.vmem %s3, 32
      %v776 = vld [vmem:[%s775] sm:$0xff]
      %v778 = vsel %vm371, %v776, 0
      %780 = vmatprep.subr.mxu0 %v774
      %781 = vmatpush1.msra.mxu0 %v773
      %782 = vmatprep.subr.mxu0 0.0
      %783 = vmatpush1.msra.mxu0 0.0
      %784 = vmatprep.subr.mxu0 0.0
      %785 = vmatpush1.msra.mxu0 0.0
      %786 = vmatprep.subr.mxu0 0.0
      %787 = vmatpush1.msra.mxu0 0.0
      %788 = vmatprep.subr.mxu0 0.0
      %789 = vmatpush1.msra.mxu0 0.0
      %790 = vmatprep.subr.mxu0 0.0
      %791 = vmatpush1.msra.mxu0 0.0
      %792 = vmatprep.subr.mxu0 0.0
      %793 = vmatpush1.msra.mxu0 0.0
      %794 = vmatprep.subr.mxu0 0.0
      %795 = vmatpush1.msra.mxu0 0.0
      %796 = vmatprep.subr.mxu0 0.0
      %797 = vmatpush1.msra.mxu0 0.0
      %798 = vmatprep.subr.mxu0 0.0
      %799 = vmatpush1.msra.mxu0 0.0
      %800 = vmatprep.subr.mxu0 0.0
      %801 = vmatpush1.msra.mxu0 0.0
      %802 = vmatprep.subr.mxu0 0.0
      %803 = vmatpush1.msra.mxu0 0.0
      %804 = vmatprep.subr.mxu0 0.0
      %805 = vmatpush1.msra.mxu0 0.0
      %806 = vmatprep.subr.mxu0 0.0
      %807 = vmatpush1.msra.mxu0 0.0
      %808 = vmatprep.subr.mxu0 0.0
      %809 = vmatpush1.msra.mxu0 0.0
      %810 = vmatprep.subr.mxu0 0.0
      %811 = vmatpush1.msra.mxu0 0.0
      %812 = vmatprep.subr.mxu0 0.0
      %813 = vmatpush1.msra.mxu0 0.0
      %814 = vmatprep.subr.mxu0 0.0
      %815 = vmatpush1.msra.mxu0 0.0
      %816 = vmatprep.subr.mxu0 0.0
      %817 = vmatpush1.msra.mxu0 0.0
      %818 = vmatprep.subr.mxu0 0.0
      %819 = vmatpush1.msra.mxu0 0.0
      %820 = vmatprep.subr.mxu0 0.0
      %821 = vmatpush1.msra.mxu0 0.0
      %822 = vmatprep.subr.mxu0 0.0
      %823 = vmatpush1.msra.mxu0 0.0
      %824 = vmatprep.subr.mxu0 0.0
      %825 = vmatpush1.msra.mxu0 0.0
      %826 = vmatprep.subr.mxu0 0.0
      %827 = vmatpush1.msra.mxu0 0.0
      %828 = vmatprep.subr.mxu0 0.0
      %829 = vmatpush1.msra.mxu0 0.0
      %830 = vmatprep.subr.mxu0 0.0
      %831 = vmatpush1.msra.mxu0 0.0
      %832 = vmatprep.subr.mxu0 0.0
      %833 = vmatpush1.msra.mxu0 0.0
      %834 = vmatprep.subr.mxu0 0.0
      %835 = vmatpush1.msra.mxu0 0.0
      %836 = vmatprep.subr.mxu0 0.0
      %837 = vmatpush1.msra.mxu0 0.0
      %838 = vmatprep.subr.mxu0 0.0
      %839 = vmatpush1.msra.mxu0 0.0
      %840 = vmatprep.subr.mxu0 0.0
      %841 = vmatpush1.msra.mxu0 0.0
      %842 = vmatprep.subr.mxu0 0.0
      %843 = vmatpush1.msra.mxu0 0.0
      %844 = vmatprep.mubr.f32.mxu0 0.0
      %845 = vmatmul.mubr.f32.gmra.mrb[0].mxu0 %v778
      %v846 = vpop.f32.mrb[0].mxu0
      %v847 = vadd.f32 0.0, %v846
      %v848 = vpop.f32.mrb[0].mxu0
      %v849 = vadd.f32 0.0, %v848
      %850 = vdwg.mxu0
      %v851 = vld [vmem:[#allocation2] sm:$0xff]
      %v852 = vld [vmem:[#allocation2 + $0x8] sm:$0xff]
      %v853 = vadd.f32 %v851, %v847
      %v854 = vadd.f32 %v852, %v849
      %855 = vst [vmem:[#allocation2] sm:$0xff] %v853
      %856 = vst [vmem:[#allocation2 + $0x8] sm:$0xff] %v854
      %857 = vrot.lane.b32.xlu0 %v345, 127
      %v858 = vpop.permute.xlu0 %857
      %859 = vrot.lane.b32.xlu0 %v346, 127
      %v860 = vpop.permute.xlu0 %859
      %vm861 = vcmp.lt.s32.totalorder %v352, 127
      %v862 = vsel %vm861, %v858, %v860
      %v863 = vsel %vm861, %v860, %v858
      %s864 = scalar_lea.vmem %s5, 5
      %v865 = vld [vmem:[%s864] ss:$8 sm:$0x3]
      %v867 = vlaneseq
      %v868 = vshrl.u32 %v867, 7
      %v869 = vsub.s32 0, %v868
      %v870 = vrot.slane %v865, %v869
      %v871 = vlaneseq
      %v872 = vshrl.u32 %v871, 7
      %v873 = vsub.s32 1, %v872
      %v874 = vrot.slane %v865, %v873
      %v877 = vmul.f32 %v862, %v870
      %v878 = vmul.f32 %v863, %v874
      %s879 = scalar_lea.vmem %s3, 40
      %v880 = vld [vmem:[%s879] sm:$0xff]
      %v882 = vsel %vm371, %v880, 0
      %884 = vmatprep.subr.mxu0 %v878
      %885 = vmatpush1.msra.mxu0 %v877
      %886 = vmatprep.subr.mxu0 0.0
      %887 = vmatpush1.msra.mxu0 0.0
      %888 = vmatprep.subr.mxu0 0.0
      %889 = vmatpush1.msra.mxu0 0.0
      %890 = vmatprep.subr.mxu0 0.0
      %891 = vmatpush1.msra.mxu0 0.0
      %892 = vmatprep.subr.mxu0 0.0
      %893 = vmatpush1.msra.mxu0 0.0
      %894 = vmatprep.subr.mxu0 0.0
      %895 = vmatpush1.msra.mxu0 0.0
      %896 = vmatprep.subr.mxu0 0.0
      %897 = vmatpush1.msra.mxu0 0.0
      %898 = vmatprep.subr.mxu0 0.0
      %899 = vmatpush1.msra.mxu0 0.0
      %900 = vmatprep.subr.mxu0 0.0
      %901 = vmatpush1.msra.mxu0 0.0
      %902 = vmatprep.subr.mxu0 0.0
      %903 = vmatpush1.msra.mxu0 0.0
      %904 = vmatprep.subr.mxu0 0.0
      %905 = vmatpush1.msra.mxu0 0.0
      %906 = vmatprep.subr.mxu0 0.0
      %907 = vmatpush1.msra.mxu0 0.0
      %908 = vmatprep.subr.mxu0 0.0
      %909 = vmatpush1.msra.mxu0 0.0
      %910 = vmatprep.subr.mxu0 0.0
      %911 = vmatpush1.msra.mxu0 0.0
      %912 = vmatprep.subr.mxu0 0.0
      %913 = vmatpush1.msra.mxu0 0.0
      %914 = vmatprep.subr.mxu0 0.0
      %915 = vmatpush1.msra.mxu0 0.0
      %916 = vmatprep.subr.mxu0 0.0
      %917 = vmatpush1.msra.mxu0 0.0
      %918 = vmatprep.subr.mxu0 0.0
      %919 = vmatpush1.msra.mxu0 0.0
      %920 = vmatprep.subr.mxu0 0.0
      %921 = vmatpush1.msra.mxu0 0.0
      %922 = vmatprep.subr.mxu0 0.0
      %923 = vmatpush1.msra.mxu0 0.0
      %924 = vmatprep.subr.mxu0 0.0
      %925 = vmatpush1.msra.mxu0 0.0
      %926 = vmatprep.subr.mxu0 0.0
      %927 = vmatpush1.msra.mxu0 0.0
      %928 = vmatprep.subr.mxu0 0.0
      %929 = vmatpush1.msra.mxu0 0.0
      %930 = vmatprep.subr.mxu0 0.0
      %931 = vmatpush1.msra.mxu0 0.0
      %932 = vmatprep.subr.mxu0 0.0
      %933 = vmatpush1.msra.mxu0 0.0
      %934 = vmatprep.subr.mxu0 0.0
      %935 = vmatpush1.msra.mxu0 0.0
      %936 = vmatprep.subr.mxu0 0.0
      %937 = vmatpush1.msra.mxu0 0.0
      %938 = vmatprep.subr.mxu0 0.0
      %939 = vmatpush1.msra.mxu0 0.0
      %940 = vmatprep.subr.mxu0 0.0
      %941 = vmatpush1.msra.mxu0 0.0
      %942 = vmatprep.subr.mxu0 0.0
      %943 = vmatpush1.msra.mxu0 0.0
      %944 = vmatprep.subr.mxu0 0.0
      %945 = vmatpush1.msra.mxu0 0.0
      %946 = vmatprep.subr.mxu0 0.0
      %947 = vmatpush1.msra.mxu0 0.0
      %948 = vmatprep.mubr.f32.mxu0 0.0
      %949 = vmatmul.mubr.f32.gmra.mrb[0].mxu0 %v882
      %v950 = vpop.f32.mrb[0].mxu0
      %v951 = vadd.f32 0.0, %v950
      %v952 = vpop.f32.mrb[0].mxu0
      %v953 = vadd.f32 0.0, %v952
      %954 = vdwg.mxu0
      %v955 = vld [vmem:[#allocation2] sm:$0xff]
      %v956 = vld [vmem:[#allocation2 + $0x8] sm:$0xff]
      %v957 = vadd.f32 %v955, %v951
      %v958 = vadd.f32 %v956, %v953
      %959 = vst [vmem:[#allocation2] sm:$0xff] %v957
      %960 = vst [vmem:[#allocation2 + $0x8] sm:$0xff] %v958
      %961 = vrot.lane.b32.xlu0 %v345, 113
      %v962 = vpop.permute.xlu0 %961
      %963 = vrot.lane.b32.xlu0 %v346, 113
      %v964 = vpop.permute.xlu0 %963
      %vm965 = vcmp.lt.s32.totalorder %v352, 113
      %v966 = vsel %vm965, %v962, %v964
      %v967 = vsel %vm965, %v964, %v962
      %s968 = scalar_lea.vmem %s5, 6
      %v969 = vld [vmem:[%s968] ss:$8 sm:$0x3]
      %v971 = vlaneseq
      %v972 = vshrl.u32 %v971, 7
      %v973 = vsub.s32 0, %v972
      %v974 = vrot.slane %v969, %v973
      %v975 = vlaneseq
      %v976 = vshrl.u32 %v975, 7
      %v977 = vsub.s32 1, %v976
      %v978 = vrot.slane %v969, %v977
      %v981 = vmul.f32 %v966, %v974
      %v982 = vmul.f32 %v967, %v978
      %s983 = scalar_lea.vmem %s3, 48
      %v984 = vld [vmem:[%s983] sm:$0xff]
      %v986 = vsel %vm371, %v984, 0
      %988 = vmatprep.subr.mxu0 %v982
      %989 = vmatpush1.msra.mxu0 %v981
      %990 = vmatprep.subr.mxu0 0.0
      %991 = vmatpush1.msra.mxu0 0.0
      %992 = vmatprep.subr.mxu0 0.0
      %993 = vmatpush1.msra.mxu0 0.0
      %994 = vmatprep.subr.mxu0 0.0
      %995 = vmatpush1.msra.mxu0 0.0
      %996 = vmatprep.subr.mxu0 0.0
      %997 = vmatpush1.msra.mxu0 0.0
      %998 = vmatprep.subr.mxu0 0.0
      %999 = vmatpush1.msra.mxu0 0.0
      %1000 = vmatprep.subr.mxu0 0.0
      %1001 = vmatpush1.msra.mxu0 0.0
      %1002 = vmatprep.subr.mxu0 0.0
      %1003 = vmatpush1.msra.mxu0 0.0
      %1004 = vmatprep.subr.mxu0 0.0
      %1005 = vmatpush1.msra.mxu0 0.0
      %1006 = vmatprep.subr.mxu0 0.0
      %1007 = vmatpush1.msra.mxu0 0.0
      %1008 = vmatprep.subr.mxu0 0.0
      %1009 = vmatpush1.msra.mxu0 0.0
      %1010 = vmatprep.subr.mxu0 0.0
      %1011 = vmatpush1.msra.mxu0 0.0
      %1012 = vmatprep.subr.mxu0 0.0
      %1013 = vmatpush1.msra.mxu0 0.0
      %1014 = vmatprep.subr.mxu0 0.0
      %1015 = vmatpush1.msra.mxu0 0.0
      %1016 = vmatprep.subr.mxu0 0.0
      %1017 = vmatpush1.msra.mxu0 0.0
      %1018 = vmatprep.subr.mxu0 0.0
      %1019 = vmatpush1.msra.mxu0 0.0
      %1020 = vmatprep.subr.mxu0 0.0
      %1021 = vmatpush1.msra.mxu0 0.0
      %1022 = vmatprep.subr.mxu0 0.0
      %1023 = vmatpush1.msra.mxu0 0.0
      %1024 = vmatprep.subr.mxu0 0.0
      %1025 = vmatpush1.msra.mxu0 0.0
      %1026 = vmatprep.subr.mxu0 0.0
      %1027 = vmatpush1.msra.mxu0 0.0
      %1028 = vmatprep.subr.mxu0 0.0
      %1029 = vmatpush1.msra.mxu0 0.0
      %1030 = vmatprep.subr.mxu0 0.0
      %1031 = vmatpush1.msra.mxu0 0.0
      %1032 = vmatprep.subr.mxu0 0.0
      %1033 = vmatpush1.msra.mxu0 0.0
      %1034 = vmatprep.subr.mxu0 0.0
      %1035 = vmatpush1.msra.mxu0 0.0
      %1036 = vmatprep.subr.mxu0 0.0
      %1037 = vmatpush1.msra.mxu0 0.0
      %1038 = vmatprep.subr.mxu0 0.0
      %1039 = vmatpush1.msra.mxu0 0.0
      %1040 = vmatprep.subr.mxu0 0.0
      %1041 = vmatpush1.msra.mxu0 0.0
      %1042 = vmatprep.subr.mxu0 0.0
      %1043 = vmatpush1.msra.mxu0 0.0
      %1044 = vmatprep.subr.mxu0 0.0
      %1045 = vmatpush1.msra.mxu0 0.0
      %1046 = vmatprep.subr.mxu0 0.0
      %1047 = vmatpush1.msra.mxu0 0.0
      %1048 = vmatprep.subr.mxu0 0.0
      %1049 = vmatpush1.msra.mxu0 0.0
      %1050 = vmatprep.subr.mxu0 0.0
      %1051 = vmatpush1.msra.mxu0 0.0
      %1052 = vmatprep.mubr.f32.mxu0 0.0
      %1053 = vmatmul.mubr.f32.gmra.mrb[0].mxu0 %v986
      %v1054 = vpop.f32.mrb[0].mxu0
      %v1055 = vadd.f32 0.0, %v1054
      %v1056 = vpop.f32.mrb[0].mxu0
      %v1057 = vadd.f32 0.0, %v1056
      %1058 = vdwg.mxu0
      %v1059 = vld [vmem:[#allocation2] sm:$0xff]
      %v1060 = vld [vmem:[#allocation2 + $0x8] sm:$0xff]
      %v1061 = vadd.f32 %v1059, %v1055
      %v1062 = vadd.f32 %v1060, %v1057
      %1063 = vst [vmem:[#allocation2] sm:$0xff] %v1061
      %1064 = vst [vmem:[#allocation2 + $0x8] sm:$0xff] %v1062
      %1065 = vrot.lane.b32.xlu0 %v345, 112
      %v1066 = vpop.permute.xlu0 %1065
      %1067 = vrot.lane.b32.xlu0 %v346, 112
      %v1068 = vpop.permute.xlu0 %1067
      %vm1069 = vcmp.lt.s32.totalorder %v352, 112
      %v1070 = vsel %vm1069, %v1066, %v1068
      %v1071 = vsel %vm1069, %v1068, %v1066
      %s1072 = scalar_lea.vmem %s5, 7
      %v1073 = vld [vmem:[%s1072] ss:$8 sm:$0x3]
      %v1075 = vlaneseq
      %v1076 = vshrl.u32 %v1075, 7
      %v1077 = vsub.s32 0, %v1076
      %v1078 = vrot.slane %v1073, %v1077
      %v1079 = vlaneseq
      %v1080 = vshrl.u32 %v1079, 7
      %v1081 = vsub.s32 1, %v1080
      %v1082 = vrot.slane %v1073, %v1081
      %v1085 = vmul.f32 %v1070, %v1078
      %v1086 = vmul.f32 %v1071, %v1082
      %s1087 = scalar_lea.vmem %s3, 56
      %v1088 = vld [vmem:[%s1087] sm:$0xff]
      %v1090 = vsel %vm371, %v1088, 0
      %1092 = vmatprep.subr.mxu0 %v1086
      %1093 = vmatpush1.msra.mxu0 %v1085
      %1094 = vmatprep.subr.mxu0 0.0
      %1095 = vmatpush1.msra.mxu0 0.0
      %1096 = vmatprep.subr.mxu0 0.0
      %1097 = vmatpush1.msra.mxu0 0.0
      %1098 = vmatprep.subr.mxu0 0.0
      %1099 = vmatpush1.msra.mxu0 0.0
      %1100 = vmatprep.subr.mxu0 0.0
      %1101 = vmatpush1.msra.mxu0 0.0
      %1102 = vmatprep.subr.mxu0 0.0
      %1103 = vmatpush1.msra.mxu0 0.0
      %1104 = vmatprep.subr.mxu0 0.0
      %1105 = vmatpush1.msra.mxu0 0.0
      %1106 = vmatprep.subr.mxu0 0.0
      %1107 = vmatpush1.msra.mxu0 0.0
      %1108 = vmatprep.subr.mxu0 0.0
      %1109 = vmatpush1.msra.mxu0 0.0
      %1110 = vmatprep.subr.mxu0 0.0
      %1111 = vmatpush1.msra.mxu0 0.0
      %1112 = vmatprep.subr.mxu0 0.0
      %1113 = vmatpush1.msra.mxu0 0.0
      %1114 = vmatprep.subr.mxu0 0.0
      %1115 = vmatpush1.msra.mxu0 0.0
      %1116 = vmatprep.subr.mxu0 0.0
      %1117 = vmatpush1.msra.mxu0 0.0
      %1118 = vmatprep.subr.mxu0 0.0
      %1119 = vmatpush1.msra.mxu0 0.0
      %1120 = vmatprep.subr.mxu0 0.0
      %1121 = vmatpush1.msra.mxu0 0.0
      %1122 = vmatprep.subr.mxu0 0.0
      %1123 = vmatpush1.msra.mxu0 0.0
      %1124 = vmatprep.subr.mxu0 0.0
      %1125 = vmatpush1.msra.mxu0 0.0
      %1126 = vmatprep.subr.mxu0 0.0
      %1127 = vmatpush1.msra.mxu0 0.0
      %1128 = vmatprep.subr.mxu0 0.0
      %1129 = vmatpush1.msra.mxu0 0.0
      %1130 = vmatprep.subr.mxu0 0.0
      %1131 = vmatpush1.msra.mxu0 0.0
      %1132 = vmatprep.subr.mxu0 0.0
      %1133 = vmatpush1.msra.mxu0 0.0
      %1134 = vmatprep.subr.mxu0 0.0
      %1135 = vmatpush1.msra.mxu0 0.0
      %1136 = vmatprep.subr.mxu0 0.0
      %1137 = vmatpush1.msra.mxu0 0.0
      %1138 = vmatprep.subr.mxu0 0.0
      %1139 = vmatpush1.msra.mxu0 0.0
      %1140 = vmatprep.subr.mxu0 0.0
      %1141 = vmatpush1.msra.mxu0 0.0
      %1142 = vmatprep.subr.mxu0 0.0
      %1143 = vmatpush1.msra.mxu0 0.0
      %1144 = vmatprep.subr.mxu0 0.0
      %1145 = vmatpush1.msra.mxu0 0.0
      %1146 = vmatprep.subr.mxu0 0.0
      %1147 = vmatpush1.msra.mxu0 0.0
      %1148 = vmatprep.subr.mxu0 0.0
      %1149 = vmatpush1.msra.mxu0 0.0
      %1150 = vmatprep.subr.mxu0 0.0
      %1151 = vmatpush1.msra.mxu0 0.0
      %1152 = vmatprep.subr.mxu0 0.0
      %1153 = vmatpush1.msra.mxu0 0.0
      %1154 = vmatprep.subr.mxu0 0.0
      %1155 = vmatpush1.msra.mxu0 0.0
      %1156 = vmatprep.mubr.f32.mxu0 0.0
      %1157 = vmatmul.mubr.f32.gmra.mrb[0].mxu0 %v1090
      %v1158 = vpop.f32.mrb[0].mxu0
      %v1159 = vadd.f32 0.0, %v1158
      %v1160 = vpop.f32.mrb[0].mxu0
      %v1161 = vadd.f32 0.0, %v1160
      %1162 = vdwg.mxu0
      %v1163 = vld [vmem:[#allocation2] sm:$0xff]
      %v1164 = vld [vmem:[#allocation2 + $0x8] sm:$0xff]
      %v1165 = vadd.f32 %v1163, %v1159
      %v1166 = vadd.f32 %v1164, %v1161
      %1167 = vst [vmem:[#allocation2] sm:$0xff] %v1165
      %1168 = vst [vmem:[#allocation2 + $0x8] sm:$0xff] %v1166
      %1169 = vrot.lane.b32.xlu0 %v345, 111
      %v1170 = vpop.permute.xlu0 %1169
      %1171 = vrot.lane.b32.xlu0 %v346, 111
      %v1172 = vpop.permute.xlu0 %1171
      %vm1173 = vcmp.lt.s32.totalorder %v352, 111
      %v1174 = vsel %vm1173, %v1170, %v1172
      %v1175 = vsel %vm1173, %v1172, %v1170
      %s1176 = scalar_lea.vmem %s5, 16
      %v1177 = vld [vmem:[%s1176] ss:$8 sm:$0x3]
      %v1179 = vlaneseq
      %v1180 = vshrl.u32 %v1179, 7
      %v1181 = vsub.s32 0, %v1180
      %v1182 = vrot.slane %v1177, %v1181
      %v1183 = vlaneseq
      %v1184 = vshrl.u32 %v1183, 7
      %v1185 = vsub.s32 1, %v1184
      %v1186 = vrot.slane %v1177, %v1185
      %v1189 = vmul.f32 %v1174, %v1182
      %v1190 = vmul.f32 %v1175, %v1186
      %s1191 = scalar_lea.vmem %s3, 64
      %v1192 = vld [vmem:[%s1191] sm:$0xff]
      %v1194 = vsel %vm371, %v1192, 0
      %1196 = vmatprep.subr.mxu0 %v1190
      %1197 = vmatpush1.msra.mxu0 %v1189
      %1198 = vmatprep.subr.mxu0 0.0
      %1199 = vmatpush1.msra.mxu0 0.0
      %1200 = vmatprep.subr.mxu0 0.0
      %1201 = vmatpush1.msra.mxu0 0.0
      %1202 = vmatprep.subr.mxu0 0.0
      %1203 = vmatpush1.msra.mxu0 0.0
      %1204 = vmatprep.subr.mxu0 0.0
      %1205 = vmatpush1.msra.mxu0 0.0
      %1206 = vmatprep.subr.mxu0 0.0
      %1207 = vmatpush1.msra.mxu0 0.0
      %1208 = vmatprep.subr.mxu0 0.0
      %1209 = vmatpush1.msra.mxu0 0.0
      %1210 = vmatprep.subr.mxu0 0.0
      %1211 = vmatpush1.msra.mxu0 0.0
      %1212 = vmatprep.subr.mxu0 0.0
      %1213 = vmatpush1.msra.mxu0 0.0
      %1214 = vmatprep.subr.mxu0 0.0
      %1215 = vmatpush1.msra.mxu0 0.0
      %1216 = vmatprep.subr.mxu0 0.0
      %1217 = vmatpush1.msra.mxu0 0.0
      %1218 = vmatprep.subr.mxu0 0.0
      %1219 = vmatpush1.msra.mxu0 0.0
      %1220 = vmatprep.subr.mxu0 0.0
      %1221 = vmatpush1.msra.mxu0 0.0
      %1222 = vmatprep.subr.mxu0 0.0
      %1223 = vmatpush1.msra.mxu0 0.0
      %1224 = vmatprep.subr.mxu0 0.0
      %1225 = vmatpush1.msra.mxu0 0.0
      %1226 = vmatprep.subr.mxu0 0.0
      %1227 = vmatpush1.msra.mxu0 0.0
      %1228 = vmatprep.subr.mxu0 0.0
      %1229 = vmatpush1.msra.mxu0 0.0
      %1230 = vmatprep.subr.mxu0 0.0
      %1231 = vmatpush1.msra.mxu0 0.0
      %1232 = vmatprep.subr.mxu0 0.0
      %1233 = vmatpush1.msra.mxu0 0.0
      %1234 = vmatprep.subr.mxu0 0.0
      %1235 = vmatpush1.msra.mxu0 0.0
      %1236 = vmatprep.subr.mxu0 0.0
      %1237 = vmatpush1.msra.mxu0 0.0
      %1238 = vmatprep.subr.mxu0 0.0
      %1239 = vmatpush1.msra.mxu0 0.0
      %1240 = vmatprep.subr.mxu0 0.0
      %1241 = vmatpush1.msra.mxu0 0.0
      %1242 = vmatprep.subr.mxu0 0.0
      %1243 = vmatpush1.msra.mxu0 0.0
      %1244 = vmatprep.subr.mxu0 0.0
      %1245 = vmatpush1.msra.mxu0 0.0
      %1246 = vmatprep.subr.mxu0 0.0
      %1247 = vmatpush1.msra.mxu0 0.0
      %1248 = vmatprep.subr.mxu0 0.0
      %1249 = vmatpush1.msra.mxu0 0.0
      %1250 = vmatprep.subr.mxu0 0.0
      %1251 = vmatpush1.msra.mxu0 0.0
      %1252 = vmatprep.subr.mxu0 0.0
      %1253 = vmatpush1.msra.mxu0 0.0
      %1254 = vmatprep.subr.mxu0 0.0
      %1255 = vmatpush1.msra.mxu0 0.0
      %1256 = vmatprep.subr.mxu0 0.0
      %1257 = vmatpush1.msra.mxu0 0.0
      %1258 = vmatprep.subr.mxu0 0.0
      %1259 = vmatpush1.msra.mxu0 0.0
      %1260 = vmatprep.mubr.f32.mxu0 0.0
      %1261 = vmatmul.mubr.f32.gmra.mrb[0].mxu0 %v1194
      %v1262 = vpop.f32.mrb[0].mxu0
      %v1263 = vadd.f32 0.0, %v1262
      %v1264 = vpop.f32.mrb[0].mxu0
      %v1265 = vadd.f32 0.0, %v1264
      %1266 = vdwg.mxu0
      %v1267 = vld [vmem:[#allocation2] sm:$0xff]
      %v1268 = vld [vmem:[#allocation2 + $0x8] sm:$0xff]
      %v1269 = vadd.f32 %v1267, %v1263
      %v1270 = vadd.f32 %v1268, %v1265
      %1271 = vst [vmem:[#allocation2] sm:$0xff] %v1269
      %1272 = vst [vmem:[#allocation2 + $0x8] sm:$0xff] %v1270
      %v1273 = vld [vmem:[#allocation2] sm:$0xff]
      %v1274 = vld [vmem:[#allocation2 + $0x8] sm:$0xff]
      %v1275 = vld [vmem:[%s4] sm:$0xff]
      %1277 = vset.pattern.permute.xlu0 0
      %1278 = vperm.xlu0 %1277, %v1275
      %v1279 = vpop.permute.xlu0 %1278
      %v1281 = vadd.f32 %v1273, %v1279
      %v1282 = vadd.f32 %v1274, %v1279
      %1283 = vst [vmem:[%s318] sm:$0xff] %v1281
      %1284 = vst [vmem:[%s318 + $0x8] sm:$0xff] %v1282
      %v1285 = vadd.f32 %v1281, %v1282
      %1286 = vadd.xlane.f32.xlu0 %v1285
      %v1287 = vpop.xlane.xlu0 %1286
      %vm1288 = vcmask 7168
      %1289 = vst.msk [vmem:[%s322] sm:$0xff] %vm1288, %v1287
      %v1290 = vmul.f32 %v1281, %v1281
      %v1291 = vmul.f32 %v1282, %v1282
      %v1292 = vadd.f32 %v1290, %v1291
      %1293 = vadd.xlane.f32.xlu0 %v1292
      %v1294 = vpop.xlane.xlu0 %1293
      %1295 = vst.msk [vmem:[%s326] sm:$0xff] %vm1288, %v1294
      %p1296 = scmp.lt.s32.totalorder %s20, 1
      %s1297 = scalar_select %p1296, %s20, 1
      %s1298 = smul.addr %s1297, 2
      %s1299 = smul.addr %s1298, 8
      %s1300 = scalar_lea.vmem %s6, %s1299
      %p1301 = scmp.lt.s32.totalorder %s20, 1
      %s1302 = scalar_select %p1301, %s20, 1
      %s1303 = smul.addr %s1302, 8
      %s1304 = scalar_lea.vmem %s7, %s1303
      %p1305 = scmp.lt.s32.totalorder %s20, 1
      %s1306 = scalar_select %p1305, %s20, 1
      %s1307 = smul.addr %s1306, 8
      %s1308 = scalar_lea.vmem %s8, %s1307
      // Predicated region
      $region45: #{res_block_forward.4} parent=43 // pred_check
        %p1309 = pneg %p169
      $region46: #{res_block_forward.4} parent=43 // pred_check_branch
        %1311 = sbr.rel (%p1309) target = $region48
      $region47: #{res_block_forward.4} parent=43 // pred_region
        _
      $region48: #{res_block_forward.4} parent=43 // pred_fallthru
        _
      // Predicated region
      $region49: #{res_block_forward.4} parent=43 // pred_check
        %p1312 = pneg %p195
      $region50: #{res_block_forward.4} parent=43 // pred_check_branch
        %1314 = sbr.rel (%p1312) target = $region52
      $region51: #{res_block_forward.4} parent=43 // pred_region
        _
      $region52: #{res_block_forward.4} parent=43 // pred_fallthru
        _
      // Predicated region
      $region53: #{res_block_forward.4} parent=43 // pred_check
        %p1315 = pneg %p221
      $region54: #{res_block_forward.4} parent=43 // pred_check_branch
        %1317 = sbr.rel (%p1315) target = $region56
      $region55: #{res_block_forward.4} parent=43 // pred_region
        _
      $region56: #{res_block_forward.4} parent=43 // pred_fallthru
        _
    $region44: #{res_block_forward.4} parent=5 // pred_fallthru
      _
    %p1318 = scmp.le.s32.totalorder 2, %s15
    // Predicated region
    $region57: #{res_block_forward.4} parent=5 // pred_check
      %p1319 = pneg %p1318
    $region58: #{res_block_forward.4} parent=5 // pred_check_branch
      %1321 = sbr.rel (%p1319) target = $region60
    $region59: #{res_block_forward.4} parent=5 // pred_region
      %s1322 = ssub.s32 %s15, 2
      // Predicated region
      $region61: #{res_block_forward.4} parent=59 // pred_check
        %p1323 = pneg %p175
      $region62: #{res_block_forward.4} parent=59 // pred_check_branch
        %1325 = sbr.rel (%p1323) target = $region64
      $region63: #{res_block_forward.4} parent=59 // pred_region
        %p1326 = scmp.lt.s32.totalorder %s21, 1
        %s1327 = scalar_select %p1326, %s21, 1
        %s1328 = smul.addr %s1327, 2
        %s1329 = smul.addr %s1328, 8
        %s1330 = scalar_lea.vmem %s6, %s1329
      $region64: #{res_block_forward.4} parent=59 // pred_fallthru
        _
      // Predicated region
      $region65: #{res_block_forward.4} parent=59 // pred_check
        %p1331 = pneg %p201
      $region66: #{res_block_forward.4} parent=59 // pred_check_branch
        %1333 = sbr.rel (%p1331) target = $region68
      $region67: #{res_block_forward.4} parent=59 // pred_region
        %p1334 = scmp.lt.s32.totalorder %s21, 1
        %s1335 = scalar_select %p1334, %s21, 1
        %s1336 = smul.addr %s1335, 8
        %s1337 = scalar_lea.vmem %s7, %s1336
      $region68: #{res_block_forward.4} parent=59 // pred_fallthru
        _
      // Predicated region
      $region69: #{res_block_forward.4} parent=59 // pred_check
        %p1338 = pneg %p227
      $region70: #{res_block_forward.4} parent=59 // pred_check_branch
        %1340 = sbr.rel (%p1338) target = $region72
      $region71: #{res_block_forward.4} parent=59 // pred_region
        %p1341 = scmp.lt.s32.totalorder %s21, 1
        %s1342 = scalar_select %p1341, %s21, 1
        %s1343 = smul.addr %s1342, 8
        %s1344 = scalar_lea.vmem %s8, %s1343
      $region72: #{res_block_forward.4} parent=59 // pred_fallthru
        _
    $region60: #{res_block_forward.4} parent=5 // pred_fallthru
      _
  $region6: #{res_block_forward.4} parent=0 // loop_footer
    %s19 = sadd.s32 1, %s15
  $region7: #{res_block_forward.4} parent=0 // loop_footer_branch
    %14 = sbr.rel target = $region3
  $region8: #{res_block_forward.4} parent=0 // loop_exit
    _

// kernel: res_block_forward.3
$region0: #{res_block_forward.3}
  #allocation0 [shape = 'u32[]', space=smem, size = 0x4, offset = 0x4, fixed_abs, tag = 'smem constant byte address 0x4 - core index']
  #allocation1 [shape = 'u32[144,128]{1,0:T(1,128)}', space=vmem, size = 0x12000, scoped, tag = 'internal scratch']
  #allocation2 [shape = 'f32[8,256]{1,0:T(8,128)}', space=vmem, size = 0x2000, scoped, tag = 'scratch operand']
  %s0 = inlined_call_operand.vmem [shape: f32[2,4,256], index: 0, kind: input, shape index: {}]
  %s1 = inlined_call_operand.vmem [shape: f32[9,8,4], index: 1, kind: input, shape index: {}]
  %s2 = inlined_call_operand.vmem [shape: f32[8,1], index: 2, kind: input, shape index: {}]
  %s3 = inlined_call_operand.vmem [shape: f32[9,256], index: 3, kind: input, shape index: {}]
  %s4 = inlined_call_operand.vmem [shape: f32[2,8,256], index: 4, kind: output, shape index: {0}]
  %s5 = inlined_call_operand.vmem [shape: f32[2,8,1], index: 5, kind: output, shape index: {1}]
  %s6 = inlined_call_operand.vmem [shape: f32[2,8,1], index: 6, kind: output, shape index: {2}]
  %7 = xla_tuple %s4, %s5, %s6
  %s8 = sld [smem:[#allocation0]]
  $region65: #{res_block_forward.3} parent=0
    _
  %s10 = ssub.s32 1, %s8
  %s11 = scalar_select 0, %s10, %s8
  loop: start=0, step=1, limit=4
  $region2: #{res_block_forward.3} parent=0 // loop_pre_header
    _
  $region3: #{res_block_forward.3} parent=0 // loop_header
    %s13 = sphi 0, %s17
    %p14 = scmp.ge.s32.totalorder %s13, 4
    %s23 = sphi 0, %s25
    %s26 = sphi 0, %s23
    %s27 = sphi 0, %s26
    %s43 = sphi 0, %s27
    %s47 = sphi 0, %s47
    %s49 = sphi 0, %s47
    %s50 = sphi 0, %s49
    %s64 = sphi 0, %s50
    %s68 = sphi 0, %s68
    %s70 = sphi 0, %s68
    %s71 = sphi 0, %s70
    %s85 = sphi 0, %s71
    %s89 = sphi 0, %s89
    %s91 = sphi 0, %s89
    %s92 = sphi 0, %s91
    %s106 = sphi 0, %s92
    %s112 = sphi 0, %s114
    %s115 = sphi 0, %s112
    %s116 = sphi 0, %s115
    %s132 = sphi 0, %s116
    %s138 = sphi 0, %s140
    %s141 = sphi 0, %s138
    %s142 = sphi 0, %s141
    %s158 = sphi 0, %s142
    %s164 = sphi 0, %s166
    %s167 = sphi 0, %s164
    %s168 = sphi 0, %s167
    %s184 = sphi 0, %s168
  $region4: #{res_block_forward.3} parent=0 // loop_header_branch
    %16 = sbr.rel (%p14) target = $region8
  $region5: #{res_block_forward.3} parent=0 // loop_body
    %s18 = ssub.s32 %s13, 1
    %s19 = ssub.s32 %s13, 2
    %s20 = sadd.s32 %s13, 1
    %s21 = ssub.s32 %s13, %s20
    %p22 = scmp.eq.s32.totalorder %s21, 0
    %s24 = sadd.s32 %s23, 1
    %s25 = scalar_select %p22, %s23, %s24
    %p28 = pneg %p22
    %p29 = scmp.eq.s32.totalorder %s13, 1
    %p30 = por %p28, %p29
    %p31 = scmp.ne.s32.totalorder %s23, %s26
    %p32 = scmp.eq.s32.totalorder %s13, 0
    %p33 = por %p31, %p32
    %p34 = scmp.ne.s32.totalorder %s23, %s26
    %p35 = scmp.eq.s32.totalorder %s18, 1
    %p36 = por %p34, %p35
    %p37 = scmp.ne.s32.totalorder %s26, %s27
    %p38 = scmp.eq.s32.totalorder %s18, 0
    %p39 = por %p37, %p38
    %p40 = scmp.ne.s32.totalorder %s26, %s27
    %p41 = scmp.eq.s32.totalorder %s19, 1
    %p42 = por %p40, %p41
    %p44 = scmp.ne.s32.totalorder %s27, %s43
    %p45 = scmp.eq.s32.totalorder %s19, 0
    %p46 = por %p44, %p45
    %s48 = sadd.s32 %s47, 1
    %p51 = scmp.eq.s32.totalorder %s13, 1
    %p52 = scmp.ne.s32.totalorder %s47, %s49
    %p53 = scmp.eq.s32.totalorder %s13, 0
    %p54 = por %p52, %p53
    %p55 = scmp.ne.s32.totalorder %s47, %s49
    %p56 = scmp.eq.s32.totalorder %s18, 1
    %p57 = por %p55, %p56
    %p58 = scmp.ne.s32.totalorder %s49, %s50
    %p59 = scmp.eq.s32.totalorder %s18, 0
    %p60 = por %p58, %p59
    %p61 = scmp.ne.s32.totalorder %s49, %s50
    %p62 = scmp.eq.s32.totalorder %s19, 1
    %p63 = por %p61, %p62
    %p65 = scmp.ne.s32.totalorder %s50, %s64
    %p66 = scmp.eq.s32.totalorder %s19, 0
    %p67 = por %p65, %p66
    %s69 = sadd.s32 %s68, 1
    %p72 = scmp.eq.s32.totalorder %s13, 1
    %p73 = scmp.ne.s32.totalorder %s68, %s70
    %p74 = scmp.eq.s32.totalorder %s13, 0
    %p75 = por %p73, %p74
    %p76 = scmp.ne.s32.totalorder %s68, %s70
    %p77 = scmp.eq.s32.totalorder %s18, 1
    %p78 = por %p76, %p77
    %p79 = scmp.ne.s32.totalorder %s70, %s71
    %p80 = scmp.eq.s32.totalorder %s18, 0
    %p81 = por %p79, %p80
    %p82 = scmp.ne.s32.totalorder %s70, %s71
    %p83 = scmp.eq.s32.totalorder %s19, 1
    %p84 = por %p82, %p83
    %p86 = scmp.ne.s32.totalorder %s71, %s85
    %p87 = scmp.eq.s32.totalorder %s19, 0
    %p88 = por %p86, %p87
    %s90 = sadd.s32 %s89, 1
    %p93 = scmp.eq.s32.totalorder %s13, 1
    %p94 = scmp.ne.s32.totalorder %s89, %s91
    %p95 = scmp.eq.s32.totalorder %s13, 0
    %p96 = por %p94, %p95
    %p97 = scmp.ne.s32.totalorder %s89, %s91
    %p98 = scmp.eq.s32.totalorder %s18, 1
    %p99 = por %p97, %p98
    %p100 = scmp.ne.s32.totalorder %s91, %s92
    %p101 = scmp.eq.s32.totalorder %s18, 0
    %p102 = por %p100, %p101
    %p103 = scmp.ne.s32.totalorder %s91, %s92
    %p104 = scmp.eq.s32.totalorder %s19, 1
    %p105 = por %p103, %p104
    %p107 = scmp.ne.s32.totalorder %s92, %s106
    %p108 = scmp.eq.s32.totalorder %s19, 0
    %p109 = por %p107, %p108
    %s110 = ssub.s32 %s13, %s20
    %p111 = scmp.eq.s32.totalorder %s110, 0
    %s113 = sadd.s32 %s112, 1
    %s114 = scalar_select %p111, %s112, %s113
    %p117 = pneg %p111
    %p118 = scmp.eq.s32.totalorder %s13, 1
    %p119 = por %p117, %p118
    %p120 = scmp.ne.s32.totalorder %s112, %s115
    %p121 = scmp.eq.s32.totalorder %s13, 0
    %p122 = por %p120, %p121
    %p123 = scmp.ne.s32.totalorder %s112, %s115
    %p124 = scmp.eq.s32.totalorder %s18, 1
    %p125 = por %p123, %p124
    %p126 = scmp.ne.s32.totalorder %s115, %s116
    %p127 = scmp.eq.s32.totalorder %s18, 0
    %p128 = por %p126, %p127
    %p129 = scmp.ne.s32.totalorder %s115, %s116
    %p130 = scmp.eq.s32.totalorder %s19, 1
    %p131 = por %p129, %p130
    %p133 = scmp.ne.s32.totalorder %s116, %s132
    %p134 = scmp.eq.s32.totalorder %s19, 0
    %p135 = por %p133, %p134
    %s136 = ssub.s32 %s13, %s20
    %p137 = scmp.eq.s32.totalorder %s136, 0
    %s139 = sadd.s32 %s138, 1
    %s140 = scalar_select %p137, %s138, %s139
    %p143 = pneg %p137
    %p144 = scmp.eq.s32.totalorder %s13, 1
    %p145 = por %p143, %p144
    %p146 = scmp.ne.s32.totalorder %s138, %s141
    %p147 = scmp.eq.s32.totalorder %s13, 0
    %p148 = por %p146, %p147
    %p149 = scmp.ne.s32.totalorder %s138, %s141
    %p150 = scmp.eq.s32.totalorder %s18, 1
    %p151 = por %p149, %p150
    %p152 = scmp.ne.s32.totalorder %s141, %s142
    %p153 = scmp.eq.s32.totalorder %s18, 0
    %p154 = por %p152, %p153
    %p155 = scmp.ne.s32.totalorder %s141, %s142
    %p156 = scmp.eq.s32.totalorder %s19, 1
    %p157 = por %p155, %p156
    %p159 = scmp.ne.s32.totalorder %s142, %s158
    %p160 = scmp.eq.s32.totalorder %s19, 0
    %p161 = por %p159, %p160
    %s162 = ssub.s32 %s13, %s20
    %p163 = scmp.eq.s32.totalorder %s162, 0
    %s165 = sadd.s32 %s164, 1
    %s166 = scalar_select %p163, %s164, %s165
    %p169 = pneg %p163
    %p170 = scmp.eq.s32.totalorder %s13, 1
    %p171 = por %p169, %p170
    %p172 = scmp.ne.s32.totalorder %s164, %s167
    %p173 = scmp.eq.s32.totalorder %s13, 0
    %p174 = por %p172, %p173
    %p175 = scmp.ne.s32.totalorder %s164, %s167
    %p176 = scmp.eq.s32.totalorder %s18, 1
    %p177 = por %p175, %p176
    %p178 = scmp.ne.s32.totalorder %s167, %s168
    %p179 = scmp.eq.s32.totalorder %s18, 0
    %p180 = por %p178, %p179
    %p181 = scmp.ne.s32.totalorder %s167, %s168
    %p182 = scmp.eq.s32.totalorder %s19, 1
    %p183 = por %p181, %p182
    %p185 = scmp.ne.s32.totalorder %s168, %s184
    %p186 = scmp.eq.s32.totalorder %s19, 0
    %p187 = por %p185, %p186
    %p188 = scmp.le.s32.totalorder 1, %s13
    %p189 = scmp.lt.s32.totalorder %s13, 3
    %p190 = pnand %p188, %p189
    %p191 = pneg %p190
    // Predicated region
    $region9: #{res_block_forward.3} parent=5 // pred_check
      _
    $region10: #{res_block_forward.3} parent=5 // pred_check_branch
      %193 = sbr.rel (%p190) target = $region12
    $region11: #{res_block_forward.3} parent=5 // pred_region
      %s194 = ssub.s32 %s13, 1
      // Predicated region
      $region13: #{res_block_forward.3} parent=11 // pred_check
        %p195 = pneg %p60
      $region14: #{res_block_forward.3} parent=11 // pred_check_branch
        %197 = sbr.rel (%p195) target = $region16
      $region15: #{res_block_forward.3} parent=11 // pred_region
        _
      $region16: #{res_block_forward.3} parent=11 // pred_fallthru
        _
      // Predicated region
      $region17: #{res_block_forward.3} parent=11 // pred_check
        %p198 = pneg %p81
      $region18: #{res_block_forward.3} parent=11 // pred_check_branch
        %200 = sbr.rel (%p198) target = $region20
      $region19: #{res_block_forward.3} parent=11 // pred_region
        _
      $region20: #{res_block_forward.3} parent=11 // pred_fallthru
        _
      // Predicated region
      $region21: #{res_block_forward.3} parent=11 // pred_check
        %p201 = pneg %p102
      $region22: #{res_block_forward.3} parent=11 // pred_check_branch
        %203 = sbr.rel (%p201) target = $region24
      $region23: #{res_block_forward.3} parent=11 // pred_region
        _
      $region24: #{res_block_forward.3} parent=11 // pred_fallthru
        _
    $region12: #{res_block_forward.3} parent=5 // pred_fallthru
      _
    %p204 = scmp.lt.s32.totalorder %s13, 2
    // Predicated region
    $region25: #{res_block_forward.3} parent=5 // pred_check
      %p205 = pneg %p204
    $region26: #{res_block_forward.3} parent=5 // pred_check_branch
      %207 = sbr.rel (%p205) target = $region28
    $region27: #{res_block_forward.3} parent=5 // pred_region
      // Predicated region
      $region29: #{res_block_forward.3} parent=27 // pred_check
        %p208 = pneg %p33
      $region30: #{res_block_forward.3} parent=27 // pred_check_branch
        %210 = sbr.rel (%p208) target = $region32
      $region31: #{res_block_forward.3} parent=27 // pred_region
        %p211 = scmp.lt.s32.totalorder %s13, 1
        %s212 = scalar_select %p211, %s13, 1
        %s213 = smul.addr %s212, 2
        %s214 = smul.addr %s213, 4
        %s215 = scalar_lea.vmem %s0, %s214
      $region32: #{res_block_forward.3} parent=27 // pred_fallthru
        _
    $region28: #{res_block_forward.3} parent=5 // pred_fallthru
      _
    %p216 = scmp.le.s32.totalorder 1, %s13
    %p217 = scmp.lt.s32.totalorder %s13, 3
    %p218 = pnand %p216, %p217
    %p219 = pneg %p218
    // Predicated region
    $region33: #{res_block_forward.3} parent=5 // pred_check
      _
    $region34: #{res_block_forward.3} parent=5 // pred_check_branch
      %221 = sbr.rel (%p218) target = $region36
    $region35: #{res_block_forward.3} parent=5 // pred_region
      %s222 = ssub.s32 %s13, 1
      %p223 = scmp.lt.s32.totalorder %s18, 1
      %s224 = scalar_select %p223, %s18, 1
      %s225 = smul.addr %s224, 2
      %s226 = smul.addr %s225, 4
      %s227 = scalar_lea.vmem %s0, %s226
      %p228 = pneg %p39
      %p229 = pneg %p36
      %p230 = pneg %p60
      %p231 = pneg %p57
      %p232 = pneg %p81
      %p233 = pneg %p78
      %p234 = pneg %p102
      %p235 = pneg %p99
      %p236 = pneg %p128
      %p237 = pneg %p125
      %p238 = scmp.lt.s32.totalorder %s18, 1
      %s239 = scalar_select %p238, %s18, 1
      %s240 = smul.addr %s239, 2
      %s241 = smul.addr %s240, 8
      %s242 = scalar_lea.vmem %s4, %s241
      %p243 = pneg %p154
      %p244 = pneg %p151
      %p245 = scmp.lt.s32.totalorder %s18, 1
      %s246 = scalar_select %p245, %s18, 1
      %s247 = smul.addr %s246, 8
      %s248 = scalar_lea.vmem %s5, %s247
      %p249 = pneg %p180
      %p250 = pneg %p177
      %p251 = scmp.lt.s32.totalorder %s18, 1
      %s252 = scalar_select %p251, %s18, 1
      %s253 = smul.addr %s252, 8
      %s254 = scalar_lea.vmem %s6, %s253
      %p255 = scmp.lt.s32.totalorder %s18, 1
      %s256 = scalar_select %p255, %s18, 1
      %s257 = smul.addr %s256, 2
      %s258 = smul.addr %s257, 4
      %s259 = scalar_lea.vmem %s0, %s258
      %p260 = scmp.lt.s32.totalorder %s18, 1
      %s261 = scalar_select %p260, %s18, 1
      %s262 = smul.addr %s261, 2
      %s263 = smul.addr %s262, 8
      %s264 = scalar_lea.vmem %s4, %s263
      %p265 = scmp.lt.s32.totalorder %s18, 1
      %s266 = scalar_select %p265, %s18, 1
      %s267 = smul.addr %s266, 8
      %s268 = scalar_lea.vmem %s5, %s267
      %p269 = scmp.lt.s32.totalorder %s18, 1
      %s270 = scalar_select %p269, %s18, 1
      %s271 = smul.addr %s270, 8
      %s272 = scalar_lea.vmem %s6, %s271
      %v273 = vld [vmem:[%s259] sm:$0xff]
      %v275 = vcombine.high %v273, %v273
      %277 = vrot.lane.b32.xlu0 %v273, 17
      %v278 = vpop.permute.xlu0 %277
      %279 = vrot.lane.b32.xlu0 %v275, 17
      %v280 = vpop.permute.xlu0 %279
      %v281 = vlaneseq
      %v282 = vand.u32 %v281, 127
      %vm283 = vcmp.lt.s32.totalorder %v282, 17
      %v284 = vsel %vm283, %v278, %v280
      %v285 = vsel %vm283, %v280, %v278
      %v286 = vld [vmem:[%s3] ss:$8 sm:$0x3]
      %v288 = vlaneseq
      %v289 = vshrl.u32 %v288, 7
      %v290 = vsub.s32 0, %v289
      %v291 = vrot.slane %v286, %v290
      %v292 = vlaneseq
      %v293 = vshrl.u32 %v292, 7
      %v294 = vsub.s32 1, %v293
      %v295 = vrot.slane %v286, %v294
      %v298 = vmul.f32 %v285, %v291
      %v299 = vmul.f32 %v284, %v295
      %v300 = vld [vmem:[%s1] sm:$0xff]
      %vm301 = vcmask 31744
      %v303 = vsel %vm301, %v300, 0
      %vm305 = vcmask 1043456
      %v307 = vsel %vm305, %v298, 0
      %v310 = vsel %vm305, %v299, 0
      %312 = vmatprep.subr.mxu0 %v310
      %313 = vmatpush1.msra.mxu0 %v307
      %314 = vmatprep.subr.mxu0 0.0
      %315 = vmatpush1.msra.mxu0 0.0
      %316 = vmatprep.subr.mxu0 0.0
      %317 = vmatpush1.msra.mxu0 0.0
      %318 = vmatprep.subr.mxu0 0.0
      %319 = vmatpush1.msra.mxu0 0.0
      %320 = vmatprep.subr.mxu0 0.0
      %321 = vmatpush1.msra.mxu0 0.0
      %322 = vmatprep.subr.mxu0 0.0
      %323 = vmatpush1.msra.mxu0 0.0
      %324 = vmatprep.subr.mxu0 0.0
      %325 = vmatpush1.msra.mxu0 0.0
      %326 = vmatprep.subr.mxu0 0.0
      %327 = vmatpush1.msra.mxu0 0.0
      %328 = vmatprep.subr.mxu0 0.0
      %329 = vmatpush1.msra.mxu0 0.0
      %330 = vmatprep.subr.mxu0 0.0
      %331 = vmatpush1.msra.mxu0 0.0
      %332 = vmatprep.subr.mxu0 0.0
      %333 = vmatpush1.msra.mxu0 0.0
      %334 = vmatprep.subr.mxu0 0.0
      %335 = vmatpush1.msra.mxu0 0.0
      %336 = vmatprep.subr.mxu0 0.0
      %337 = vmatpush1.msra.mxu0 0.0
      %338 = vmatprep.subr.mxu0 0.0
      %339 = vmatpush1.msra.mxu0 0.0
      %340 = vmatprep.subr.mxu0 0.0
      %341 = vmatpush1.msra.mxu0 0.0
      %342 = vmatprep.subr.mxu0 0.0
      %343 = vmatpush1.msra.mxu0 0.0
      %344 = vmatprep.subr.mxu0 0.0
      %345 = vmatpush1.msra.mxu0 0.0
      %346 = vmatprep.subr.mxu0 0.0
      %347 = vmatpush1.msra.mxu0 0.0
      %348 = vmatprep.subr.mxu0 0.0
      %349 = vmatpush1.msra.mxu0 0.0
      %350 = vmatprep.subr.mxu0 0.0
      %351 = vmatpush1.msra.mxu0 0.0
      %352 = vmatprep.subr.mxu0 0.0
      %353 = vmatpush1.msra.mxu0 0.0
      %354 = vmatprep.subr.mxu0 0.0
      %355 = vmatpush1.msra.mxu0 0.0
      %356 = vmatprep.subr.mxu0 0.0
      %357 = vmatpush1.msra.mxu0 0.0
      %358 = vmatprep.subr.mxu0 0.0
      %359 = vmatpush1.msra.mxu0 0.0
      %360 = vmatprep.subr.mxu0 0.0
      %361 = vmatpush1.msra.mxu0 0.0
      %362 = vmatprep.subr.mxu0 0.0
      %363 = vmatpush1.msra.mxu0 0.0
      %364 = vmatprep.subr.mxu0 0.0
      %365 = vmatpush1.msra.mxu0 0.0
      %366 = vmatprep.subr.mxu0 0.0
      %367 = vmatpush1.msra.mxu0 0.0
      %368 = vmatprep.subr.mxu0 0.0
      %369 = vmatpush1.msra.mxu0 0.0
      %370 = vmatprep.subr.mxu0 0.0
      %371 = vmatpush1.msra.mxu0 0.0
      %372 = vmatprep.subr.mxu0 0.0
      %373 = vmatpush1.msra.mxu0 0.0
      %374 = vmatprep.subr.mxu0 0.0
      %375 = vmatpush1.msra.mxu0 0.0
      %376 = vmatprep.mubr.f32.mxu0 0.0
      %377 = vmatmul.mubr.f32.gmra.mrb[0].mxu0 %v303
      %v378 = vpop.f32.mrb[0].mxu0
      %v379 = vadd.f32 0.0, %v378
      %v380 = vpop.f32.mrb[0].mxu0
      %v381 = vadd.f32 0.0, %v380
      %382 = vdwg.mxu0
      %383 = vst [vmem:[#allocation2] sm:$0xff] %v379
      %384 = vst [vmem:[#allocation2 + $0x8] sm:$0xff] %v381
      %385 = vrot.lane.b32.xlu0 %v273, 16
      %v386 = vpop.permute.xlu0 %385
      %387 = vrot.lane.b32.xlu0 %v275, 16
      %v388 = vpop.permute.xlu0 %387
      %vm389 = vcmp.lt.s32.totalorder %v282, 16
      %v390 = vsel %vm389, %v386, %v388
      %v391 = vsel %vm389, %v388, %v386
      %s392 = scalar_lea.vmem %s3, 1
      %v393 = vld [vmem:[%s392] ss:$8 sm:$0x3]
      %v395 = vlaneseq
      %v396 = vshrl.u32 %v395, 7
      %v397 = vsub.s32 0, %v396
      %v398 = vrot.slane %v393, %v397
      %v399 = vlaneseq
      %v400 = vshrl.u32 %v399, 7
      %v401 = vsub.s32 1, %v400
      %v402 = vrot.slane %v393, %v401
      %v405 = vmul.f32 %v391, %v398
      %v406 = vmul.f32 %v390, %v402
      %s407 = scalar_lea.vmem %s1, 8
      %v408 = vld [vmem:[%s407] sm:$0xff]
      %v410 = vsel %vm301, %v408, 0
      %v413 = vsel %vm305, %v405, 0
      %v416 = vsel %vm305, %v406, 0
      %418 = vmatprep.subr.mxu0 %v416
      %419 = vmatpush1.msra.mxu0 %v413
      %420 = vmatprep.subr.mxu0 0.0
      %421 = vmatpush1.msra.mxu0 0.0
      %422 = vmatprep.subr.mxu0 0.0
      %423 = vmatpush1.msra.mxu0 0.0
      %424 = vmatprep.subr.mxu0 0.0
      %425 = vmatpush1.msra.mxu0 0.0
      %426 = vmatprep.subr.mxu0 0.0
      %427 = vmatpush1.msra.mxu0 0.0
      %428 = vmatprep.subr.mxu0 0.0
      %429 = vmatpush1.msra.mxu0 0.0
      %430 = vmatprep.subr.mxu0 0.0
      %431 = vmatpush1.msra.mxu0 0.0
      %432 = vmatprep.subr.mxu0 0.0
      %433 = vmatpush1.msra.mxu0 0.0
      %434 = vmatprep.subr.mxu0 0.0
      %435 = vmatpush1.msra.mxu0 0.0
      %436 = vmatprep.subr.mxu0 0.0
      %437 = vmatpush1.msra.mxu0 0.0
      %438 = vmatprep.subr.mxu0 0.0
      %439 = vmatpush1.msra.mxu0 0.0
      %440 = vmatprep.subr.mxu0 0.0
      %441 = vmatpush1.msra.mxu0 0.0
      %442 = vmatprep.subr.mxu0 0.0
      %443 = vmatpush1.msra.mxu0 0.0
      %444 = vmatprep.subr.mxu0 0.0
      %445 = vmatpush1.msra.mxu0 0.0
      %446 = vmatprep.subr.mxu0 0.0
      %447 = vmatpush1.msra.mxu0 0.0
      %448 = vmatprep.subr.mxu0 0.0
      %449 = vmatpush1.msra.mxu0 0.0
      %450 = vmatprep.subr.mxu0 0.0
      %451 = vmatpush1.msra.mxu0 0.0
      %452 = vmatprep.subr.mxu0 0.0
      %453 = vmatpush1.msra.mxu0 0.0
      %454 = vmatprep.subr.mxu0 0.0
      %455 = vmatpush1.msra.mxu0 0.0
      %456 = vmatprep.subr.mxu0 0.0
      %457 = vmatpush1.msra.mxu0 0.0
      %458 = vmatprep.subr.mxu0 0.0
      %459 = vmatpush1.msra.mxu0 0.0
      %460 = vmatprep.subr.mxu0 0.0
      %461 = vmatpush1.msra.mxu0 0.0
      %462 = vmatprep.subr.mxu0 0.0
      %463 = vmatpush1.msra.mxu0 0.0
      %464 = vmatprep.subr.mxu0 0.0
      %465 = vmatpush1.msra.mxu0 0.0
      %466 = vmatprep.subr.mxu0 0.0
      %467 = vmatpush1.msra.mxu0 0.0
      %468 = vmatprep.subr.mxu0 0.0
      %469 = vmatpush1.msra.mxu0 0.0
      %470 = vmatprep.subr.mxu0 0.0
      %471 = vmatpush1.msra.mxu0 0.0
      %472 = vmatprep.subr.mxu0 0.0
      %473 = vmatpush1.msra.mxu0 0.0
      %474 = vmatprep.subr.mxu0 0.0
      %475 = vmatpush1.msra.mxu0 0.0
      %476 = vmatprep.subr.mxu0 0.0
      %477 = vmatpush1.msra.mxu0 0.0
      %478 = vmatprep.subr.mxu0 0.0
      %479 = vmatpush1.msra.mxu0 0.0
      %480 = vmatprep.subr.mxu0 0.0
      %481 = vmatpush1.msra.mxu0 0.0
      %482 = vmatprep.mubr.f32.mxu0 0.0
      %483 = vmatmul.mubr.f32.gmra.mrb[0].mxu0 %v410
      %v484 = vpop.f32.mrb[0].mxu0
      %v485 = vadd.f32 0.0, %v484
      %v486 = vpop.f32.mrb[0].mxu0
      %v487 = vadd.f32 0.0, %v486
      %488 = vdwg.mxu0
      %v489 = vld [vmem:[#allocation2] sm:$0xff]
      %v490 = vld [vmem:[#allocation2 + $0x8] sm:$0xff]
      %v491 = vadd.f32 %v489, %v485
      %v492 = vadd.f32 %v490, %v487
      %493 = vst [vmem:[#allocation2] sm:$0xff] %v491
      %494 = vst [vmem:[#allocation2 + $0x8] sm:$0xff] %v492
      %495 = vrot.lane.b32.xlu0 %v273, 15
      %v496 = vpop.permute.xlu0 %495
      %497 = vrot.lane.b32.xlu0 %v275, 15
      %v498 = vpop.permute.xlu0 %497
      %vm499 = vcmp.lt.s32.totalorder %v282, 15
      %v500 = vsel %vm499, %v496, %v498
      %v501 = vsel %vm499, %v498, %v496
      %s502 = scalar_lea.vmem %s3, 2
      %v503 = vld [vmem:[%s502] ss:$8 sm:$0x3]
      %v505 = vlaneseq
      %v506 = vshrl.u32 %v505, 7
      %v507 = vsub.s32 0, %v506
      %v508 = vrot.slane %v503, %v507
      %v509 = vlaneseq
      %v510 = vshrl.u32 %v509, 7
      %v511 = vsub.s32 1, %v510
      %v512 = vrot.slane %v503, %v511
      %v515 = vmul.f32 %v501, %v508
      %v516 = vmul.f32 %v500, %v512
      %s517 = scalar_lea.vmem %s1, 16
      %v518 = vld [vmem:[%s517] sm:$0xff]
      %v520 = vsel %vm301, %v518, 0
      %v523 = vsel %vm305, %v515, 0
      %v526 = vsel %vm305, %v516, 0
      %528 = vmatprep.subr.mxu0 %v526
      %529 = vmatpush1.msra.mxu0 %v523
      %530 = vmatprep.subr.mxu0 0.0
      %531 = vmatpush1.msra.mxu0 0.0
      %532 = vmatprep.subr.mxu0 0.0
      %533 = vmatpush1.msra.mxu0 0.0
      %534 = vmatprep.subr.mxu0 0.0
      %535 = vmatpush1.msra.mxu0 0.0
      %536 = vmatprep.subr.mxu0 0.0
      %537 = vmatpush1.msra.mxu0 0.0
      %538 = vmatprep.subr.mxu0 0.0
      %539 = vmatpush1.msra.mxu0 0.0
      %540 = vmatprep.subr.mxu0 0.0
      %541 = vmatpush1.msra.mxu0 0.0
      %542 = vmatprep.subr.mxu0 0.0
      %543 = vmatpush1.msra.mxu0 0.0
      %544 = vmatprep.subr.mxu0 0.0
      %545 = vmatpush1.msra.mxu0 0.0
      %546 = vmatprep.subr.mxu0 0.0
      %547 = vmatpush1.msra.mxu0 0.0
      %548 = vmatprep.subr.mxu0 0.0
      %549 = vmatpush1.msra.mxu0 0.0
      %550 = vmatprep.subr.mxu0 0.0
      %551 = vmatpush1.msra.mxu0 0.0
      %552 = vmatprep.subr.mxu0 0.0
      %553 = vmatpush1.msra.mxu0 0.0
      %554 = vmatprep.subr.mxu0 0.0
      %555 = vmatpush1.msra.mxu0 0.0
      %556 = vmatprep.subr.mxu0 0.0
      %557 = vmatpush1.msra.mxu0 0.0
      %558 = vmatprep.subr.mxu0 0.0
      %559 = vmatpush1.msra.mxu0 0.0
      %560 = vmatprep.subr.mxu0 0.0
      %561 = vmatpush1.msra.mxu0 0.0
      %562 = vmatprep.subr.mxu0 0.0
      %563 = vmatpush1.msra.mxu0 0.0
      %564 = vmatprep.subr.mxu0 0.0
      %565 = vmatpush1.msra.mxu0 0.0
      %566 = vmatprep.subr.mxu0 0.0
      %567 = vmatpush1.msra.mxu0 0.0
      %568 = vmatprep.subr.mxu0 0.0
      %569 = vmatpush1.msra.mxu0 0.0
      %570 = vmatprep.subr.mxu0 0.0
      %571 = vmatpush1.msra.mxu0 0.0
      %572 = vmatprep.subr.mxu0 0.0
      %573 = vmatpush1.msra.mxu0 0.0
      %574 = vmatprep.subr.mxu0 0.0
      %575 = vmatpush1.msra.mxu0 0.0
      %576 = vmatprep.subr.mxu0 0.0
      %577 = vmatpush1.msra.mxu0 0.0
      %578 = vmatprep.subr.mxu0 0.0
      %579 = vmatpush1.msra.mxu0 0.0
      %580 = vmatprep.subr.mxu0 0.0
      %581 = vmatpush1.msra.mxu0 0.0
      %582 = vmatprep.subr.mxu0 0.0
      %583 = vmatpush1.msra.mxu0 0.0
      %584 = vmatprep.subr.mxu0 0.0
      %585 = vmatpush1.msra.mxu0 0.0
      %586 = vmatprep.subr.mxu0 0.0
      %587 = vmatpush1.msra.mxu0 0.0
      %588 = vmatprep.subr.mxu0 0.0
      %589 = vmatpush1.msra.mxu0 0.0
      %590 = vmatprep.subr.mxu0 0.0
      %591 = vmatpush1.msra.mxu0 0.0
      %592 = vmatprep.mubr.f32.mxu0 0.0
      %593 = vmatmul.mubr.f32.gmra.mrb[0].mxu0 %v520
      %v594 = vpop.f32.mrb[0].mxu0
      %v595 = vadd.f32 0.0, %v594
      %v596 = vpop.f32.mrb[0].mxu0
      %v597 = vadd.f32 0.0, %v596
      %598 = vdwg.mxu0
      %v599 = vld [vmem:[#allocation2] sm:$0xff]
      %v600 = vld [vmem:[#allocation2 + $0x8] sm:$0xff]
      %v601 = vadd.f32 %v599, %v595
      %v602 = vadd.f32 %v600, %v597
      %603 = vst [vmem:[#allocation2] sm:$0xff] %v601
      %604 = vst [vmem:[#allocation2 + $0x8] sm:$0xff] %v602
      %605 = vrot.lane.b32.xlu0 %v273, 1
      %v606 = vpop.permute.xlu0 %605
      %607 = vrot.lane.b32.xlu0 %v275, 1
      %v608 = vpop.permute.xlu0 %607
      %vm609 = vcmp.lt.s32.totalorder %v282, 1
      %v610 = vsel %vm609, %v606, %v608
      %v611 = vsel %vm609, %v608, %v606
      %s612 = scalar_lea.vmem %s3, 3
      %v613 = vld [vmem:[%s612] ss:$8 sm:$0x3]
      %v615 = vlaneseq
      %v616 = vshrl.u32 %v615, 7
      %v617 = vsub.s32 0, %v616
      %v618 = vrot.slane %v613, %v617
      %v619 = vlaneseq
      %v620 = vshrl.u32 %v619, 7
      %v621 = vsub.s32 1, %v620
      %v622 = vrot.slane %v613, %v621
      %v625 = vmul.f32 %v611, %v618
      %v626 = vmul.f32 %v610, %v622
      %s627 = scalar_lea.vmem %s1, 24
      %v628 = vld [vmem:[%s627] sm:$0xff]
      %v630 = vsel %vm301, %v628, 0
      %v633 = vsel %vm305, %v625, 0
      %v636 = vsel %vm305, %v626, 0
      %638 = vmatprep.subr.mxu0 %v636
      %639 = vmatpush1.msra.mxu0 %v633
      %640 = vmatprep.subr.mxu0 0.0
      %641 = vmatpush1.msra.mxu0 0.0
      %642 = vmatprep.subr.mxu0 0.0
      %643 = vmatpush1.msra.mxu0 0.0
      %644 = vmatprep.subr.mxu0 0.0
      %645 = vmatpush1.msra.mxu0 0.0
      %646 = vmatprep.subr.mxu0 0.0
      %647 = vmatpush1.msra.mxu0 0.0
      %648 = vmatprep.subr.mxu0 0.0
      %649 = vmatpush1.msra.mxu0 0.0
      %650 = vmatprep.subr.mxu0 0.0
      %651 = vmatpush1.msra.mxu0 0.0
      %652 = vmatprep.subr.mxu0 0.0
      %653 = vmatpush1.msra.mxu0 0.0
      %654 = vmatprep.subr.mxu0 0.0
      %655 = vmatpush1.msra.mxu0 0.0
      %656 = vmatprep.subr.mxu0 0.0
      %657 = vmatpush1.msra.mxu0 0.0
      %658 = vmatprep.subr.mxu0 0.0
      %659 = vmatpush1.msra.mxu0 0.0
      %660 = vmatprep.subr.mxu0 0.0
      %661 = vmatpush1.msra.mxu0 0.0
      %662 = vmatprep.subr.mxu0 0.0
      %663 = vmatpush1.msra.mxu0 0.0
      %664 = vmatprep.subr.mxu0 0.0
      %665 = vmatpush1.msra.mxu0 0.0
      %666 = vmatprep.subr.mxu0 0.0
      %667 = vmatpush1.msra.mxu0 0.0
      %668 = vmatprep.subr.mxu0 0.0
      %669 = vmatpush1.msra.mxu0 0.0
      %670 = vmatprep.subr.mxu0 0.0
      %671 = vmatpush1.msra.mxu0 0.0
      %672 = vmatprep.subr.mxu0 0.0
      %673 = vmatpush1.msra.mxu0 0.0
      %674 = vmatprep.subr.mxu0 0.0
      %675 = vmatpush1.msra.mxu0 0.0
      %676 = vmatprep.subr.mxu0 0.0
      %677 = vmatpush1.msra.mxu0 0.0
      %678 = vmatprep.subr.mxu0 0.0
      %679 = vmatpush1.msra.mxu0 0.0
      %680 = vmatprep.subr.mxu0 0.0
      %681 = vmatpush1.msra.mxu0 0.0
      %682 = vmatprep.subr.mxu0 0.0
      %683 = vmatpush1.msra.mxu0 0.0
      %684 = vmatprep.subr.mxu0 0.0
      %685 = vmatpush1.msra.mxu0 0.0
      %686 = vmatprep.subr.mxu0 0.0
      %687 = vmatpush1.msra.mxu0 0.0
      %688 = vmatprep.subr.mxu0 0.0
      %689 = vmatpush1.msra.mxu0 0.0
      %690 = vmatprep.subr.mxu0 0.0
      %691 = vmatpush1.msra.mxu0 0.0
      %692 = vmatprep.subr.mxu0 0.0
      %693 = vmatpush1.msra.mxu0 0.0
      %694 = vmatprep.subr.mxu0 0.0
      %695 = vmatpush1.msra.mxu0 0.0
      %696 = vmatprep.subr.mxu0 0.0
      %697 = vmatpush1.msra.mxu0 0.0
      %698 = vmatprep.subr.mxu0 0.0
      %699 = vmatpush1.msra.mxu0 0.0
      %700 = vmatprep.subr.mxu0 0.0
      %701 = vmatpush1.msra.mxu0 0.0
      %702 = vmatprep.mubr.f32.mxu0 0.0
      %703 = vmatmul.mubr.f32.gmra.mrb[0].mxu0 %v630
      %v704 = vpop.f32.mrb[0].mxu0
      %v705 = vadd.f32 0.0, %v704
      %v706 = vpop.f32.mrb[0].mxu0
      %v707 = vadd.f32 0.0, %v706
      %708 = vdwg.mxu0
      %v709 = vld [vmem:[#allocation2] sm:$0xff]
      %v710 = vld [vmem:[#allocation2 + $0x8] sm:$0xff]
      %v711 = vadd.f32 %v709, %v705
      %v712 = vadd.f32 %v710, %v707
      %713 = vst [vmem:[#allocation2] sm:$0xff] %v711
      %714 = vst [vmem:[#allocation2 + $0x8] sm:$0xff] %v712
      %s715 = scalar_lea.vmem %s3, 4
      %v716 = vld [vmem:[%s715] ss:$8 sm:$0x3]
      %v718 = vlaneseq
      %v719 = vshrl.u32 %v718, 7
      %v720 = vsub.s32 0, %v719
      %v721 = vrot.slane %v716, %v720
      %v722 = vlaneseq
      %v723 = vshrl.u32 %v722, 7
      %v724 = vsub.s32 1, %v723
      %v725 = vrot.slane %v716, %v724
      %v726 = vcombine.low %v721, %v725
      %v728 = vmul.f32 %v273, %v726
      %s729 = scalar_lea.vmem %s1, 32
      %v730 = vld [vmem:[%s729] sm:$0xff]
      %v732 = vcombine.high %v728, %v728
      %v734 = vsel %vm301, %v730, 0
      %v736 = vsel %vm305, %v728, 0
      %v738 = vsel %vm305, %v732, 0
      %740 = vmatprep.subr.mxu0 %v738
      %741 = vmatpush1.msra.mxu0 %v736
      %742 = vmatprep.subr.mxu0 0.0
      %743 = vmatpush1.msra.mxu0 0.0
      %744 = vmatprep.subr.mxu0 0.0
      %745 = vmatpush1.msra.mxu0 0.0
      %746 = vmatprep.subr.mxu0 0.0
      %747 = vmatpush1.msra.mxu0 0.0
      %748 = vmatprep.subr.mxu0 0.0
      %749 = vmatpush1.msra.mxu0 0.0
      %750 = vmatprep.subr.mxu0 0.0
      %751 = vmatpush1.msra.mxu0 0.0
      %752 = vmatprep.subr.mxu0 0.0
      %753 = vmatpush1.msra.mxu0 0.0
      %754 = vmatprep.subr.mxu0 0.0
      %755 = vmatpush1.msra.mxu0 0.0
      %756 = vmatprep.subr.mxu0 0.0
      %757 = vmatpush1.msra.mxu0 0.0
      %758 = vmatprep.subr.mxu0 0.0
      %759 = vmatpush1.msra.mxu0 0.0
      %760 = vmatprep.subr.mxu0 0.0
      %761 = vmatpush1.msra.mxu0 0.0
      %762 = vmatprep.subr.mxu0 0.0
      %763 = vmatpush1.msra.mxu0 0.0
      %764 = vmatprep.subr.mxu0 0.0
      %765 = vmatpush1.msra.mxu0 0.0
      %766 = vmatprep.subr.mxu0 0.0
      %767 = vmatpush1.msra.mxu0 0.0
      %768 = vmatprep.subr.mxu0 0.0
      %769 = vmatpush1.msra.mxu0 0.0
      %770 = vmatprep.subr.mxu0 0.0
      %771 = vmatpush1.msra.mxu0 0.0
      %772 = vmatprep.subr.mxu0 0.0
      %773 = vmatpush1.msra.mxu0 0.0
      %774 = vmatprep.subr.mxu0 0.0
      %775 = vmatpush1.msra.mxu0 0.0
      %776 = vmatprep.subr.mxu0 0.0
      %777 = vmatpush1.msra.mxu0 0.0
      %778 = vmatprep.subr.mxu0 0.0
      %779 = vmatpush1.msra.mxu0 0.0
      %780 = vmatprep.subr.mxu0 0.0
      %781 = vmatpush1.msra.mxu0 0.0
      %782 = vmatprep.subr.mxu0 0.0
      %783 = vmatpush1.msra.mxu0 0.0
      %784 = vmatprep.subr.mxu0 0.0
      %785 = vmatpush1.msra.mxu0 0.0
      %786 = vmatprep.subr.mxu0 0.0
      %787 = vmatpush1.msra.mxu0 0.0
      %788 = vmatprep.subr.mxu0 0.0
      %789 = vmatpush1.msra.mxu0 0.0
      %790 = vmatprep.subr.mxu0 0.0
      %791 = vmatpush1.msra.mxu0 0.0
      %792 = vmatprep.subr.mxu0 0.0
      %793 = vmatpush1.msra.mxu0 0.0
      %794 = vmatprep.subr.mxu0 0.0
      %795 = vmatpush1.msra.mxu0 0.0
      %796 = vmatprep.subr.mxu0 0.0
      %797 = vmatpush1.msra.mxu0 0.0
      %798 = vmatprep.subr.mxu0 0.0
      %799 = vmatpush1.msra.mxu0 0.0
      %800 = vmatprep.subr.mxu0 0.0
      %801 = vmatpush1.msra.mxu0 0.0
      %802 = vmatprep.subr.mxu0 0.0
      %803 = vmatpush1.msra.mxu0 0.0
      %804 = vmatprep.mubr.f32.mxu0 0.0
      %805 = vmatmul.mubr.f32.gmra.mrb[0].mxu0 %v734
      %v806 = vpop.f32.mrb[0].mxu0
      %v807 = vadd.f32 0.0, %v806
      %v808 = vpop.f32.mrb[0].mxu0
      %v809 = vadd.f32 0.0, %v808
      %810 = vdwg.mxu0
      %v811 = vld [vmem:[#allocation2] sm:$0xff]
      %v812 = vld [vmem:[#allocation2 + $0x8] sm:$0xff]
      %v813 = vadd.f32 %v811, %v807
      %v814 = vadd.f32 %v812, %v809
      %815 = vst [vmem:[#allocation2] sm:$0xff] %v813
      %816 = vst [vmem:[#allocation2 + $0x8] sm:$0xff] %v814
      %817 = vrot.lane.b32.xlu0 %v273, 127
      %v818 = vpop.permute.xlu0 %817
      %819 = vrot.lane.b32.xlu0 %v275, 127
      %v820 = vpop.permute.xlu0 %819
      %vm821 = vcmp.lt.s32.totalorder %v282, 127
      %v822 = vsel %vm821, %v818, %v820
      %v823 = vsel %vm821, %v820, %v818
      %s824 = scalar_lea.vmem %s3, 5
      %v825 = vld [vmem:[%s824] ss:$8 sm:$0x3]
      %v827 = vlaneseq
      %v828 = vshrl.u32 %v827, 7
      %v829 = vsub.s32 0, %v828
      %v830 = vrot.slane %v825, %v829
      %v831 = vlaneseq
      %v832 = vshrl.u32 %v831, 7
      %v833 = vsub.s32 1, %v832
      %v834 = vrot.slane %v825, %v833
      %v837 = vmul.f32 %v822, %v830
      %v838 = vmul.f32 %v823, %v834
      %s839 = scalar_lea.vmem %s1, 40
      %v840 = vld [vmem:[%s839] sm:$0xff]
      %v842 = vsel %vm301, %v840, 0
      %v845 = vsel %vm305, %v837, 0
      %v848 = vsel %vm305, %v838, 0
      %850 = vmatprep.subr.mxu0 %v848
      %851 = vmatpush1.msra.mxu0 %v845
      %852 = vmatprep.subr.mxu0 0.0
      %853 = vmatpush1.msra.mxu0 0.0
      %854 = vmatprep.subr.mxu0 0.0
      %855 = vmatpush1.msra.mxu0 0.0
      %856 = vmatprep.subr.mxu0 0.0
      %857 = vmatpush1.msra.mxu0 0.0
      %858 = vmatprep.subr.mxu0 0.0
      %859 = vmatpush1.msra.mxu0 0.0
      %860 = vmatprep.subr.mxu0 0.0
      %861 = vmatpush1.msra.mxu0 0.0
      %862 = vmatprep.subr.mxu0 0.0
      %863 = vmatpush1.msra.mxu0 0.0
      %864 = vmatprep.subr.mxu0 0.0
      %865 = vmatpush1.msra.mxu0 0.0
      %866 = vmatprep.subr.mxu0 0.0
      %867 = vmatpush1.msra.mxu0 0.0
      %868 = vmatprep.subr.mxu0 0.0
      %869 = vmatpush1.msra.mxu0 0.0
      %870 = vmatprep.subr.mxu0 0.0
      %871 = vmatpush1.msra.mxu0 0.0
      %872 = vmatprep.subr.mxu0 0.0
      %873 = vmatpush1.msra.mxu0 0.0
      %874 = vmatprep.subr.mxu0 0.0
      %875 = vmatpush1.msra.mxu0 0.0
      %876 = vmatprep.subr.mxu0 0.0
      %877 = vmatpush1.msra.mxu0 0.0
      %878 = vmatprep.subr.mxu0 0.0
      %879 = vmatpush1.msra.mxu0 0.0
      %880 = vmatprep.subr.mxu0 0.0
      %881 = vmatpush1.msra.mxu0 0.0
      %882 = vmatprep.subr.mxu0 0.0
      %883 = vmatpush1.msra.mxu0 0.0
      %884 = vmatprep.subr.mxu0 0.0
      %885 = vmatpush1.msra.mxu0 0.0
      %886 = vmatprep.subr.mxu0 0.0
      %887 = vmatpush1.msra.mxu0 0.0
      %888 = vmatprep.subr.mxu0 0.0
      %889 = vmatpush1.msra.mxu0 0.0
      %890 = vmatprep.subr.mxu0 0.0
      %891 = vmatpush1.msra.mxu0 0.0
      %892 = vmatprep.subr.mxu0 0.0
      %893 = vmatpush1.msra.mxu0 0.0
      %894 = vmatprep.subr.mxu0 0.0
      %895 = vmatpush1.msra.mxu0 0.0
      %896 = vmatprep.subr.mxu0 0.0
      %897 = vmatpush1.msra.mxu0 0.0
      %898 = vmatprep.subr.mxu0 0.0
      %899 = vmatpush1.msra.mxu0 0.0
      %900 = vmatprep.subr.mxu0 0.0
      %901 = vmatpush1.msra.mxu0 0.0
      %902 = vmatprep.subr.mxu0 0.0
      %903 = vmatpush1.msra.mxu0 0.0
      %904 = vmatprep.subr.mxu0 0.0
      %905 = vmatpush1.msra.mxu0 0.0
      %906 = vmatprep.subr.mxu0 0.0
      %907 = vmatpush1.msra.mxu0 0.0
      %908 = vmatprep.subr.mxu0 0.0
      %909 = vmatpush1.msra.mxu0 0.0
      %910 = vmatprep.subr.mxu0 0.0
      %911 = vmatpush1.msra.mxu0 0.0
      %912 = vmatprep.subr.mxu0 0.0
      %913 = vmatpush1.msra.mxu0 0.0
      %914 = vmatprep.mubr.f32.mxu0 0.0
      %915 = vmatmul.mubr.f32.gmra.mrb[0].mxu0 %v842
      %v916 = vpop.f32.mrb[0].mxu0
      %v917 = vadd.f32 0.0, %v916
      %v918 = vpop.f32.mrb[0].mxu0
      %v919 = vadd.f32 0.0, %v918
      %920 = vdwg.mxu0
      %v921 = vld [vmem:[#allocation2] sm:$0xff]
      %v922 = vld [vmem:[#allocation2 + $0x8] sm:$0xff]
      %v923 = vadd.f32 %v921, %v917
      %v924 = vadd.f32 %v922, %v919
      %925 = vst [vmem:[#allocation2] sm:$0xff] %v923
      %926 = vst [vmem:[#allocation2 + $0x8] sm:$0xff] %v924
      %927 = vrot.lane.b32.xlu0 %v273, 113
      %v928 = vpop.permute.xlu0 %927
      %929 = vrot.lane.b32.xlu0 %v275, 113
      %v930 = vpop.permute.xlu0 %929
      %vm931 = vcmp.lt.s32.totalorder %v282, 113
      %v932 = vsel %vm931, %v928, %v930
      %v933 = vsel %vm931, %v930, %v928
      %s934 = scalar_lea.vmem %s3, 6
      %v935 = vld [vmem:[%s934] ss:$8 sm:$0x3]
      %v937 = vlaneseq
      %v938 = vshrl.u32 %v937, 7
      %v939 = vsub.s32 0, %v938
      %v940 = vrot.slane %v935, %v939
      %v941 = vlaneseq
      %v942 = vshrl.u32 %v941, 7
      %v943 = vsub.s32 1, %v942
      %v944 = vrot.slane %v935, %v943
      %v947 = vmul.f32 %v932, %v940
      %v948 = vmul.f32 %v933, %v944
      %s949 = scalar_lea.vmem %s1, 48
      %v950 = vld [vmem:[%s949] sm:$0xff]
      %v952 = vsel %vm301, %v950, 0
      %v955 = vsel %vm305, %v947, 0
      %v958 = vsel %vm305, %v948, 0
      %960 = vmatprep.subr.mxu0 %v958
      %961 = vmatpush1.msra.mxu0 %v955
      %962 = vmatprep.subr.mxu0 0.0
      %963 = vmatpush1.msra.mxu0 0.0
      %964 = vmatprep.subr.mxu0 0.0
      %965 = vmatpush1.msra.mxu0 0.0
      %966 = vmatprep.subr.mxu0 0.0
      %967 = vmatpush1.msra.mxu0 0.0
      %968 = vmatprep.subr.mxu0 0.0
      %969 = vmatpush1.msra.mxu0 0.0
      %970 = vmatprep.subr.mxu0 0.0
      %971 = vmatpush1.msra.mxu0 0.0
      %972 = vmatprep.subr.mxu0 0.0
      %973 = vmatpush1.msra.mxu0 0.0
      %974 = vmatprep.subr.mxu0 0.0
      %975 = vmatpush1.msra.mxu0 0.0
      %976 = vmatprep.subr.mxu0 0.0
      %977 = vmatpush1.msra.mxu0 0.0
      %978 = vmatprep.subr.mxu0 0.0
      %979 = vmatpush1.msra.mxu0 0.0
      %980 = vmatprep.subr.mxu0 0.0
      %981 = vmatpush1.msra.mxu0 0.0
      %982 = vmatprep.subr.mxu0 0.0
      %983 = vmatpush1.msra.mxu0 0.0
      %984 = vmatprep.subr.mxu0 0.0
      %985 = vmatpush1.msra.mxu0 0.0
      %986 = vmatprep.subr.mxu0 0.0
      %987 = vmatpush1.msra.mxu0 0.0
      %988 = vmatprep.subr.mxu0 0.0
      %989 = vmatpush1.msra.mxu0 0.0
      %990 = vmatprep.subr.mxu0 0.0
      %991 = vmatpush1.msra.mxu0 0.0
      %992 = vmatprep.subr.mxu0 0.0
      %993 = vmatpush1.msra.mxu0 0.0
      %994 = vmatprep.subr.mxu0 0.0
      %995 = vmatpush1.msra.mxu0 0.0
      %996 = vmatprep.subr.mxu0 0.0
      %997 = vmatpush1.msra.mxu0 0.0
      %998 = vmatprep.subr.mxu0 0.0
      %999 = vmatpush1.msra.mxu0 0.0
      %1000 = vmatprep.subr.mxu0 0.0
      %1001 = vmatpush1.msra.mxu0 0.0
      %1002 = vmatprep.subr.mxu0 0.0
      %1003 = vmatpush1.msra.mxu0 0.0
      %1004 = vmatprep.subr.mxu0 0.0
      %1005 = vmatpush1.msra.mxu0 0.0
      %1006 = vmatprep.subr.mxu0 0.0
      %1007 = vmatpush1.msra.mxu0 0.0
      %1008 = vmatprep.subr.mxu0 0.0
      %1009 = vmatpush1.msra.mxu0 0.0
      %1010 = vmatprep.subr.mxu0 0.0
      %1011 = vmatpush1.msra.mxu0 0.0
      %1012 = vmatprep.subr.mxu0 0.0
      %1013 = vmatpush1.msra.mxu0 0.0
      %1014 = vmatprep.subr.mxu0 0.0
      %1015 = vmatpush1.msra.mxu0 0.0
      %1016 = vmatprep.subr.mxu0 0.0
      %1017 = vmatpush1.msra.mxu0 0.0
      %1018 = vmatprep.subr.mxu0 0.0
      %1019 = vmatpush1.msra.mxu0 0.0
      %1020 = vmatprep.subr.mxu0 0.0
      %1021 = vmatpush1.msra.mxu0 0.0
      %1022 = vmatprep.subr.mxu0 0.0
      %1023 = vmatpush1.msra.mxu0 0.0
      %1024 = vmatprep.mubr.f32.mxu0 0.0
      %1025 = vmatmul.mubr.f32.gmra.mrb[0].mxu0 %v952
      %v1026 = vpop.f32.mrb[0].mxu0
      %v1027 = vadd.f32 0.0, %v1026
      %v1028 = vpop.f32.mrb[0].mxu0
      %v1029 = vadd.f32 0.0, %v1028
      %1030 = vdwg.mxu0
      %v1031 = vld [vmem:[#allocation2] sm:$0xff]
      %v1032 = vld [vmem:[#allocation2 + $0x8] sm:$0xff]
      %v1033 = vadd.f32 %v1031, %v1027
      %v1034 = vadd.f32 %v1032, %v1029
      %1035 = vst [vmem:[#allocation2] sm:$0xff] %v1033
      %1036 = vst [vmem:[#allocation2 + $0x8] sm:$0xff] %v1034
      %1037 = vrot.lane.b32.xlu0 %v273, 112
      %v1038 = vpop.permute.xlu0 %1037
      %1039 = vrot.lane.b32.xlu0 %v275, 112
      %v1040 = vpop.permute.xlu0 %1039
      %vm1041 = vcmp.lt.s32.totalorder %v282, 112
      %v1042 = vsel %vm1041, %v1038, %v1040
      %v1043 = vsel %vm1041, %v1040, %v1038
      %s1044 = scalar_lea.vmem %s3, 7
      %v1045 = vld [vmem:[%s1044] ss:$8 sm:$0x3]
      %v1047 = vlaneseq
      %v1048 = vshrl.u32 %v1047, 7
      %v1049 = vsub.s32 0, %v1048
      %v1050 = vrot.slane %v1045, %v1049
      %v1051 = vlaneseq
      %v1052 = vshrl.u32 %v1051, 7
      %v1053 = vsub.s32 1, %v1052
      %v1054 = vrot.slane %v1045, %v1053
      %v1057 = vmul.f32 %v1042, %v1050
      %v1058 = vmul.f32 %v1043, %v1054
      %s1059 = scalar_lea.vmem %s1, 56
      %v1060 = vld [vmem:[%s1059] sm:$0xff]
      %v1062 = vsel %vm301, %v1060, 0
      %v1065 = vsel %vm305, %v1057, 0
      %v1068 = vsel %vm305, %v1058, 0
      %1070 = vmatprep.subr.mxu0 %v1068
      %1071 = vmatpush1.msra.mxu0 %v1065
      %1072 = vmatprep.subr.mxu0 0.0
      %1073 = vmatpush1.msra.mxu0 0.0
      %1074 = vmatprep.subr.mxu0 0.0
      %1075 = vmatpush1.msra.mxu0 0.0
      %1076 = vmatprep.subr.mxu0 0.0
      %1077 = vmatpush1.msra.mxu0 0.0
      %1078 = vmatprep.subr.mxu0 0.0
      %1079 = vmatpush1.msra.mxu0 0.0
      %1080 = vmatprep.subr.mxu0 0.0
      %1081 = vmatpush1.msra.mxu0 0.0
      %1082 = vmatprep.subr.mxu0 0.0
      %1083 = vmatpush1.msra.mxu0 0.0
      %1084 = vmatprep.subr.mxu0 0.0
      %1085 = vmatpush1.msra.mxu0 0.0
      %1086 = vmatprep.subr.mxu0 0.0
      %1087 = vmatpush1.msra.mxu0 0.0
      %1088 = vmatprep.subr.mxu0 0.0
      %1089 = vmatpush1.msra.mxu0 0.0
      %1090 = vmatprep.subr.mxu0 0.0
      %1091 = vmatpush1.msra.mxu0 0.0
      %1092 = vmatprep.subr.mxu0 0.0
      %1093 = vmatpush1.msra.mxu0 0.0
      %1094 = vmatprep.subr.mxu0 0.0
      %1095 = vmatpush1.msra.mxu0 0.0
      %1096 = vmatprep.subr.mxu0 0.0
      %1097 = vmatpush1.msra.mxu0 0.0
      %1098 = vmatprep.subr.mxu0 0.0
      %1099 = vmatpush1.msra.mxu0 0.0
      %1100 = vmatprep.subr.mxu0 0.0
      %1101 = vmatpush1.msra.mxu0 0.0
      %1102 = vmatprep.subr.mxu0 0.0
      %1103 = vmatpush1.msra.mxu0 0.0
      %1104 = vmatprep.subr.mxu0 0.0
      %1105 = vmatpush1.msra.mxu0 0.0
      %1106 = vmatprep.subr.mxu0 0.0
      %1107 = vmatpush1.msra.mxu0 0.0
      %1108 = vmatprep.subr.mxu0 0.0
      %1109 = vmatpush1.msra.mxu0 0.0
      %1110 = vmatprep.subr.mxu0 0.0
      %1111 = vmatpush1.msra.mxu0 0.0
      %1112 = vmatprep.subr.mxu0 0.0
      %1113 = vmatpush1.msra.mxu0 0.0
      %1114 = vmatprep.subr.mxu0 0.0
      %1115 = vmatpush1.msra.mxu0 0.0
      %1116 = vmatprep.subr.mxu0 0.0
      %1117 = vmatpush1.msra.mxu0 0.0
      %1118 = vmatprep.subr.mxu0 0.0
      %1119 = vmatpush1.msra.mxu0 0.0
      %1120 = vmatprep.subr.mxu0 0.0
      %1121 = vmatpush1.msra.mxu0 0.0
      %1122 = vmatprep.subr.mxu0 0.0
      %1123 = vmatpush1.msra.mxu0 0.0
      %1124 = vmatprep.subr.mxu0 0.0
      %1125 = vmatpush1.msra.mxu0 0.0
      %1126 = vmatprep.subr.mxu0 0.0
      %1127 = vmatpush1.msra.mxu0 0.0
      %1128 = vmatprep.subr.mxu0 0.0
      %1129 = vmatpush1.msra.mxu0 0.0
      %1130 = vmatprep.subr.mxu0 0.0
      %1131 = vmatpush1.msra.mxu0 0.0
      %1132 = vmatprep.subr.mxu0 0.0
      %1133 = vmatpush1.msra.mxu0 0.0
      %1134 = vmatprep.mubr.f32.mxu0 0.0
      %1135 = vmatmul.mubr.f32.gmra.mrb[0].mxu0 %v1062
      %v1136 = vpop.f32.mrb[0].mxu0
      %v1137 = vadd.f32 0.0, %v1136
      %v1138 = vpop.f32.mrb[0].mxu0
      %v1139 = vadd.f32 0.0, %v1138
      %1140 = vdwg.mxu0
      %v1141 = vld [vmem:[#allocation2] sm:$0xff]
      %v1142 = vld [vmem:[#allocation2 + $0x8] sm:$0xff]
      %v1143 = vadd.f32 %v1141, %v1137
      %v1144 = vadd.f32 %v1142, %v1139
      %1145 = vst [vmem:[#allocation2] sm:$0xff] %v1143
      %1146 = vst [vmem:[#allocation2 + $0x8] sm:$0xff] %v1144
      %1147 = vrot.lane.b32.xlu0 %v273, 111
      %v1148 = vpop.permute.xlu0 %1147
      %1149 = vrot.lane.b32.xlu0 %v275, 111
      %v1150 = vpop.permute.xlu0 %1149
      %vm1151 = vcmp.lt.s32.totalorder %v282, 111
      %v1152 = vsel %vm1151, %v1148, %v1150
      %v1153 = vsel %vm1151, %v1150, %v1148
      %s1154 = scalar_lea.vmem %s3, 16
      %v1155 = vld [vmem:[%s1154] ss:$8 sm:$0x3]
      %v1157 = vlaneseq
      %v1158 = vshrl.u32 %v1157, 7
      %v1159 = vsub.s32 0, %v1158
      %v1160 = vrot.slane %v1155, %v1159
      %v1161 = vlaneseq
      %v1162 = vshrl.u32 %v1161, 7
      %v1163 = vsub.s32 1, %v1162
      %v1164 = vrot.slane %v1155, %v1163
      %v1167 = vmul.f32 %v1152, %v1160
      %v1168 = vmul.f32 %v1153, %v1164
      %s1169 = scalar_lea.vmem %s1, 64
      %v1170 = vld [vmem:[%s1169] sm:$0xff]
      %v1172 = vsel %vm301, %v1170, 0
      %v1175 = vsel %vm305, %v1167, 0
      %v1178 = vsel %vm305, %v1168, 0
      %1180 = vmatprep.subr.mxu0 %v1178
      %1181 = vmatpush1.msra.mxu0 %v1175
      %1182 = vmatprep.subr.mxu0 0.0
      %1183 = vmatpush1.msra.mxu0 0.0
      %1184 = vmatprep.subr.mxu0 0.0
      %1185 = vmatpush1.msra.mxu0 0.0
      %1186 = vmatprep.subr.mxu0 0.0
      %1187 = vmatpush1.msra.mxu0 0.0
      %1188 = vmatprep.subr.mxu0 0.0
      %1189 = vmatpush1.msra.mxu0 0.0
      %1190 = vmatprep.subr.mxu0 0.0
      %1191 = vmatpush1.msra.mxu0 0.0
      %1192 = vmatprep.subr.mxu0 0.0
      %1193 = vmatpush1.msra.mxu0 0.0
      %1194 = vmatprep.subr.mxu0 0.0
      %1195 = vmatpush1.msra.mxu0 0.0
      %1196 = vmatprep.subr.mxu0 0.0
      %1197 = vmatpush1.msra.mxu0 0.0
      %1198 = vmatprep.subr.mxu0 0.0
      %1199 = vmatpush1.msra.mxu0 0.0
      %1200 = vmatprep.subr.mxu0 0.0
      %1201 = vmatpush1.msra.mxu0 0.0
      %1202 = vmatprep.subr.mxu0 0.0
      %1203 = vmatpush1.msra.mxu0 0.0
      %1204 = vmatprep.subr.mxu0 0.0
      %1205 = vmatpush1.msra.mxu0 0.0
      %1206 = vmatprep.subr.mxu0 0.0
      %1207 = vmatpush1.msra.mxu0 0.0
      %1208 = vmatprep.subr.mxu0 0.0
      %1209 = vmatpush1.msra.mxu0 0.0
      %1210 = vmatprep.subr.mxu0 0.0
      %1211 = vmatpush1.msra.mxu0 0.0
      %1212 = vmatprep.subr.mxu0 0.0
      %1213 = vmatpush1.msra.mxu0 0.0
      %1214 = vmatprep.subr.mxu0 0.0
      %1215 = vmatpush1.msra.mxu0 0.0
      %1216 = vmatprep.subr.mxu0 0.0
      %1217 = vmatpush1.msra.mxu0 0.0
      %1218 = vmatprep.subr.mxu0 0.0
      %1219 = vmatpush1.msra.mxu0 0.0
      %1220 = vmatprep.subr.mxu0 0.0
      %1221 = vmatpush1.msra.mxu0 0.0
      %1222 = vmatprep.subr.mxu0 0.0
      %1223 = vmatpush1.msra.mxu0 0.0
      %1224 = vmatprep.subr.mxu0 0.0
      %1225 = vmatpush1.msra.mxu0 0.0
      %1226 = vmatprep.subr.mxu0 0.0
      %1227 = vmatpush1.msra.mxu0 0.0
      %1228 = vmatprep.subr.mxu0 0.0
      %1229 = vmatpush1.msra.mxu0 0.0
      %1230 = vmatprep.subr.mxu0 0.0
      %1231 = vmatpush1.msra.mxu0 0.0
      %1232 = vmatprep.subr.mxu0 0.0
      %1233 = vmatpush1.msra.mxu0 0.0
      %1234 = vmatprep.subr.mxu0 0.0
      %1235 = vmatpush1.msra.mxu0 0.0
      %1236 = vmatprep.subr.mxu0 0.0
      %1237 = vmatpush1.msra.mxu0 0.0
      %1238 = vmatprep.subr.mxu0 0.0
      %1239 = vmatpush1.msra.mxu0 0.0
      %1240 = vmatprep.subr.mxu0 0.0
      %1241 = vmatpush1.msra.mxu0 0.0
      %1242 = vmatprep.subr.mxu0 0.0
      %1243 = vmatpush1.msra.mxu0 0.0
      %1244 = vmatprep.mubr.f32.mxu0 0.0
      %1245 = vmatmul.mubr.f32.gmra.mrb[0].mxu0 %v1172
      %v1246 = vpop.f32.mrb[0].mxu0
      %v1247 = vadd.f32 0.0, %v1246
      %v1248 = vpop.f32.mrb[0].mxu0
      %v1249 = vadd.f32 0.0, %v1248
      %1250 = vdwg.mxu0
      %v1251 = vld [vmem:[#allocation2] sm:$0xff]
      %v1252 = vld [vmem:[#allocation2 + $0x8] sm:$0xff]
      %v1253 = vadd.f32 %v1251, %v1247
      %v1254 = vadd.f32 %v1252, %v1249
      %1255 = vst [vmem:[#allocation2] sm:$0xff] %v1253
      %1256 = vst [vmem:[#allocation2 + $0x8] sm:$0xff] %v1254
      %v1257 = vld [vmem:[#allocation2] sm:$0xff]
      %v1258 = vld [vmem:[#allocation2 + $0x8] sm:$0xff]
      %v1259 = vld [vmem:[%s2] sm:$0xff]
      %1261 = vset.pattern.permute.xlu0 0
      %1262 = vperm.xlu0 %1261, %v1259
      %v1263 = vpop.permute.xlu0 %1262
      %v1265 = vadd.f32 %v1257, %v1263
      %v1266 = vadd.f32 %v1258, %v1263
      %1267 = vst [vmem:[%s264] sm:$0xff] %v1265
      %1268 = vst [vmem:[%s264 + $0x8] sm:$0xff] %v1266
      %v1269 = vadd.f32 %v1265, %v1266
      %1270 = vadd.xlane.f32.xlu0 %v1269
      %v1271 = vpop.xlane.xlu0 %1270
      %vm1272 = vcmask 7168
      %1273 = vst.msk [vmem:[%s268] sm:$0xff] %vm1272, %v1271
      %v1274 = vmul.f32 %v1265, %v1265
      %v1275 = vmul.f32 %v1266, %v1266
      %v1276 = vadd.f32 %v1274, %v1275
      %1277 = vadd.xlane.f32.xlu0 %v1276
      %v1278 = vpop.xlane.xlu0 %1277
      %1279 = vst.msk [vmem:[%s272] sm:$0xff] %vm1272, %v1278
      %p1280 = scmp.lt.s32.totalorder %s18, 1
      %s1281 = scalar_select %p1280, %s18, 1
      %s1282 = smul.addr %s1281, 2
      %s1283 = smul.addr %s1282, 8
      %s1284 = scalar_lea.vmem %s4, %s1283
      %p1285 = scmp.lt.s32.totalorder %s18, 1
      %s1286 = scalar_select %p1285, %s18, 1
      %s1287 = smul.addr %s1286, 8
      %s1288 = scalar_lea.vmem %s5, %s1287
      %p1289 = scmp.lt.s32.totalorder %s18, 1
      %s1290 = scalar_select %p1289, %s18, 1
      %s1291 = smul.addr %s1290, 8
      %s1292 = scalar_lea.vmem %s6, %s1291
      // Predicated region
      $region37: #{res_block_forward.3} parent=35 // pred_check
        %p1293 = pneg %p125
      $region38: #{res_block_forward.3} parent=35 // pred_check_branch
        %1295 = sbr.rel (%p1293) target = $region40
      $region39: #{res_block_forward.3} parent=35 // pred_region
        _
      $region40: #{res_block_forward.3} parent=35 // pred_fallthru
        _
      // Predicated region
      $region41: #{res_block_forward.3} parent=35 // pred_check
        %p1296 = pneg %p151
      $region42: #{res_block_forward.3} parent=35 // pred_check_branch
        %1298 = sbr.rel (%p1296) target = $region44
      $region43: #{res_block_forward.3} parent=35 // pred_region
        _
      $region44: #{res_block_forward.3} parent=35 // pred_fallthru
        _
      // Predicated region
      $region45: #{res_block_forward.3} parent=35 // pred_check
        %p1299 = pneg %p177
      $region46: #{res_block_forward.3} parent=35 // pred_check_branch
        %1301 = sbr.rel (%p1299) target = $region48
      $region47: #{res_block_forward.3} parent=35 // pred_region
        _
      $region48: #{res_block_forward.3} parent=35 // pred_fallthru
        _
    $region36: #{res_block_forward.3} parent=5 // pred_fallthru
      _
    %p1302 = scmp.le.s32.totalorder 2, %s13
    // Predicated region
    $region49: #{res_block_forward.3} parent=5 // pred_check
      %p1303 = pneg %p1302
    $region50: #{res_block_forward.3} parent=5 // pred_check_branch
      %1305 = sbr.rel (%p1303) target = $region52
    $region51: #{res_block_forward.3} parent=5 // pred_region
      %s1306 = ssub.s32 %s13, 2
      // Predicated region
      $region53: #{res_block_forward.3} parent=51 // pred_check
        %p1307 = pneg %p131
      $region54: #{res_block_forward.3} parent=51 // pred_check_branch
        %1309 = sbr.rel (%p1307) target = $region56
      $region55: #{res_block_forward.3} parent=51 // pred_region
        %p1310 = scmp.lt.s32.totalorder %s19, 1
        %s1311 = scalar_select %p1310, %s19, 1
        %s1312 = smul.addr %s1311, 2
        %s1313 = smul.addr %s1312, 8
        %s1314 = scalar_lea.vmem %s4, %s1313
      $region56: #{res_block_forward.3} parent=51 // pred_fallthru
        _
      // Predicated region
      $region57: #{res_block_forward.3} parent=51 // pred_check
        %p1315 = pneg %p157
      $region58: #{res_block_forward.3} parent=51 // pred_check_branch
        %1317 = sbr.rel (%p1315) target = $region60
      $region59: #{res_block_forward.3} parent=51 // pred_region
        %p1318 = scmp.lt.s32.totalorder %s19, 1
        %s1319 = scalar_select %p1318, %s19, 1
        %s1320 = smul.addr %s1319, 8
        %s1321 = scalar_lea.vmem %s5, %s1320
      $region60: #{res_block_forward.3} parent=51 // pred_fallthru
        _
      // Predicated region
      $region61: #{res_block_forward.3} parent=51 // pred_check
        %p1322 = pneg %p183
      $region62: #{res_block_forward.3} parent=51 // pred_check_branch
        %1324 = sbr.rel (%p1322) target = $region64
      $region63: #{res_block_forward.3} parent=51 // pred_region
        %p1325 = scmp.lt.s32.totalorder %s19, 1
        %s1326 = scalar_select %p1325, %s19, 1
        %s1327 = smul.addr %s1326, 8
        %s1328 = scalar_lea.vmem %s6, %s1327
      $region64: #{res_block_forward.3} parent=51 // pred_fallthru
        _
    $region52: #{res_block_forward.3} parent=5 // pred_fallthru
      _
  $region6: #{res_block_forward.3} parent=0 // loop_footer
    %s17 = sadd.s32 1, %s13
  $region7: #{res_block_forward.3} parent=0 // loop_footer_branch
    %12 = sbr.rel target = $region3
  $region8: #{res_block_forward.3} parent=0 // loop_exit
    _

</llo_original>
